<compile_context>
chip_gen: v7x
topology: tpu7x:2x2x1
jax: 0.10.0
libtpu: 0.0.40
codegen_flags: <defaults>
</compile_context>

<pallas_src>
import functools

import numpy as np
import jax
import jax.numpy as jnp
from jax.experimental import pallas as pl
from jax.experimental.pallas import tpu as pltpu

_HIGHEST = jax.lax.Precision.HIGHEST


def _round_up(a, m):
    return -(-a // m) * m


def _rot90_flat_perm(H, W, k):
    """idx such that flatten(rot90(X, k))[p] == flatten(X)[idx[p]] (torch dir)."""
    hw = H * W
    p = np.arange(hw)
    i, j = p // W, p % W
    src = j * W + (W - 1 - i)           # one 90-degree rotation
    idx = p
    for _ in range(k % 4):
        idx = idx[src]
    return idx


@functools.lru_cache(maxsize=None)
def _structural_constants(C, N, H, W, tb, num_angles):
    """Host-side (numpy) shape-only constants; cached across calls."""
    CN = C * N
    CR = _round_up(CN, 8)               # sublane-aligned rows per batch
    HW = H * W

    # Distinct torch.rot90 copies: only k % 4 matter.  Full {0,1,2,3} set ->
    # chained 2-matmul form with P(k=1) and P(k=2).
    ks = sorted({k % 4 for k in range(num_angles)})
    chained = ks == [0, 1, 2, 3]
    perm_ks = [1, 2] if chained else [k for k in ks if k != 0]
    perms = []
    for k in perm_ks:
        idx = _rot90_flat_perm(H, W, k)
        perms.append((np.arange(HW)[:, None] == idx[None, :]).astype(np.float32))

    # Row r (within a batch, r < CN) holds channel c = r // N, class n = r % N.
    # Padded rows (CN <= r < CR) get zero columns everywhere -> fully isolated.
    r = np.arange(CR)
    valid = r < CN
    cls = np.arange(N)
    s = ((cls[:, None] == (r % N)[None, :]) & valid[None, :]).astype(np.float32) / C
    e = (((r % N)[:, None] == cls[None, :]) & valid[:, None]).astype(np.float32)
    eye_tb = np.eye(tb, dtype=np.float32)
    s_blk = np.kron(eye_tb, s)          # (tb*N, tb*CR) channel-mean selector
    e_blk = np.kron(eye_tb, e)          # (tb*CR, tb*N) per-class gate broadcaster
    return chained, tuple(perms), s_blk, e_blk


def _fused_kernel(sp_ref, s_ref, e_ref, bd_ref, bt_ref, *refs, chained):
    perm_refs = refs[:-2]
    x_ref, out_ref = refs[-2], refs[-1]

    scale = sp_ref[0]                   # folded spatial_conv + BN scale
    shift = sp_ref[1]                   # folded spatial_conv + BN shift
    xb = x_ref[...]                     # (TR, HW) packed rows, lane-dense

    # Rotation-invariant features: max over distinct rot90 copies, computed
    # in-VMEM as exact permutation matmuls over the whole packed block (MXU M
    # dim = all TR rows at once; no per-batch unroll, no masked stores).
    inv = xb
    for pref in perm_refs:
        lhs = inv if chained else xb
        inv = jnp.maximum(
            inv, jnp.dot(lhs, pref[...], precision=_HIGHEST,
                         preferred_element_type=jnp.float32))

    # Spatial gate: per-(batch, class) channel mean -> folded conv1x1+BN affine
    # -> sigmoid, broadcast back to all channels of that class.
    sw = jnp.dot(s_ref[...], inv, precision=_HIGHEST,
                 preferred_element_type=jnp.float32)             # (tb*N, HW)
    gate = jax.nn.sigmoid(sw * scale + shift)
    wf = inv * jnp.dot(e_ref[...], gate, precision=_HIGHEST,
                       preferred_element_type=jnp.float32)       # (TR, HW)

    # out_conv over PyTorch's .view(B*N, C, H, W) channel/class scramble
    # (block-diagonal matmul) + bias + residual, all on the resident block.
    y = jnp.dot(bd_ref[...], wf, precision=_HIGHEST,
                preferred_element_type=jnp.float32)
    out_ref[...] = y + bt_ref[...] + xb


def rotation_invariant_module(x, params, num_angles=8, bn_eps=1e-5):
    B, C, N, H, W = x.shape
    assert H == W, "rot90 stacking requires square spatial dims"
    HW = H * W
    CN = C * N
    CR = _round_up(CN, 8)               # sublane-aligned rows per batch

    # Block sizing: target ~256 packed rows (fills the 256-deep MXU M dim on
    # v6e/v7x) but keep >= 2 grid steps when B >= 2 so v7x's two TensorCores
    # both get a "parallel" grid step and there is DMA/compute overlap.
    tb = max(1, min(B, 256 // CR))
    if B >= 2:
        tb = max(1, min(tb, B // 2))
    B_pad = _round_up(B, tb)            # pad batch instead of a divisor search
    TR = tb * CR                        # packed rows per grid step (mult. of 8)
    grid = (B_pad // tb,)

    chained, perms_np, s_np, e_np = _structural_constants(C, N, H, W, tb, num_angles)

    # VMEM guard for the (HW, HW) permutation-matmul path (double-buffered).
    if 2 * len(perms_np) * HW * HW * 4 > 24 * 1024 * 1024:
        # TODO(synk): in-kernel transpose+flip rotation fallback for large H*W.
        raise NotImplementedError("H*W too large for the permutation-matmul path")

    # Fold spatial_conv (scalar 1x1) + eval-mode BatchNorm2d into one affine.
    inv_std = 1.0 / jnp.sqrt(params["bn_var"] + bn_eps)
    scale = params["sc_w"] * params["bn_gamma"] * inv_std
    shift = ((params["sc_b"] - params["bn_mean"]) * params["bn_gamma"] * inv_std
             + params["bn_beta"])
    sp = jnp.stack([scale, shift]).astype(jnp.float32)           # (2,) -> SMEM

    # Parameter-dependent constants (tiny; constant-fold if the caller jits).
    w_cn = jnp.kron(jnp.eye(N, dtype=jnp.float32),
                    params["out_w"].astype(jnp.float32))         # (CN, CN)
    if CR != CN:
        w_cn = jnp.zeros((CR, CR), jnp.float32).at[:CN, :CN].set(w_cn)
    bd_blk = w_cn if tb == 1 else jnp.kron(jnp.eye(tb, dtype=jnp.float32), w_cn)
    bt = jnp.concatenate(
        [jnp.tile(params["out_b"].astype(jnp.float32), N),
         jnp.zeros((CR - CN,), jnp.float32)]).reshape(CR, 1)
    bt_blk = bt if tb == 1 else jnp.tile(bt, (tb, 1))            # (TR, 1)

    s_blk = jnp.asarray(s_np)
    e_blk = jnp.asarray(e_np)
    perms = [jnp.asarray(p) for p in perms_np]

    # Row-packed, lane-dense view of x.  Pad rows-per-batch to CR and batch to
    # B_pad; padded rows/batches are zeros, isolated by the zero-padded
    # selector / out_conv columns, and sliced off at the end.
    x3 = x.astype(jnp.float32).reshape(B, CN, HW)
    if CR != CN or B_pad != B:
        x3 = jnp.pad(x3, ((0, B_pad - B), (0, CR - CN), (0, 0)))
    x2 = x3.reshape(B_pad * CR, HW)

    const = lambda i: (0, 0)
    row_spec = pl.BlockSpec((TR, HW), lambda i: (i, 0))

    out2 = pl.pallas_call(
        functools.partial(_fused_kernel, chained=chained),
        out_shape=jax.ShapeDtypeStruct((B_pad * CR, HW), jnp.float32),
        grid=grid,
        in_specs=[
            pl.BlockSpec(memory_space=pltpu.MemorySpace.SMEM),   # folded affine
            pl.BlockSpec((tb * N, TR), const),                   # channel-mean selector
            pl.BlockSpec((TR, tb * N), const),                   # gate broadcaster
            pl.BlockSpec((TR, TR), const),                       # out_conv (block-diag)
            pl.BlockSpec((TR, 1), const),                        # out_conv bias (tiled)
        ]
        + [pl.BlockSpec((HW, HW), const) for _ in perms]         # rotation perms
        + [row_spec],                                            # packed x rows
        out_specs=row_spec,
        compiler_params=pltpu.CompilerParams(
            dimension_semantics=("parallel",),
            vmem_limit_bytes=32 * 1024 * 1024),
    )(sp, s_blk, e_blk, bd_blk, bt_blk, *perms, x2)

    out = out2.reshape(B_pad, CR, HW)[:B, :CN]
    return out.reshape(B, C, N, H, W)


def init_params(key, in_channels):
    """Deterministic synthetic parameters (shapes match the nn.Module)."""
    k1, k2, k3 = jax.random.split(key, 3)
    return {
        # spatial_conv = nn.Conv2d(1, 1, 1): scalar weight + scalar bias
        "sc_w": jax.random.normal(k1, (), dtype=jnp.float32) * 0.5,
        "sc_b": jnp.float32(0.1),
        # spatial_bn = nn.BatchNorm2d(1), eval mode running stats
        "bn_gamma": jnp.float32(1.2),
        "bn_beta": jnp.float32(-0.05),
        "bn_mean": jnp.float32(0.03),
        "bn_var": jnp.float32(0.9),
        # out_conv = nn.Conv2d(C, C, 1): (C_out, C_in) weight + (C,) bias
        "out_w": jax.random.normal(k2, (in_channels, in_channels),
                                   dtype=jnp.float32) / in_channels,
        "out_b": jax.random.normal(k3, (in_channels,), dtype=jnp.float32) * 0.1,
    }


def reference(x, params, num_angles=8, bn_eps=1e-5):
    """Pure-JAX mirror of the PyTorch forward (eval-mode BN)."""
    B, C, N, H, W = x.shape
    rots = [jnp.rot90(x, k=k, axes=(-2, -1)) for k in range(num_angles)]
    inv = jnp.max(jnp.stack(rots, axis=3), axis=3)
    sw = jnp.mean(inv, axis=1, keepdims=True).reshape(B * N, 1, H, W)
    sw = sw * params["sc_w"] + params["sc_b"]
    sw = ((sw - params["bn_mean"]) / jnp.sqrt(params["bn_var"] + bn_eps)
          * params["bn_gamma"] + params["bn_beta"])
    sw = jax.nn.sigmoid(sw).reshape(B, 1, N, H, W)
    wf = (inv * sw).reshape(B * N, C, H, W)
    out = (jnp.einsum("oc,ichw->iohw", params["out_w"], wf,
                      precision=jax.lax.Precision.HIGHEST)
           + params["out_b"][None, :, None, None])
    return out.reshape(B, C, N, H, W) + x


if __name__ == "__main__":
    B, C, N, H, W = 2, 4, 3, 16, 16   # batch, channels, num_classes, H, W
    key = jax.random.PRNGKey(0)
    kx, kp = jax.random.split(key)
    x = jax.random.normal(kx, (B, C, N, H, W), dtype=jnp.float32)
    params = init_params(kp, C)

    out = jax.block_until_ready(rotation_invariant_module(x, params))
    ref = jax.block_until_ready(reference(x, params))

    assert out.shape == (B, C, N, H, W)
    max_err = float(jnp.max(jnp.abs(out - ref)))
    if max_err > 1e-3:
        raise AssertionError(f"mismatch vs reference: max abs err = {max_err}")
    print("KERNEL_OK")
</pallas_src>

<mosaic_0001>
module attributes {stable_mosaic.version = 11 : i64} {
  func.func @_fused_kernel(%arg0: i32, %arg1: memref<2xf32, #tpu.memory_space<smem>>, %arg2: memref<3x16xf32, #tpu.memory_space<vmem>>, %arg3: memref<16x3xf32, #tpu.memory_space<vmem>>, %arg4: memref<16x16xf32, #tpu.memory_space<vmem>>, %arg5: memref<16x1xf32, #tpu.memory_space<vmem>>, %arg6: memref<256x256xf32, #tpu.memory_space<vmem>>, %arg7: memref<256x256xf32, #tpu.memory_space<vmem>>, %arg8: memref<16x256xf32, #tpu.memory_space<vmem>>, %arg9: memref<16x256xf32, #tpu.memory_space<vmem>>) attributes {dimension_semantics = [#tpu.dimension_semantics<parallel>], iteration_bounds = array<i64: 2>, scalar_prefetch = 0 : i64, scratch_operands = 0 : i64, tpu.core_type = #tpu.core_type<tc>, window_params = [{transform_indices = @transform_0, window_bounds = array<i64: 2>}, {pipeline_mode = #tpu.pipeline_mode<synchronous>, transform_indices = @transform_1, window_bounds = array<i64: 3, 16>}, {pipeline_mode = #tpu.pipeline_mode<synchronous>, transform_indices = @transform_2, window_bounds = array<i64: 16, 3>}, {pipeline_mode = #tpu.pipeline_mode<synchronous>, transform_indices = @transform_3, window_bounds = array<i64: 16, 16>}, {pipeline_mode = #tpu.pipeline_mode<synchronous>, transform_indices = @transform_4, window_bounds = array<i64: 16, 1>}, {pipeline_mode = #tpu.pipeline_mode<synchronous>, transform_indices = @transform_5, window_bounds = array<i64: 256, 256>}, {pipeline_mode = #tpu.pipeline_mode<synchronous>, transform_indices = @transform_6, window_bounds = array<i64: 256, 256>}, {transform_indices = @transform_7, window_bounds = array<i64: 16, 256>}, {transform_indices = @transform_8, window_bounds = array<i64: 16, 256>}]} {
    %c0 = arith.constant 0 : index
    %0 = memref.load %arg1[%c0] : memref<2xf32, #tpu.memory_space<smem>>
    %c1 = arith.constant 1 : index
    %1 = memref.load %arg1[%c1] : memref<2xf32, #tpu.memory_space<smem>>
    %c0_0 = arith.constant 0 : index
    %c0_1 = arith.constant 0 : index
    %2 = vector.load %arg8[%c0_0, %c0_1] : memref<16x256xf32, #tpu.memory_space<vmem>>, vector<16x256xf32>
    %c0_2 = arith.constant 0 : index
    %c0_3 = arith.constant 0 : index
    %3 = vector.load %arg6[%c0_2, %c0_3] : memref<256x256xf32, #tpu.memory_space<vmem>>, vector<256x256xf32>
    %cst = arith.constant dense<0.000000e+00> : vector<16x256xf32>
    %4 = tpu.matmul %2, %3, %cst {dimension_numbers = #tpu.dot_dimension_numbers<[1], [0], [0], [1], [0, 0, 1, 1], [], []>, precision = #tpu.contract_precision<fp32>} : vector<16x256xf32>, vector<256x256xf32>, vector<16x256xf32> -> vector<16x256xf32>
    %5 = arith.maximumf %2, %4 : vector<16x256xf32>
    %c0_4 = arith.constant 0 : index
    %c0_5 = arith.constant 0 : index
    %6 = vector.load %arg7[%c0_4, %c0_5] : memref<256x256xf32, #tpu.memory_space<vmem>>, vector<256x256xf32>
    %cst_6 = arith.constant dense<0.000000e+00> : vector<16x256xf32>
    %7 = tpu.matmul %5, %6, %cst_6 {dimension_numbers = #tpu.dot_dimension_numbers<[1], [0], [0], [1], [0, 0, 1, 1], [], []>, precision = #tpu.contract_precision<fp32>} : vector<16x256xf32>, vector<256x256xf32>, vector<16x256xf32> -> vector<16x256xf32>
    %8 = arith.maximumf %5, %7 : vector<16x256xf32>
    %c0_7 = arith.constant 0 : index
    %c0_8 = arith.constant 0 : index
    %9 = vector.load %arg2[%c0_7, %c0_8] : memref<3x16xf32, #tpu.memory_space<vmem>>, vector<3x16xf32>
    %cst_9 = arith.constant dense<0.000000e+00> : vector<3x256xf32>
    %10 = tpu.matmul %9, %8, %cst_9 {dimension_numbers = #tpu.dot_dimension_numbers<[1], [0], [0], [1], [0, 0, 1, 1], [], []>, precision = #tpu.contract_precision<fp32>} : vector<3x16xf32>, vector<16x256xf32>, vector<3x256xf32> -> vector<3x256xf32>
    %11 = vector.broadcast %0 : f32 to vector<3x256xf32>
    %12 = arith.mulf %10, %11 : vector<3x256xf32>
    %13 = vector.broadcast %1 : f32 to vector<3x256xf32>
    %14 = arith.addf %12, %13 : vector<3x256xf32>
    %15 = arith.negf %14 : vector<3x256xf32>
    %16 = math.exp %15 : vector<3x256xf32>
    %cst_10 = arith.constant 1.000000e+00 : f32
    %17 = vector.broadcast %cst_10 : f32 to vector<3x256xf32>
    %18 = arith.addf %17, %16 : vector<3x256xf32>
    %19 = arith.divf %17, %18 : vector<3x256xf32>
    %c0_11 = arith.constant 0 : index
    %c0_12 = arith.constant 0 : index
    %20 = vector.load %arg3[%c0_11, %c0_12] : memref<16x3xf32, #tpu.memory_space<vmem>>, vector<16x3xf32>
    %cst_13 = arith.constant dense<0.000000e+00> : vector<16x256xf32>
    %21 = tpu.matmul %20, %19, %cst_13 {dimension_numbers = #tpu.dot_dimension_numbers<[1], [0], [0], [1], [0, 0, 1, 1], [], []>, precision = #tpu.contract_precision<fp32>} : vector<16x3xf32>, vector<3x256xf32>, vector<16x256xf32> -> vector<16x256xf32>
    %22 = arith.mulf %8, %21 : vector<16x256xf32>
    %c0_14 = arith.constant 0 : index
    %c0_15 = arith.constant 0 : index
    %23 = vector.load %arg4[%c0_14, %c0_15] : memref<16x16xf32, #tpu.memory_space<vmem>>, vector<16x16xf32>
    %cst_16 = arith.constant dense<0.000000e+00> : vector<16x256xf32>
    %24 = tpu.matmul %23, %22, %cst_16 {dimension_numbers = #tpu.dot_dimension_numbers<[1], [0], [0], [1], [0, 0, 1, 1], [], []>, precision = #tpu.contract_precision<fp32>} : vector<16x16xf32>, vector<16x256xf32>, vector<16x256xf32> -> vector<16x256xf32>
    %c0_17 = arith.constant 0 : index
    %c0_18 = arith.constant 0 : index
    %25 = vector.load %arg5[%c0_17, %c0_18] : memref<16x1xf32, #tpu.memory_space<vmem>>, vector<16x1xf32>
    %26 = vector.broadcast %25 : vector<16x1xf32> to vector<16x256xf32>
    %27 = arith.addf %24, %26 : vector<16x256xf32>
    %28 = arith.addf %27, %2 : vector<16x256xf32>
    %c0_19 = arith.constant 0 : index
    %c0_20 = arith.constant 0 : index
    %29 = vector.load %arg9[%c0_19, %c0_20] : memref<16x256xf32, #tpu.memory_space<vmem>>, vector<16x256xf32>
    tpu.vector_store %arg9[%c0_19, %c0_20], %28 {strides = array<i32>} : memref<16x256xf32, #tpu.memory_space<vmem>>, vector<16x256xf32>,
    return
  }
  func.func @transform_0(%arg0: i32) -> i32 {
    %c0_i32 = arith.constant 0 : i32
    %c0_i32_0 = arith.constant 0 : i32
    return %c0_i32 : i32
  }
  func.func @transform_1(%arg0: i32) -> (i32, i32) {
    %c0_i32 = arith.constant 0 : i32
    %c0_i32_0 = arith.constant 0 : i32
    %c0_i32_1 = arith.constant 0 : i32
    return %c0_i32, %c0_i32_0 : i32, i32
  }
  func.func @transform_2(%arg0: i32) -> (i32, i32) {
    %c0_i32 = arith.constant 0 : i32
    %c0_i32_0 = arith.constant 0 : i32
    %c0_i32_1 = arith.constant 0 : i32
    return %c0_i32, %c0_i32_0 : i32, i32
  }
  func.func @transform_3(%arg0: i32) -> (i32, i32) {
    %c0_i32 = arith.constant 0 : i32
    %c0_i32_0 = arith.constant 0 : i32
    %c0_i32_1 = arith.constant 0 : i32
    return %c0_i32, %c0_i32_0 : i32, i32
  }
  func.func @transform_4(%arg0: i32) -> (i32, i32) {
    %c0_i32 = arith.constant 0 : i32
    %c0_i32_0 = arith.constant 0 : i32
    %c0_i32_1 = arith.constant 0 : i32
    return %c0_i32, %c0_i32_0 : i32, i32
  }
  func.func @transform_5(%arg0: i32) -> (i32, i32) {
    %c0_i32 = arith.constant 0 : i32
    %c0_i32_0 = arith.constant 0 : i32
    %c0_i32_1 = arith.constant 0 : i32
    return %c0_i32, %c0_i32_0 : i32, i32
  }
  func.func @transform_6(%arg0: i32) -> (i32, i32) {
    %c0_i32 = arith.constant 0 : i32
    %c0_i32_0 = arith.constant 0 : i32
    %c0_i32_1 = arith.constant 0 : i32
    return %c0_i32, %c0_i32_0 : i32, i32
  }
  func.func @transform_7(%arg0: i32) -> (i32, i32) {
    %c0_i32 = arith.constant 0 : i32
    %c0_i32_0 = arith.constant 0 : i32
    return %arg0, %c0_i32 : i32, i32
  }
  func.func @transform_8(%arg0: i32) -> (i32, i32) {
    %c0_i32 = arith.constant 0 : i32
    %c0_i32_0 = arith.constant 0 : i32
    return %arg0, %c0_i32 : i32, i32
  }
}

</mosaic_0001>

<llo_original>
// kernel: tpu_custom_call.1
$region0: #{tpu_custom_call.1}
  #allocation0 [shape = 'u32[]', space=smem, size = 0x4, offset = 0x4, fixed_abs, tag = 'smem constant byte address 0x4 - core index']
  #allocation1 [shape = 'u32[144,128]{1,0:T(1,128)}', space=vmem, size = 0x12000, scoped, tag = 'internal scratch']
  %s0 = inlined_call_operand.vmem [shape: f32[2], index: 0, kind: input, shape index: {}]
  %s1 = inlined_call_operand.vmem [shape: f32[3,16], index: 1, kind: input, shape index: {}]
  %s2 = inlined_call_operand.vmem [shape: f32[16,3], index: 2, kind: input, shape index: {}]
  %s3 = inlined_call_operand.vmem [shape: f32[16,16], index: 3, kind: input, shape index: {}]
  %s4 = inlined_call_operand.vmem [shape: f32[16,1], index: 4, kind: input, shape index: {}]
  %s5 = inlined_call_operand.hbm [shape: f32[256,256], index: 5, kind: input, shape index: {}]
  %s6 = inlined_call_operand.hbm [shape: f32[256,256], index: 6, kind: input, shape index: {}]
  %s7 = inlined_call_operand.hbm [shape: f32[32,256], index: 7, kind: input, shape index: {}]
  %s8 = inlined_call_operand.hbm [shape: f32[32,256], index: 8, kind: output, shape index: {}]
  %s9 = sld [smem:[#allocation0]]
  $region81: #{tpu_custom_call.1} parent=0
    _
  %s11 = ssub.s32 1, %s9
  %s12 = scalar_select 0, %s11, %s9
  $region1: #{tpu_custom_call.1} parent=0
    #allocation2 [shape = 'u8[512]{0}', space=smem, size = 0x200, scoped, tag = 'input window, operand 0, single buffered']
    #allocation3 [shape = 's32[2]{0}', space=sflag, size = 0x8, scoped, tag = 'scoped memory for tpu_custom_call.1']
    #allocation4 [shape = 's32[2]{0}', space=sflag, size = 0x8, scoped, tag = 'scoped memory for tpu_custom_call.1']
    #allocation5 [shape = 's32[2]{0}', space=sflag, size = 0x8, scoped, tag = 'scoped memory for tpu_custom_call.1']
    #allocation6 [shape = 'u8[262144]{0}', space=vmem, size = 0x40000, scoped, tag = 'input window, operand 5, single buffered']
    #allocation7 [shape = 'u8[262144]{0}', space=vmem, size = 0x40000, scoped, tag = 'input window, operand 6, single buffered']
    #allocation8 [shape = 's32[1]{0}', space=sflag, size = 0x4, scoped, tag = 'scoped memory for tpu_custom_call.1']
    #allocation9 [shape = 'u8[32768]{0}', space=vmem, size = 0x8000, scoped, tag = 'input window, operand 7']
    #allocation10 [shape = 'u8[32768]{0}', space=vmem, size = 0x8000, scoped, tag = 'output window, operand 0']
    %13 = vsyncpa [#allocation5], 0
    %14 = vsyncpa [#allocation3], 0
    %15 = vsyncpa [#allocation8], 0
    %16 = vsyncpa [#allocation4], 0
    %s17 = scalar_lea.sflag [#allocation4], 1
    %18 = vsyncpa %s17, 0
    loop: start=0, step=1, limit=4
    $region2: #{tpu_custom_call.1} parent=1 // loop_pre_header
      _
    $region3: #{tpu_custom_call.1} parent=1 // loop_header
      %s20 = sphi 0, %s24
      %p21 = scmp.ge.s32.totalorder %s20, 4
      %s28 = sphi 0, %s28
      %s30 = sphi 0, %s28
      %s31 = sphi 0, %s30
      %s45 = sphi 0, %s31
      %s49 = sphi 0, %s49
      %s51 = sphi 0, %s49
      %s52 = sphi 0, %s51
      %s66 = sphi 0, %s52
      %s70 = sphi 0, %s70
      %s72 = sphi 0, %s70
      %s73 = sphi 0, %s72
      %s87 = sphi 0, %s73
      %s91 = sphi 0, %s91
      %s93 = sphi 0, %s91
      %s94 = sphi 0, %s93
      %s108 = sphi 0, %s94
      %s112 = sphi 0, %s112
      %s114 = sphi 0, %s112
      %s115 = sphi 0, %s114
      %s129 = sphi 0, %s115
      %s133 = sphi 0, %s133
      %s135 = sphi 0, %s133
      %s136 = sphi 0, %s135
      %s150 = sphi 0, %s136
      %s154 = sphi 0, %s154
      %s156 = sphi 0, %s154
      %s157 = sphi 0, %s156
      %s171 = sphi 0, %s157
      %s177 = sphi 0, %s179
      %s180 = sphi 0, %s177
      %s181 = sphi 0, %s180
      %s197 = sphi 0, %s181
      %s203 = sphi 0, %s205
      %s206 = sphi 0, %s203
      %s207 = sphi 0, %s206
      %s223 = sphi 0, %s207
    $region4: #{tpu_custom_call.1} parent=1 // loop_header_branch
      %23 = sbr.rel (%p21) target = $region8
    $region5: #{tpu_custom_call.1} parent=1 // loop_body
      %s25 = ssub.s32 %s20, 1
      %s26 = ssub.s32 %s20, 2
      %s27 = sadd.s32 %s20, 1
      %s29 = sadd.s32 %s28, 1
      %p32 = scmp.eq.s32.totalorder %s20, 1
      %p33 = scmp.ne.s32.totalorder %s28, %s30
      %p34 = scmp.eq.s32.totalorder %s20, 0
      %p35 = por %p33, %p34
      %p36 = scmp.ne.s32.totalorder %s28, %s30
      %p37 = scmp.eq.s32.totalorder %s25, 1
      %p38 = por %p36, %p37
      %p39 = scmp.ne.s32.totalorder %s30, %s31
      %p40 = scmp.eq.s32.totalorder %s25, 0
      %p41 = por %p39, %p40
      %p42 = scmp.ne.s32.totalorder %s30, %s31
      %p43 = scmp.eq.s32.totalorder %s26, 1
      %p44 = por %p42, %p43
      %p46 = scmp.ne.s32.totalorder %s31, %s45
      %p47 = scmp.eq.s32.totalorder %s26, 0
      %p48 = por %p46, %p47
      %s50 = sadd.s32 %s49, 1
      %p53 = scmp.eq.s32.totalorder %s20, 1
      %p54 = scmp.ne.s32.totalorder %s49, %s51
      %p55 = scmp.eq.s32.totalorder %s20, 0
      %p56 = por %p54, %p55
      %p57 = scmp.ne.s32.totalorder %s49, %s51
      %p58 = scmp.eq.s32.totalorder %s25, 1
      %p59 = por %p57, %p58
      %p60 = scmp.ne.s32.totalorder %s51, %s52
      %p61 = scmp.eq.s32.totalorder %s25, 0
      %p62 = por %p60, %p61
      %p63 = scmp.ne.s32.totalorder %s51, %s52
      %p64 = scmp.eq.s32.totalorder %s26, 1
      %p65 = por %p63, %p64
      %p67 = scmp.ne.s32.totalorder %s52, %s66
      %p68 = scmp.eq.s32.totalorder %s26, 0
      %p69 = por %p67, %p68
      %s71 = sadd.s32 %s70, 1
      %p74 = scmp.eq.s32.totalorder %s20, 1
      %p75 = scmp.ne.s32.totalorder %s70, %s72
      %p76 = scmp.eq.s32.totalorder %s20, 0
      %p77 = por %p75, %p76
      %p78 = scmp.ne.s32.totalorder %s70, %s72
      %p79 = scmp.eq.s32.totalorder %s25, 1
      %p80 = por %p78, %p79
      %p81 = scmp.ne.s32.totalorder %s72, %s73
      %p82 = scmp.eq.s32.totalorder %s25, 0
      %p83 = por %p81, %p82
      %p84 = scmp.ne.s32.totalorder %s72, %s73
      %p85 = scmp.eq.s32.totalorder %s26, 1
      %p86 = por %p84, %p85
      %p88 = scmp.ne.s32.totalorder %s73, %s87
      %p89 = scmp.eq.s32.totalorder %s26, 0
      %p90 = por %p88, %p89
      %s92 = sadd.s32 %s91, 1
      %p95 = scmp.eq.s32.totalorder %s20, 1
      %p96 = scmp.ne.s32.totalorder %s91, %s93
      %p97 = scmp.eq.s32.totalorder %s20, 0
      %p98 = por %p96, %p97
      %p99 = scmp.ne.s32.totalorder %s91, %s93
      %p100 = scmp.eq.s32.totalorder %s25, 1
      %p101 = por %p99, %p100
      %p102 = scmp.ne.s32.totalorder %s93, %s94
      %p103 = scmp.eq.s32.totalorder %s25, 0
      %p104 = por %p102, %p103
      %p105 = scmp.ne.s32.totalorder %s93, %s94
      %p106 = scmp.eq.s32.totalorder %s26, 1
      %p107 = por %p105, %p106
      %p109 = scmp.ne.s32.totalorder %s94, %s108
      %p110 = scmp.eq.s32.totalorder %s26, 0
      %p111 = por %p109, %p110
      %s113 = sadd.s32 %s112, 1
      %p116 = scmp.eq.s32.totalorder %s20, 1
      %p117 = scmp.ne.s32.totalorder %s112, %s114
      %p118 = scmp.eq.s32.totalorder %s20, 0
      %p119 = por %p117, %p118
      %p120 = scmp.ne.s32.totalorder %s112, %s114
      %p121 = scmp.eq.s32.totalorder %s25, 1
      %p122 = por %p120, %p121
      %p123 = scmp.ne.s32.totalorder %s114, %s115
      %p124 = scmp.eq.s32.totalorder %s25, 0
      %p125 = por %p123, %p124
      %p126 = scmp.ne.s32.totalorder %s114, %s115
      %p127 = scmp.eq.s32.totalorder %s26, 1
      %p128 = por %p126, %p127
      %p130 = scmp.ne.s32.totalorder %s115, %s129
      %p131 = scmp.eq.s32.totalorder %s26, 0
      %p132 = por %p130, %p131
      %s134 = sadd.s32 %s133, 1
      %p137 = scmp.eq.s32.totalorder %s20, 1
      %p138 = scmp.ne.s32.totalorder %s133, %s135
      %p139 = scmp.eq.s32.totalorder %s20, 0
      %p140 = por %p138, %p139
      %p141 = scmp.ne.s32.totalorder %s133, %s135
      %p142 = scmp.eq.s32.totalorder %s25, 1
      %p143 = por %p141, %p142
      %p144 = scmp.ne.s32.totalorder %s135, %s136
      %p145 = scmp.eq.s32.totalorder %s25, 0
      %p146 = por %p144, %p145
      %p147 = scmp.ne.s32.totalorder %s135, %s136
      %p148 = scmp.eq.s32.totalorder %s26, 1
      %p149 = por %p147, %p148
      %p151 = scmp.ne.s32.totalorder %s136, %s150
      %p152 = scmp.eq.s32.totalorder %s26, 0
      %p153 = por %p151, %p152
      %s155 = sadd.s32 %s154, 1
      %p158 = scmp.eq.s32.totalorder %s20, 1
      %p159 = scmp.ne.s32.totalorder %s154, %s156
      %p160 = scmp.eq.s32.totalorder %s20, 0
      %p161 = por %p159, %p160
      %p162 = scmp.ne.s32.totalorder %s154, %s156
      %p163 = scmp.eq.s32.totalorder %s25, 1
      %p164 = por %p162, %p163
      %p165 = scmp.ne.s32.totalorder %s156, %s157
      %p166 = scmp.eq.s32.totalorder %s25, 0
      %p167 = por %p165, %p166
      %p168 = scmp.ne.s32.totalorder %s156, %s157
      %p169 = scmp.eq.s32.totalorder %s26, 1
      %p170 = por %p168, %p169
      %p172 = scmp.ne.s32.totalorder %s157, %s171
      %p173 = scmp.eq.s32.totalorder %s26, 0
      %p174 = por %p172, %p173
      %s175 = ssub.s32 %s20, %s27
      %p176 = scmp.eq.s32.totalorder %s175, 0
      %s178 = sadd.s32 %s177, 1
      %s179 = scalar_select %p176, %s177, %s178
      %p182 = pneg %p176
      %p183 = scmp.eq.s32.totalorder %s20, 1
      %p184 = por %p182, %p183
      %p185 = scmp.ne.s32.totalorder %s177, %s180
      %p186 = scmp.eq.s32.totalorder %s20, 0
      %p187 = por %p185, %p186
      %p188 = scmp.ne.s32.totalorder %s177, %s180
      %p189 = scmp.eq.s32.totalorder %s25, 1
      %p190 = por %p188, %p189
      %p191 = scmp.ne.s32.totalorder %s180, %s181
      %p192 = scmp.eq.s32.totalorder %s25, 0
      %p193 = por %p191, %p192
      %p194 = scmp.ne.s32.totalorder %s180, %s181
      %p195 = scmp.eq.s32.totalorder %s26, 1
      %p196 = por %p194, %p195
      %p198 = scmp.ne.s32.totalorder %s181, %s197
      %p199 = scmp.eq.s32.totalorder %s26, 0
      %p200 = por %p198, %p199
      %s201 = ssub.s32 %s20, %s27
      %p202 = scmp.eq.s32.totalorder %s201, 0
      %s204 = sadd.s32 %s203, 1
      %s205 = scalar_select %p202, %s203, %s204
      %p208 = pneg %p202
      %p209 = scmp.eq.s32.totalorder %s20, 1
      %p210 = por %p208, %p209
      %p211 = scmp.ne.s32.totalorder %s203, %s206
      %p212 = scmp.eq.s32.totalorder %s20, 0
      %p213 = por %p211, %p212
      %p214 = scmp.ne.s32.totalorder %s203, %s206
      %p215 = scmp.eq.s32.totalorder %s25, 1
      %p216 = por %p214, %p215
      %p217 = scmp.ne.s32.totalorder %s206, %s207
      %p218 = scmp.eq.s32.totalorder %s25, 0
      %p219 = por %p217, %p218
      %p220 = scmp.ne.s32.totalorder %s206, %s207
      %p221 = scmp.eq.s32.totalorder %s26, 1
      %p222 = por %p220, %p221
      %p224 = scmp.ne.s32.totalorder %s207, %s223
      %p225 = scmp.eq.s32.totalorder %s26, 0
      %p226 = por %p224, %p225
      %p227 = scmp.le.s32.totalorder 1, %s20
      %p228 = scmp.lt.s32.totalorder %s20, 3
      %p229 = pnand %p227, %p228
      %p230 = pneg %p229
      // Predicated region
      $region9: #{tpu_custom_call.1} parent=5 // pred_check
        _
      $region10: #{tpu_custom_call.1} parent=5 // pred_check_branch
        %232 = sbr.rel (%p229) target = $region12
      $region11: #{tpu_custom_call.1} parent=5 // pred_region
        %s233 = ssub.s32 %s20, 1
        // Predicated region
        $region13: #{tpu_custom_call.1} parent=11 // pred_check
          %p234 = pneg %p41
        $region14: #{tpu_custom_call.1} parent=11 // pred_check_branch
          %236 = sbr.rel (%p234) target = $region16
        $region15: #{tpu_custom_call.1} parent=11 // pred_region
          %s238 = ssub.s32 16, 16
          %239 = vsyncadd [#allocation5], %s238
          %s241 = sshll.u32 %s0, 4
          %s242 = int_to_ptr.vmem [resolvable:$true] %s241
          %244 = dma.vmem_to_smem %s242, 16, [#allocation2], [#allocation5]
        $region16: #{tpu_custom_call.1} parent=11 // pred_fallthru
          _
        // Predicated region
        $region17: #{tpu_custom_call.1} parent=11 // pred_check
          %p245 = pneg %p62
        $region18: #{tpu_custom_call.1} parent=11 // pred_check_branch
          %247 = sbr.rel (%p245) target = $region20
        $region19: #{tpu_custom_call.1} parent=11 // pred_region
          _
        $region20: #{tpu_custom_call.1} parent=11 // pred_fallthru
          _
        // Predicated region
        $region21: #{tpu_custom_call.1} parent=11 // pred_check
          %p248 = pneg %p83
        $region22: #{tpu_custom_call.1} parent=11 // pred_check_branch
          %250 = sbr.rel (%p248) target = $region24
        $region23: #{tpu_custom_call.1} parent=11 // pred_region
          _
        $region24: #{tpu_custom_call.1} parent=11 // pred_fallthru
          _
        // Predicated region
        $region25: #{tpu_custom_call.1} parent=11 // pred_check
          %p251 = pneg %p104
        $region26: #{tpu_custom_call.1} parent=11 // pred_check_branch
          %253 = sbr.rel (%p251) target = $region28
        $region27: #{tpu_custom_call.1} parent=11 // pred_region
          _
        $region28: #{tpu_custom_call.1} parent=11 // pred_fallthru
          _
        // Predicated region
        $region29: #{tpu_custom_call.1} parent=11 // pred_check
          %p254 = pneg %p125
        $region30: #{tpu_custom_call.1} parent=11 // pred_check_branch
          %256 = sbr.rel (%p254) target = $region32
        $region31: #{tpu_custom_call.1} parent=11 // pred_region
          _
        $region32: #{tpu_custom_call.1} parent=11 // pred_fallthru
          _
        // Predicated region
        $region33: #{tpu_custom_call.1} parent=11 // pred_check
          %p257 = pneg %p146
        $region34: #{tpu_custom_call.1} parent=11 // pred_check_branch
          %259 = sbr.rel (%p257) target = $region36
        $region35: #{tpu_custom_call.1} parent=11 // pred_region
          %s261 = ssub.s32 8192, 8192
          %262 = vsyncadd [#allocation3], %s261
          %s263 = sshll.u32 [#allocation6], 4
          %s264 = int_to_ptr.vmem [resolvable:$true] %s263
          %269 = dma.hbm_to_vmem [thread:$0]  %s5, 8192, %s264, [#allocation3], 256, 256, 16
        $region36: #{tpu_custom_call.1} parent=11 // pred_fallthru
          _
        // Predicated region
        $region37: #{tpu_custom_call.1} parent=11 // pred_check
          %p270 = pneg %p167
        $region38: #{tpu_custom_call.1} parent=11 // pred_check_branch
          %272 = sbr.rel (%p270) target = $region40
        $region39: #{tpu_custom_call.1} parent=11 // pred_region
          %s274 = ssub.s32 8192, 8192
          %275 = vsyncadd [#allocation8], %s274
          %s276 = sshll.u32 [#allocation7], 4
          %s277 = int_to_ptr.vmem [resolvable:$true] %s276
          %282 = dma.hbm_to_vmem [thread:$0]  %s6, 8192, %s277, [#allocation8], 256, 256, 16
        $region40: #{tpu_custom_call.1} parent=11 // pred_fallthru
          _
      $region12: #{tpu_custom_call.1} parent=5 // pred_fallthru
        _
      %p283 = scmp.lt.s32.totalorder %s20, 2
      // Predicated region
      $region41: #{tpu_custom_call.1} parent=5 // pred_check
        %p284 = pneg %p283
      $region42: #{tpu_custom_call.1} parent=5 // pred_check_branch
        %286 = sbr.rel (%p284) target = $region44
      $region43: #{tpu_custom_call.1} parent=5 // pred_region
        // Predicated region
        $region45: #{tpu_custom_call.1} parent=43 // pred_check
          %p287 = pneg %p187
        $region46: #{tpu_custom_call.1} parent=43 // pred_check_branch
          %289 = sbr.rel (%p287) target = $region48
        $region47: #{tpu_custom_call.1} parent=43 // pred_region
          %s290 = sand.u32 %s20, 1
          %s291 = scalar_lea.sflag [#allocation3], %s290
          %s292 = sand.u32 %s177, 1
          %s293 = smul.addr %s292, 32
          %s294 = scalar_lea.vmem [#allocation9], %s293
          %s295 = smul.u32 2, %s20
          %s297 = ssub.s32 512, 512
          %298 = vsyncadd %s291, %s297
          %s299 = smul.addr %s295, 2
          %s300 = smul.addr %s299, 128
          %s301 = scalar_lea.hbm %s7, %s300
          %s302 = sshll.u32 %s294, 4
          %s303 = int_to_ptr.vmem [resolvable:$true] %s302
          %308 = dma.hbm_to_vmem [thread:$0]  %s301, 512, %s303, %s291, 256, 256, 16
        $region48: #{tpu_custom_call.1} parent=43 // pred_fallthru
          _
      $region44: #{tpu_custom_call.1} parent=5 // pred_fallthru
        _
      %p309 = scmp.le.s32.totalorder 1, %s20
      %p310 = scmp.lt.s32.totalorder %s20, 3
      %p311 = pnand %p309, %p310
      %p312 = pneg %p311
      // Predicated region
      $region49: #{tpu_custom_call.1} parent=5 // pred_check
        _
      $region50: #{tpu_custom_call.1} parent=5 // pred_check_branch
        %314 = sbr.rel (%p311) target = $region52
      $region51: #{tpu_custom_call.1} parent=5 // pred_region
        %s315 = ssub.s32 %s20, 1
        // Predicated region
        $region53: #{tpu_custom_call.1} parent=51 // pred_check
          %p316 = pneg %p41
        $region54: #{tpu_custom_call.1} parent=51 // pred_check_branch
          %318 = sbr.rel (%p316) target = $region56
        $region55: #{tpu_custom_call.1} parent=51 // pred_region
          %319 = dma.done [#allocation5], 16
        $region56: #{tpu_custom_call.1} parent=51 // pred_fallthru
          _
        // Predicated region
        $region57: #{tpu_custom_call.1} parent=51 // pred_check
          %p320 = pneg %p146
        $region58: #{tpu_custom_call.1} parent=51 // pred_check_branch
          %322 = sbr.rel (%p320) target = $region60
        $region59: #{tpu_custom_call.1} parent=51 // pred_region
          %323 = dma.done [#allocation3], 8192
        $region60: #{tpu_custom_call.1} parent=51 // pred_fallthru
          _
        // Predicated region
        $region61: #{tpu_custom_call.1} parent=51 // pred_check
          %p324 = pneg %p167
        $region62: #{tpu_custom_call.1} parent=51 // pred_check_branch
          %326 = sbr.rel (%p324) target = $region64
        $region63: #{tpu_custom_call.1} parent=51 // pred_region
          %327 = dma.done [#allocation8], 8192
        $region64: #{tpu_custom_call.1} parent=51 // pred_fallthru
          _
        %s328 = sand.u32 %s25, 1
        %s329 = scalar_lea.sflag [#allocation3], %s328
        %s330 = sand.u32 %s180, 1
        %s331 = smul.addr %s330, 32
        %s332 = scalar_lea.vmem [#allocation9], %s331
        // Predicated region
        $region65: #{tpu_custom_call.1} parent=51 // pred_check
          %p333 = pneg %p193
        $region66: #{tpu_custom_call.1} parent=51 // pred_check_branch
          %335 = sbr.rel (%p333) target = $region68
        $region67: #{tpu_custom_call.1} parent=51 // pred_region
          %336 = dma.done %s329, 512
        $region68: #{tpu_custom_call.1} parent=51 // pred_fallthru
          _
        %337 = sfence
        %p338 = pneg %p41
        %p339 = pneg %p38
        %p340 = pneg %p62
        %p341 = pneg %p59
        %p342 = pneg %p83
        %p343 = pneg %p80
        %p344 = pneg %p104
        %p345 = pneg %p101
        %p346 = pneg %p125
        %p347 = pneg %p122
        %p348 = pneg %p146
        %p349 = pneg %p143
        %p350 = pneg %p167
        %p351 = pneg %p164
        %s352 = sand.u32 %s25, 1
        %s353 = scalar_lea.sflag [#allocation3], %s352
        %s354 = sand.u32 %s180, 1
        %s355 = smul.addr %s354, 32
        %s356 = scalar_lea.vmem [#allocation9], %s355
        %p357 = pneg %p193
        %p358 = pneg %p190
        %p359 = pneg %p219
        %p360 = pneg %p216
        %s361 = sand.u32 %s206, 1
        %s362 = scalar_lea.sflag [#allocation4], %s361
        %s363 = sand.u32 %s206, 1
        %s364 = smul.addr %s363, 32
        %s365 = scalar_lea.vmem [#allocation10], %s364
        %s366 = smul.u32 2, %s25
        %s367 = smul.u32 2, %s25
        %s368 = sld [smem:[#allocation2]]
        %s369 = sld [smem:[#allocation2 + $0x1]]
        %v370 = vld [vmem:[%s332] sm:$0xff]
        %v371 = vld [vmem:[%s332 + $0x8] sm:$0xff]
        %v372 = vld [vmem:[%s332 + $0x10] sm:$0xff]
        %v373 = vld [vmem:[%s332 + $0x18] sm:$0xff]
        %v374 = vld [vmem:[#allocation6] sm:$0xff]
        %v375 = vld [vmem:[#allocation6 + $0x8] sm:$0xff]
        %v376 = vld [vmem:[#allocation6 + $0x10] sm:$0xff]
        %v377 = vld [vmem:[#allocation6 + $0x18] sm:$0xff]
        %v378 = vld [vmem:[#allocation6 + $0x20] sm:$0xff]
        %v379 = vld [vmem:[#allocation6 + $0x28] sm:$0xff]
        %v380 = vld [vmem:[#allocation6 + $0x30] sm:$0xff]
        %v381 = vld [vmem:[#allocation6 + $0x38] sm:$0xff]
        %v382 = vld [vmem:[#allocation6 + $0x40] sm:$0xff]
        %v383 = vld [vmem:[#allocation6 + $0x48] sm:$0xff]
        %v384 = vld [vmem:[#allocation6 + $0x50] sm:$0xff]
        %v385 = vld [vmem:[#allocation6 + $0x58] sm:$0xff]
        %v386 = vld [vmem:[#allocation6 + $0x60] sm:$0xff]
        %v387 = vld [vmem:[#allocation6 + $0x68] sm:$0xff]
        %v388 = vld [vmem:[#allocation6 + $0x70] sm:$0xff]
        %v389 = vld [vmem:[#allocation6 + $0x78] sm:$0xff]
        %v390 = vld [vmem:[#allocation6 + $0x80] sm:$0xff]
        %v391 = vld [vmem:[#allocation6 + $0x88] sm:$0xff]
        %v392 = vld [vmem:[#allocation6 + $0x90] sm:$0xff]
        %v393 = vld [vmem:[#allocation6 + $0x98] sm:$0xff]
        %v394 = vld [vmem:[#allocation6 + $0xa0] sm:$0xff]
        %v395 = vld [vmem:[#allocation6 + $0xa8] sm:$0xff]
        %v396 = vld [vmem:[#allocation6 + $0xb0] sm:$0xff]
        %v397 = vld [vmem:[#allocation6 + $0xb8] sm:$0xff]
        %v398 = vld [vmem:[#allocation6 + $0xc0] sm:$0xff]
        %v399 = vld [vmem:[#allocation6 + $0xc8] sm:$0xff]
        %v400 = vld [vmem:[#allocation6 + $0xd0] sm:$0xff]
        %v401 = vld [vmem:[#allocation6 + $0xd8] sm:$0xff]
        %v402 = vld [vmem:[#allocation6 + $0xe0] sm:$0xff]
        %v403 = vld [vmem:[#allocation6 + $0xe8] sm:$0xff]
        %v404 = vld [vmem:[#allocation6 + $0xf0] sm:$0xff]
        %v405 = vld [vmem:[#allocation6 + $0xf8] sm:$0xff]
        %v406 = vld [vmem:[#allocation6 + $0x100] sm:$0xff]
        %v407 = vld [vmem:[#allocation6 + $0x108] sm:$0xff]
        %v408 = vld [vmem:[#allocation6 + $0x110] sm:$0xff]
        %v409 = vld [vmem:[#allocation6 + $0x118] sm:$0xff]
        %v410 = vld [vmem:[#allocation6 + $0x120] sm:$0xff]
        %v411 = vld [vmem:[#allocation6 + $0x128] sm:$0xff]
        %v412 = vld [vmem:[#allocation6 + $0x130] sm:$0xff]
        %v413 = vld [vmem:[#allocation6 + $0x138] sm:$0xff]
        %v414 = vld [vmem:[#allocation6 + $0x140] sm:$0xff]
        %v415 = vld [vmem:[#allocation6 + $0x148] sm:$0xff]
        %v416 = vld [vmem:[#allocation6 + $0x150] sm:$0xff]
        %v417 = vld [vmem:[#allocation6 + $0x158] sm:$0xff]
        %v418 = vld [vmem:[#allocation6 + $0x160] sm:$0xff]
        %v419 = vld [vmem:[#allocation6 + $0x168] sm:$0xff]
        %v420 = vld [vmem:[#allocation6 + $0x170] sm:$0xff]
        %v421 = vld [vmem:[#allocation6 + $0x178] sm:$0xff]
        %v422 = vld [vmem:[#allocation6 + $0x180] sm:$0xff]
        %v423 = vld [vmem:[#allocation6 + $0x188] sm:$0xff]
        %v424 = vld [vmem:[#allocation6 + $0x190] sm:$0xff]
        %v425 = vld [vmem:[#allocation6 + $0x198] sm:$0xff]
        %v426 = vld [vmem:[#allocation6 + $0x1a0] sm:$0xff]
        %v427 = vld [vmem:[#allocation6 + $0x1a8] sm:$0xff]
        %v428 = vld [vmem:[#allocation6 + $0x1b0] sm:$0xff]
        %v429 = vld [vmem:[#allocation6 + $0x1b8] sm:$0xff]
        %v430 = vld [vmem:[#allocation6 + $0x1c0] sm:$0xff]
        %v431 = vld [vmem:[#allocation6 + $0x1c8] sm:$0xff]
        %v432 = vld [vmem:[#allocation6 + $0x1d0] sm:$0xff]
        %v433 = vld [vmem:[#allocation6 + $0x1d8] sm:$0xff]
        %v434 = vld [vmem:[#allocation6 + $0x1e0] sm:$0xff]
        %v435 = vld [vmem:[#allocation6 + $0x1e8] sm:$0xff]
        %v436 = vld [vmem:[#allocation6 + $0x1f0] sm:$0xff]
        %v437 = vld [vmem:[#allocation6 + $0x1f8] sm:$0xff]
        %v438 = vand.u32 %v375, 4294901760
        %439 = vmatprep.subr.mxu0 %v438
        %v440 = vand.u32 %v374, 4294901760
        %441 = vmatpush1.msra.mxu0 %v440
        %v442 = vand.u32 %v377, 4294901760
        %443 = vmatprep.subr.mxu0 %v442
        %v444 = vand.u32 %v376, 4294901760
        %445 = vmatpush1.msra.mxu0 %v444
        %v446 = vand.u32 %v379, 4294901760
        %447 = vmatprep.subr.mxu0 %v446
        %v448 = vand.u32 %v378, 4294901760
        %449 = vmatpush1.msra.mxu0 %v448
        %v450 = vand.u32 %v381, 4294901760
        %451 = vmatprep.subr.mxu0 %v450
        %v452 = vand.u32 %v380, 4294901760
        %453 = vmatpush1.msra.mxu0 %v452
        %v454 = vand.u32 %v383, 4294901760
        %455 = vmatprep.subr.mxu0 %v454
        %v456 = vand.u32 %v382, 4294901760
        %457 = vmatpush1.msra.mxu0 %v456
        %v458 = vand.u32 %v385, 4294901760
        %459 = vmatprep.subr.mxu0 %v458
        %v460 = vand.u32 %v384, 4294901760
        %461 = vmatpush1.msra.mxu0 %v460
        %v462 = vand.u32 %v387, 4294901760
        %463 = vmatprep.subr.mxu0 %v462
        %v464 = vand.u32 %v386, 4294901760
        %465 = vmatpush1.msra.mxu0 %v464
        %v466 = vand.u32 %v389, 4294901760
        %467 = vmatprep.subr.mxu0 %v466
        %v468 = vand.u32 %v388, 4294901760
        %469 = vmatpush1.msra.mxu0 %v468
        %v470 = vand.u32 %v391, 4294901760
        %471 = vmatprep.subr.mxu0 %v470
        %v472 = vand.u32 %v390, 4294901760
        %473 = vmatpush1.msra.mxu0 %v472
        %v474 = vand.u32 %v393, 4294901760
        %475 = vmatprep.subr.mxu0 %v474
        %v476 = vand.u32 %v392, 4294901760
        %477 = vmatpush1.msra.mxu0 %v476
        %v478 = vand.u32 %v395, 4294901760
        %479 = vmatprep.subr.mxu0 %v478
        %v480 = vand.u32 %v394, 4294901760
        %481 = vmatpush1.msra.mxu0 %v480
        %v482 = vand.u32 %v397, 4294901760
        %483 = vmatprep.subr.mxu0 %v482
        %v484 = vand.u32 %v396, 4294901760
        %485 = vmatpush1.msra.mxu0 %v484
        %v486 = vand.u32 %v399, 4294901760
        %487 = vmatprep.subr.mxu0 %v486
        %v488 = vand.u32 %v398, 4294901760
        %489 = vmatpush1.msra.mxu0 %v488
        %v490 = vand.u32 %v401, 4294901760
        %491 = vmatprep.subr.mxu0 %v490
        %v492 = vand.u32 %v400, 4294901760
        %493 = vmatpush1.msra.mxu0 %v492
        %v494 = vand.u32 %v403, 4294901760
        %495 = vmatprep.subr.mxu0 %v494
        %v496 = vand.u32 %v402, 4294901760
        %497 = vmatpush1.msra.mxu0 %v496
        %v498 = vand.u32 %v405, 4294901760
        %499 = vmatprep.subr.mxu0 %v498
        %v500 = vand.u32 %v404, 4294901760
        %501 = vmatpush1.msra.mxu0 %v500
        %v502 = vand.u32 %v407, 4294901760
        %503 = vmatprep.subr.mxu0 %v502
        %v504 = vand.u32 %v406, 4294901760
        %505 = vmatpush1.msra.mxu0 %v504
        %v506 = vand.u32 %v409, 4294901760
        %507 = vmatprep.subr.mxu0 %v506
        %v508 = vand.u32 %v408, 4294901760
        %509 = vmatpush1.msra.mxu0 %v508
        %v510 = vand.u32 %v411, 4294901760
        %511 = vmatprep.subr.mxu0 %v510
        %v512 = vand.u32 %v410, 4294901760
        %513 = vmatpush1.msra.mxu0 %v512
        %v514 = vand.u32 %v413, 4294901760
        %515 = vmatprep.subr.mxu0 %v514
        %v516 = vand.u32 %v412, 4294901760
        %517 = vmatpush1.msra.mxu0 %v516
        %v518 = vand.u32 %v415, 4294901760
        %519 = vmatprep.subr.mxu0 %v518
        %v520 = vand.u32 %v414, 4294901760
        %521 = vmatpush1.msra.mxu0 %v520
        %v522 = vand.u32 %v417, 4294901760
        %523 = vmatprep.subr.mxu0 %v522
        %v524 = vand.u32 %v416, 4294901760
        %525 = vmatpush1.msra.mxu0 %v524
        %v526 = vand.u32 %v419, 4294901760
        %527 = vmatprep.subr.mxu0 %v526
        %v528 = vand.u32 %v418, 4294901760
        %529 = vmatpush1.msra.mxu0 %v528
        %v530 = vand.u32 %v421, 4294901760
        %531 = vmatprep.subr.mxu0 %v530
        %v532 = vand.u32 %v420, 4294901760
        %533 = vmatpush1.msra.mxu0 %v532
        %v534 = vand.u32 %v423, 4294901760
        %535 = vmatprep.subr.mxu0 %v534
        %v536 = vand.u32 %v422, 4294901760
        %537 = vmatpush1.msra.mxu0 %v536
        %v538 = vand.u32 %v425, 4294901760
        %539 = vmatprep.subr.mxu0 %v538
        %v540 = vand.u32 %v424, 4294901760
        %541 = vmatpush1.msra.mxu0 %v540
        %v542 = vand.u32 %v427, 4294901760
        %543 = vmatprep.subr.mxu0 %v542
        %v544 = vand.u32 %v426, 4294901760
        %545 = vmatpush1.msra.mxu0 %v544
        %v546 = vand.u32 %v429, 4294901760
        %547 = vmatprep.subr.mxu0 %v546
        %v548 = vand.u32 %v428, 4294901760
        %549 = vmatpush1.msra.mxu0 %v548
        %v550 = vand.u32 %v431, 4294901760
        %551 = vmatprep.subr.mxu0 %v550
        %v552 = vand.u32 %v430, 4294901760
        %553 = vmatpush1.msra.mxu0 %v552
        %v554 = vand.u32 %v433, 4294901760
        %555 = vmatprep.subr.mxu0 %v554
        %v556 = vand.u32 %v432, 4294901760
        %557 = vmatpush1.msra.mxu0 %v556
        %v558 = vand.u32 %v435, 4294901760
        %559 = vmatprep.subr.mxu0 %v558
        %v560 = vand.u32 %v434, 4294901760
        %561 = vmatpush1.msra.mxu0 %v560
        %v562 = vand.u32 %v437, 4294901760
        %563 = vmatprep.subr.mxu0 %v562
        %v564 = vand.u32 %v436, 4294901760
        %565 = vmatpush1.msra.mxu0 %v564
        %v566 = vand.u32 %v371, 4294901760
        %v567 = vsub.f32 %v371, %v566
        %v568 = vand.u32 %v567, 4294901760
        %v569 = vsub.f32 %v567, %v568
        %v570 = vand.u32 %v569, 4294901760
        %571 = vmatprep.mubr.f32.mxu0 %v570
        %v572 = vand.u32 %v370, 4294901760
        %v573 = vsub.f32 %v370, %v572
        %v574 = vand.u32 %v573, 4294901760
        %v575 = vsub.f32 %v573, %v574
        %v576 = vand.u32 %v575, 4294901760
        %577 = vmatmul.mubr.f32.gmra.mrb[0].mxu0 %v576
        %v578 = vpop.f32.mrb[0].mxu0
        %v579 = vadd.f32 0.0, %v578
        %v580 = vpop.f32.mrb[0].mxu0
        %v581 = vadd.f32 0.0, %v580
        %v582 = vand.u32 %v373, 4294901760
        %v583 = vsub.f32 %v373, %v582
        %v584 = vand.u32 %v583, 4294901760
        %v585 = vsub.f32 %v583, %v584
        %v586 = vand.u32 %v585, 4294901760
        %587 = vmatprep.mubr.f32.mxu0 %v586
        %v588 = vand.u32 %v372, 4294901760
        %v589 = vsub.f32 %v372, %v588
        %v590 = vand.u32 %v589, 4294901760
        %v591 = vsub.f32 %v589, %v590
        %v592 = vand.u32 %v591, 4294901760
        %593 = vmatmul.mubr.f32.gmra.mrb[0].mxu0 %v592
        %v594 = vpop.f32.mrb[0].mxu0
        %v595 = vadd.f32 0.0, %v594
        %v596 = vpop.f32.mrb[0].mxu0
        %v597 = vadd.f32 0.0, %v596
        %598 = vdwg.mxu0
        %v599 = vand.u32 %v375, 4294901760
        %v600 = vsub.f32 %v375, %v599
        %v601 = vand.u32 %v600, 4294901760
        %v602 = vsub.f32 %v600, %v601
        %v603 = vand.u32 %v602, 4294901760
        %604 = vmatprep.subr.mxu0 %v603
        %v605 = vand.u32 %v374, 4294901760
        %v606 = vsub.f32 %v374, %v605
        %v607 = vand.u32 %v606, 4294901760
        %v608 = vsub.f32 %v606, %v607
        %v609 = vand.u32 %v608, 4294901760
        %610 = vmatpush1.msra.mxu0 %v609
        %v611 = vand.u32 %v377, 4294901760
        %v612 = vsub.f32 %v377, %v611
        %v613 = vand.u32 %v612, 4294901760
        %v614 = vsub.f32 %v612, %v613
        %v615 = vand.u32 %v614, 4294901760
        %616 = vmatprep.subr.mxu0 %v615
        %v617 = vand.u32 %v376, 4294901760
        %v618 = vsub.f32 %v376, %v617
        %v619 = vand.u32 %v618, 4294901760
        %v620 = vsub.f32 %v618, %v619
        %v621 = vand.u32 %v620, 4294901760
        %622 = vmatpush1.msra.mxu0 %v621
        %v623 = vand.u32 %v379, 4294901760
        %v624 = vsub.f32 %v379, %v623
        %v625 = vand.u32 %v624, 4294901760
        %v626 = vsub.f32 %v624, %v625
        %v627 = vand.u32 %v626, 4294901760
        %628 = vmatprep.subr.mxu0 %v627
        %v629 = vand.u32 %v378, 4294901760
        %v630 = vsub.f32 %v378, %v629
        %v631 = vand.u32 %v630, 4294901760
        %v632 = vsub.f32 %v630, %v631
        %v633 = vand.u32 %v632, 4294901760
        %634 = vmatpush1.msra.mxu0 %v633
        %v635 = vand.u32 %v381, 4294901760
        %v636 = vsub.f32 %v381, %v635
        %v637 = vand.u32 %v636, 4294901760
        %v638 = vsub.f32 %v636, %v637
        %v639 = vand.u32 %v638, 4294901760
        %640 = vmatprep.subr.mxu0 %v639
        %v641 = vand.u32 %v380, 4294901760
        %v642 = vsub.f32 %v380, %v641
        %v643 = vand.u32 %v642, 4294901760
        %v644 = vsub.f32 %v642, %v643
        %v645 = vand.u32 %v644, 4294901760
        %646 = vmatpush1.msra.mxu0 %v645
        %v647 = vand.u32 %v383, 4294901760
        %v648 = vsub.f32 %v383, %v647
        %v649 = vand.u32 %v648, 4294901760
        %v650 = vsub.f32 %v648, %v649
        %v651 = vand.u32 %v650, 4294901760
        %652 = vmatprep.subr.mxu0 %v651
        %v653 = vand.u32 %v382, 4294901760
        %v654 = vsub.f32 %v382, %v653
        %v655 = vand.u32 %v654, 4294901760
        %v656 = vsub.f32 %v654, %v655
        %v657 = vand.u32 %v656, 4294901760
        %658 = vmatpush1.msra.mxu0 %v657
        %v659 = vand.u32 %v385, 4294901760
        %v660 = vsub.f32 %v385, %v659
        %v661 = vand.u32 %v660, 4294901760
        %v662 = vsub.f32 %v660, %v661
        %v663 = vand.u32 %v662, 4294901760
        %664 = vmatprep.subr.mxu0 %v663
        %v665 = vand.u32 %v384, 4294901760
        %v666 = vsub.f32 %v384, %v665
        %v667 = vand.u32 %v666, 4294901760
        %v668 = vsub.f32 %v666, %v667
        %v669 = vand.u32 %v668, 4294901760
        %670 = vmatpush1.msra.mxu0 %v669
        %v671 = vand.u32 %v387, 4294901760
        %v672 = vsub.f32 %v387, %v671
        %v673 = vand.u32 %v672, 4294901760
        %v674 = vsub.f32 %v672, %v673
        %v675 = vand.u32 %v674, 4294901760
        %676 = vmatprep.subr.mxu0 %v675
        %v677 = vand.u32 %v386, 4294901760
        %v678 = vsub.f32 %v386, %v677
        %v679 = vand.u32 %v678, 4294901760
        %v680 = vsub.f32 %v678, %v679
        %v681 = vand.u32 %v680, 4294901760
        %682 = vmatpush1.msra.mxu0 %v681
        %v683 = vand.u32 %v389, 4294901760
        %v684 = vsub.f32 %v389, %v683
        %v685 = vand.u32 %v684, 4294901760
        %v686 = vsub.f32 %v684, %v685
        %v687 = vand.u32 %v686, 4294901760
        %688 = vmatprep.subr.mxu0 %v687
        %v689 = vand.u32 %v388, 4294901760
        %v690 = vsub.f32 %v388, %v689
        %v691 = vand.u32 %v690, 4294901760
        %v692 = vsub.f32 %v690, %v691
        %v693 = vand.u32 %v692, 4294901760
        %694 = vmatpush1.msra.mxu0 %v693
        %v695 = vand.u32 %v391, 4294901760
        %v696 = vsub.f32 %v391, %v695
        %v697 = vand.u32 %v696, 4294901760
        %v698 = vsub.f32 %v696, %v697
        %v699 = vand.u32 %v698, 4294901760
        %700 = vmatprep.subr.mxu0 %v699
        %v701 = vand.u32 %v390, 4294901760
        %v702 = vsub.f32 %v390, %v701
        %v703 = vand.u32 %v702, 4294901760
        %v704 = vsub.f32 %v702, %v703
        %v705 = vand.u32 %v704, 4294901760
        %706 = vmatpush1.msra.mxu0 %v705
        %v707 = vand.u32 %v393, 4294901760
        %v708 = vsub.f32 %v393, %v707
        %v709 = vand.u32 %v708, 4294901760
        %v710 = vsub.f32 %v708, %v709
        %v711 = vand.u32 %v710, 4294901760
        %712 = vmatprep.subr.mxu0 %v711
        %v713 = vand.u32 %v392, 4294901760
        %v714 = vsub.f32 %v392, %v713
        %v715 = vand.u32 %v714, 4294901760
        %v716 = vsub.f32 %v714, %v715
        %v717 = vand.u32 %v716, 4294901760
        %718 = vmatpush1.msra.mxu0 %v717
        %v719 = vand.u32 %v395, 4294901760
        %v720 = vsub.f32 %v395, %v719
        %v721 = vand.u32 %v720, 4294901760
        %v722 = vsub.f32 %v720, %v721
        %v723 = vand.u32 %v722, 4294901760
        %724 = vmatprep.subr.mxu0 %v723
        %v725 = vand.u32 %v394, 4294901760
        %v726 = vsub.f32 %v394, %v725
        %v727 = vand.u32 %v726, 4294901760
        %v728 = vsub.f32 %v726, %v727
        %v729 = vand.u32 %v728, 4294901760
        %730 = vmatpush1.msra.mxu0 %v729
        %v731 = vand.u32 %v397, 4294901760
        %v732 = vsub.f32 %v397, %v731
        %v733 = vand.u32 %v732, 4294901760
        %v734 = vsub.f32 %v732, %v733
        %v735 = vand.u32 %v734, 4294901760
        %736 = vmatprep.subr.mxu0 %v735
        %v737 = vand.u32 %v396, 4294901760
        %v738 = vsub.f32 %v396, %v737
        %v739 = vand.u32 %v738, 4294901760
        %v740 = vsub.f32 %v738, %v739
        %v741 = vand.u32 %v740, 4294901760
        %742 = vmatpush1.msra.mxu0 %v741
        %v743 = vand.u32 %v399, 4294901760
        %v744 = vsub.f32 %v399, %v743
        %v745 = vand.u32 %v744, 4294901760
        %v746 = vsub.f32 %v744, %v745
        %v747 = vand.u32 %v746, 4294901760
        %748 = vmatprep.subr.mxu0 %v747
        %v749 = vand.u32 %v398, 4294901760
        %v750 = vsub.f32 %v398, %v749
        %v751 = vand.u32 %v750, 4294901760
        %v752 = vsub.f32 %v750, %v751
        %v753 = vand.u32 %v752, 4294901760
        %754 = vmatpush1.msra.mxu0 %v753
        %v755 = vand.u32 %v401, 4294901760
        %v756 = vsub.f32 %v401, %v755
        %v757 = vand.u32 %v756, 4294901760
        %v758 = vsub.f32 %v756, %v757
        %v759 = vand.u32 %v758, 4294901760
        %760 = vmatprep.subr.mxu0 %v759
        %v761 = vand.u32 %v400, 4294901760
        %v762 = vsub.f32 %v400, %v761
        %v763 = vand.u32 %v762, 4294901760
        %v764 = vsub.f32 %v762, %v763
        %v765 = vand.u32 %v764, 4294901760
        %766 = vmatpush1.msra.mxu0 %v765
        %v767 = vand.u32 %v403, 4294901760
        %v768 = vsub.f32 %v403, %v767
        %v769 = vand.u32 %v768, 4294901760
        %v770 = vsub.f32 %v768, %v769
        %v771 = vand.u32 %v770, 4294901760
        %772 = vmatprep.subr.mxu0 %v771
        %v773 = vand.u32 %v402, 4294901760
        %v774 = vsub.f32 %v402, %v773
        %v775 = vand.u32 %v774, 4294901760
        %v776 = vsub.f32 %v774, %v775
        %v777 = vand.u32 %v776, 4294901760
        %778 = vmatpush1.msra.mxu0 %v777
        %v779 = vand.u32 %v405, 4294901760
        %v780 = vsub.f32 %v405, %v779
        %v781 = vand.u32 %v780, 4294901760
        %v782 = vsub.f32 %v780, %v781
        %v783 = vand.u32 %v782, 4294901760
        %784 = vmatprep.subr.mxu0 %v783
        %v785 = vand.u32 %v404, 4294901760
        %v786 = vsub.f32 %v404, %v785
        %v787 = vand.u32 %v786, 4294901760
        %v788 = vsub.f32 %v786, %v787
        %v789 = vand.u32 %v788, 4294901760
        %790 = vmatpush1.msra.mxu0 %v789
        %v791 = vand.u32 %v407, 4294901760
        %v792 = vsub.f32 %v407, %v791
        %v793 = vand.u32 %v792, 4294901760
        %v794 = vsub.f32 %v792, %v793
        %v795 = vand.u32 %v794, 4294901760
        %796 = vmatprep.subr.mxu0 %v795
        %v797 = vand.u32 %v406, 4294901760
        %v798 = vsub.f32 %v406, %v797
        %v799 = vand.u32 %v798, 4294901760
        %v800 = vsub.f32 %v798, %v799
        %v801 = vand.u32 %v800, 4294901760
        %802 = vmatpush1.msra.mxu0 %v801
        %v803 = vand.u32 %v409, 4294901760
        %v804 = vsub.f32 %v409, %v803
        %v805 = vand.u32 %v804, 4294901760
        %v806 = vsub.f32 %v804, %v805
        %v807 = vand.u32 %v806, 4294901760
        %808 = vmatprep.subr.mxu0 %v807
        %v809 = vand.u32 %v408, 4294901760
        %v810 = vsub.f32 %v408, %v809
        %v811 = vand.u32 %v810, 4294901760
        %v812 = vsub.f32 %v810, %v811
        %v813 = vand.u32 %v812, 4294901760
        %814 = vmatpush1.msra.mxu0 %v813
        %v815 = vand.u32 %v411, 4294901760
        %v816 = vsub.f32 %v411, %v815
        %v817 = vand.u32 %v816, 4294901760
        %v818 = vsub.f32 %v816, %v817
        %v819 = vand.u32 %v818, 4294901760
        %820 = vmatprep.subr.mxu0 %v819
        %v821 = vand.u32 %v410, 4294901760
        %v822 = vsub.f32 %v410, %v821
        %v823 = vand.u32 %v822, 4294901760
        %v824 = vsub.f32 %v822, %v823
        %v825 = vand.u32 %v824, 4294901760
        %826 = vmatpush1.msra.mxu0 %v825
        %v827 = vand.u32 %v413, 4294901760
        %v828 = vsub.f32 %v413, %v827
        %v829 = vand.u32 %v828, 4294901760
        %v830 = vsub.f32 %v828, %v829
        %v831 = vand.u32 %v830, 4294901760
        %832 = vmatprep.subr.mxu0 %v831
        %v833 = vand.u32 %v412, 4294901760
        %v834 = vsub.f32 %v412, %v833
        %v835 = vand.u32 %v834, 4294901760
        %v836 = vsub.f32 %v834, %v835
        %v837 = vand.u32 %v836, 4294901760
        %838 = vmatpush1.msra.mxu0 %v837
        %v839 = vand.u32 %v415, 4294901760
        %v840 = vsub.f32 %v415, %v839
        %v841 = vand.u32 %v840, 4294901760
        %v842 = vsub.f32 %v840, %v841
        %v843 = vand.u32 %v842, 4294901760
        %844 = vmatprep.subr.mxu0 %v843
        %v845 = vand.u32 %v414, 4294901760
        %v846 = vsub.f32 %v414, %v845
        %v847 = vand.u32 %v846, 4294901760
        %v848 = vsub.f32 %v846, %v847
        %v849 = vand.u32 %v848, 4294901760
        %850 = vmatpush1.msra.mxu0 %v849
        %v851 = vand.u32 %v417, 4294901760
        %v852 = vsub.f32 %v417, %v851
        %v853 = vand.u32 %v852, 4294901760
        %v854 = vsub.f32 %v852, %v853
        %v855 = vand.u32 %v854, 4294901760
        %856 = vmatprep.subr.mxu0 %v855
        %v857 = vand.u32 %v416, 4294901760
        %v858 = vsub.f32 %v416, %v857
        %v859 = vand.u32 %v858, 4294901760
        %v860 = vsub.f32 %v858, %v859
        %v861 = vand.u32 %v860, 4294901760
        %862 = vmatpush1.msra.mxu0 %v861
        %v863 = vand.u32 %v419, 4294901760
        %v864 = vsub.f32 %v419, %v863
        %v865 = vand.u32 %v864, 4294901760
        %v866 = vsub.f32 %v864, %v865
        %v867 = vand.u32 %v866, 4294901760
        %868 = vmatprep.subr.mxu0 %v867
        %v869 = vand.u32 %v418, 4294901760
        %v870 = vsub.f32 %v418, %v869
        %v871 = vand.u32 %v870, 4294901760
        %v872 = vsub.f32 %v870, %v871
        %v873 = vand.u32 %v872, 4294901760
        %874 = vmatpush1.msra.mxu0 %v873
        %v875 = vand.u32 %v421, 4294901760
        %v876 = vsub.f32 %v421, %v875
        %v877 = vand.u32 %v876, 4294901760
        %v878 = vsub.f32 %v876, %v877
        %v879 = vand.u32 %v878, 4294901760
        %880 = vmatprep.subr.mxu0 %v879
        %v881 = vand.u32 %v420, 4294901760
        %v882 = vsub.f32 %v420, %v881
        %v883 = vand.u32 %v882, 4294901760
        %v884 = vsub.f32 %v882, %v883
        %v885 = vand.u32 %v884, 4294901760
        %886 = vmatpush1.msra.mxu0 %v885
        %v887 = vand.u32 %v423, 4294901760
        %v888 = vsub.f32 %v423, %v887
        %v889 = vand.u32 %v888, 4294901760
        %v890 = vsub.f32 %v888, %v889
        %v891 = vand.u32 %v890, 4294901760
        %892 = vmatprep.subr.mxu0 %v891
        %v893 = vand.u32 %v422, 4294901760
        %v894 = vsub.f32 %v422, %v893
        %v895 = vand.u32 %v894, 4294901760
        %v896 = vsub.f32 %v894, %v895
        %v897 = vand.u32 %v896, 4294901760
        %898 = vmatpush1.msra.mxu0 %v897
        %v899 = vand.u32 %v425, 4294901760
        %v900 = vsub.f32 %v425, %v899
        %v901 = vand.u32 %v900, 4294901760
        %v902 = vsub.f32 %v900, %v901
        %v903 = vand.u32 %v902, 4294901760
        %904 = vmatprep.subr.mxu0 %v903
        %v905 = vand.u32 %v424, 4294901760
        %v906 = vsub.f32 %v424, %v905
        %v907 = vand.u32 %v906, 4294901760
        %v908 = vsub.f32 %v906, %v907
        %v909 = vand.u32 %v908, 4294901760
        %910 = vmatpush1.msra.mxu0 %v909
        %v911 = vand.u32 %v427, 4294901760
        %v912 = vsub.f32 %v427, %v911
        %v913 = vand.u32 %v912, 4294901760
        %v914 = vsub.f32 %v912, %v913
        %v915 = vand.u32 %v914, 4294901760
        %916 = vmatprep.subr.mxu0 %v915
        %v917 = vand.u32 %v426, 4294901760
        %v918 = vsub.f32 %v426, %v917
        %v919 = vand.u32 %v918, 4294901760
        %v920 = vsub.f32 %v918, %v919
        %v921 = vand.u32 %v920, 4294901760
        %922 = vmatpush1.msra.mxu0 %v921
        %v923 = vand.u32 %v429, 4294901760
        %v924 = vsub.f32 %v429, %v923
        %v925 = vand.u32 %v924, 4294901760
        %v926 = vsub.f32 %v924, %v925
        %v927 = vand.u32 %v926, 4294901760
        %928 = vmatprep.subr.mxu0 %v927
        %v929 = vand.u32 %v428, 4294901760
        %v930 = vsub.f32 %v428, %v929
        %v931 = vand.u32 %v930, 4294901760
        %v932 = vsub.f32 %v930, %v931
        %v933 = vand.u32 %v932, 4294901760
        %934 = vmatpush1.msra.mxu0 %v933
        %v935 = vand.u32 %v431, 4294901760
        %v936 = vsub.f32 %v431, %v935
        %v937 = vand.u32 %v936, 4294901760
        %v938 = vsub.f32 %v936, %v937
        %v939 = vand.u32 %v938, 4294901760
        %940 = vmatprep.subr.mxu0 %v939
        %v941 = vand.u32 %v430, 4294901760
        %v942 = vsub.f32 %v430, %v941
        %v943 = vand.u32 %v942, 4294901760
        %v944 = vsub.f32 %v942, %v943
        %v945 = vand.u32 %v944, 4294901760
        %946 = vmatpush1.msra.mxu0 %v945
        %v947 = vand.u32 %v433, 4294901760
        %v948 = vsub.f32 %v433, %v947
        %v949 = vand.u32 %v948, 4294901760
        %v950 = vsub.f32 %v948, %v949
        %v951 = vand.u32 %v950, 4294901760
        %952 = vmatprep.subr.mxu0 %v951
        %v953 = vand.u32 %v432, 4294901760
        %v954 = vsub.f32 %v432, %v953
        %v955 = vand.u32 %v954, 4294901760
        %v956 = vsub.f32 %v954, %v955
        %v957 = vand.u32 %v956, 4294901760
        %958 = vmatpush1.msra.mxu0 %v957
        %v959 = vand.u32 %v435, 4294901760
        %v960 = vsub.f32 %v435, %v959
        %v961 = vand.u32 %v960, 4294901760
        %v962 = vsub.f32 %v960, %v961
        %v963 = vand.u32 %v962, 4294901760
        %964 = vmatprep.subr.mxu0 %v963
        %v965 = vand.u32 %v434, 4294901760
        %v966 = vsub.f32 %v434, %v965
        %v967 = vand.u32 %v966, 4294901760
        %v968 = vsub.f32 %v966, %v967
        %v969 = vand.u32 %v968, 4294901760
        %970 = vmatpush1.msra.mxu0 %v969
        %v971 = vand.u32 %v437, 4294901760
        %v972 = vsub.f32 %v437, %v971
        %v973 = vand.u32 %v972, 4294901760
        %v974 = vsub.f32 %v972, %v973
        %v975 = vand.u32 %v974, 4294901760
        %976 = vmatprep.subr.mxu0 %v975
        %v977 = vand.u32 %v436, 4294901760
        %v978 = vsub.f32 %v436, %v977
        %v979 = vand.u32 %v978, 4294901760
        %v980 = vsub.f32 %v978, %v979
        %v981 = vand.u32 %v980, 4294901760
        %982 = vmatpush1.msra.mxu0 %v981
        %v983 = vand.u32 %v371, 4294901760
        %984 = vmatprep.mubr.f32.mxu0 %v983
        %v985 = vand.u32 %v370, 4294901760
        %986 = vmatmul.mubr.f32.gmra.mrb[0].mxu0 %v985
        %v987 = vpop.f32.mrb[0].mxu0
        %v988 = vadd.f32 %v579, %v987
        %v989 = vpop.f32.mrb[0].mxu0
        %v990 = vadd.f32 %v581, %v989
        %v991 = vand.u32 %v373, 4294901760
        %992 = vmatprep.mubr.f32.mxu0 %v991
        %v993 = vand.u32 %v372, 4294901760
        %994 = vmatmul.mubr.f32.gmra.mrb[0].mxu0 %v993
        %v995 = vpop.f32.mrb[0].mxu0
        %v996 = vadd.f32 %v595, %v995
        %v997 = vpop.f32.mrb[0].mxu0
        %v998 = vadd.f32 %v597, %v997
        %999 = vdwg.mxu0
        %v1000 = vand.u32 %v375, 4294901760
        %v1001 = vsub.f32 %v375, %v1000
        %1002 = vmatprep.subr.mxu0 %v1001
        %v1003 = vand.u32 %v374, 4294901760
        %v1004 = vsub.f32 %v374, %v1003
        %1005 = vmatpush1.msra.mxu0 %v1004
        %v1006 = vand.u32 %v377, 4294901760
        %v1007 = vsub.f32 %v377, %v1006
        %1008 = vmatprep.subr.mxu0 %v1007
        %v1009 = vand.u32 %v376, 4294901760
        %v1010 = vsub.f32 %v376, %v1009
        %1011 = vmatpush1.msra.mxu0 %v1010
        %v1012 = vand.u32 %v379, 4294901760
        %v1013 = vsub.f32 %v379, %v1012
        %1014 = vmatprep.subr.mxu0 %v1013
        %v1015 = vand.u32 %v378, 4294901760
        %v1016 = vsub.f32 %v378, %v1015
        %1017 = vmatpush1.msra.mxu0 %v1016
        %v1018 = vand.u32 %v381, 4294901760
        %v1019 = vsub.f32 %v381, %v1018
        %1020 = vmatprep.subr.mxu0 %v1019
        %v1021 = vand.u32 %v380, 4294901760
        %v1022 = vsub.f32 %v380, %v1021
        %1023 = vmatpush1.msra.mxu0 %v1022
        %v1024 = vand.u32 %v383, 4294901760
        %v1025 = vsub.f32 %v383, %v1024
        %1026 = vmatprep.subr.mxu0 %v1025
        %v1027 = vand.u32 %v382, 4294901760
        %v1028 = vsub.f32 %v382, %v1027
        %1029 = vmatpush1.msra.mxu0 %v1028
        %v1030 = vand.u32 %v385, 4294901760
        %v1031 = vsub.f32 %v385, %v1030
        %1032 = vmatprep.subr.mxu0 %v1031
        %v1033 = vand.u32 %v384, 4294901760
        %v1034 = vsub.f32 %v384, %v1033
        %1035 = vmatpush1.msra.mxu0 %v1034
        %v1036 = vand.u32 %v387, 4294901760
        %v1037 = vsub.f32 %v387, %v1036
        %1038 = vmatprep.subr.mxu0 %v1037
        %v1039 = vand.u32 %v386, 4294901760
        %v1040 = vsub.f32 %v386, %v1039
        %1041 = vmatpush1.msra.mxu0 %v1040
        %v1042 = vand.u32 %v389, 4294901760
        %v1043 = vsub.f32 %v389, %v1042
        %1044 = vmatprep.subr.mxu0 %v1043
        %v1045 = vand.u32 %v388, 4294901760
        %v1046 = vsub.f32 %v388, %v1045
        %1047 = vmatpush1.msra.mxu0 %v1046
        %v1048 = vand.u32 %v391, 4294901760
        %v1049 = vsub.f32 %v391, %v1048
        %1050 = vmatprep.subr.mxu0 %v1049
        %v1051 = vand.u32 %v390, 4294901760
        %v1052 = vsub.f32 %v390, %v1051
        %1053 = vmatpush1.msra.mxu0 %v1052
        %v1054 = vand.u32 %v393, 4294901760
        %v1055 = vsub.f32 %v393, %v1054
        %1056 = vmatprep.subr.mxu0 %v1055
        %v1057 = vand.u32 %v392, 4294901760
        %v1058 = vsub.f32 %v392, %v1057
        %1059 = vmatpush1.msra.mxu0 %v1058
        %v1060 = vand.u32 %v395, 4294901760
        %v1061 = vsub.f32 %v395, %v1060
        %1062 = vmatprep.subr.mxu0 %v1061
        %v1063 = vand.u32 %v394, 4294901760
        %v1064 = vsub.f32 %v394, %v1063
        %1065 = vmatpush1.msra.mxu0 %v1064
        %v1066 = vand.u32 %v397, 4294901760
        %v1067 = vsub.f32 %v397, %v1066
        %1068 = vmatprep.subr.mxu0 %v1067
        %v1069 = vand.u32 %v396, 4294901760
        %v1070 = vsub.f32 %v396, %v1069
        %1071 = vmatpush1.msra.mxu0 %v1070
        %v1072 = vand.u32 %v399, 4294901760
        %v1073 = vsub.f32 %v399, %v1072
        %1074 = vmatprep.subr.mxu0 %v1073
        %v1075 = vand.u32 %v398, 4294901760
        %v1076 = vsub.f32 %v398, %v1075
        %1077 = vmatpush1.msra.mxu0 %v1076
        %v1078 = vand.u32 %v401, 4294901760
        %v1079 = vsub.f32 %v401, %v1078
        %1080 = vmatprep.subr.mxu0 %v1079
        %v1081 = vand.u32 %v400, 4294901760
        %v1082 = vsub.f32 %v400, %v1081
        %1083 = vmatpush1.msra.mxu0 %v1082
        %v1084 = vand.u32 %v403, 4294901760
        %v1085 = vsub.f32 %v403, %v1084
        %1086 = vmatprep.subr.mxu0 %v1085
        %v1087 = vand.u32 %v402, 4294901760
        %v1088 = vsub.f32 %v402, %v1087
        %1089 = vmatpush1.msra.mxu0 %v1088
        %v1090 = vand.u32 %v405, 4294901760
        %v1091 = vsub.f32 %v405, %v1090
        %1092 = vmatprep.subr.mxu0 %v1091
        %v1093 = vand.u32 %v404, 4294901760
        %v1094 = vsub.f32 %v404, %v1093
        %1095 = vmatpush1.msra.mxu0 %v1094
        %v1096 = vand.u32 %v407, 4294901760
        %v1097 = vsub.f32 %v407, %v1096
        %1098 = vmatprep.subr.mxu0 %v1097
        %v1099 = vand.u32 %v406, 4294901760
        %v1100 = vsub.f32 %v406, %v1099
        %1101 = vmatpush1.msra.mxu0 %v1100
        %v1102 = vand.u32 %v409, 4294901760
        %v1103 = vsub.f32 %v409, %v1102
        %1104 = vmatprep.subr.mxu0 %v1103
        %v1105 = vand.u32 %v408, 4294901760
        %v1106 = vsub.f32 %v408, %v1105
        %1107 = vmatpush1.msra.mxu0 %v1106
        %v1108 = vand.u32 %v411, 4294901760
        %v1109 = vsub.f32 %v411, %v1108
        %1110 = vmatprep.subr.mxu0 %v1109
        %v1111 = vand.u32 %v410, 4294901760
        %v1112 = vsub.f32 %v410, %v1111
        %1113 = vmatpush1.msra.mxu0 %v1112
        %v1114 = vand.u32 %v413, 4294901760
        %v1115 = vsub.f32 %v413, %v1114
        %1116 = vmatprep.subr.mxu0 %v1115
        %v1117 = vand.u32 %v412, 4294901760
        %v1118 = vsub.f32 %v412, %v1117
        %1119 = vmatpush1.msra.mxu0 %v1118
        %v1120 = vand.u32 %v415, 4294901760
        %v1121 = vsub.f32 %v415, %v1120
        %1122 = vmatprep.subr.mxu0 %v1121
        %v1123 = vand.u32 %v414, 4294901760
        %v1124 = vsub.f32 %v414, %v1123
        %1125 = vmatpush1.msra.mxu0 %v1124
        %v1126 = vand.u32 %v417, 4294901760
        %v1127 = vsub.f32 %v417, %v1126
        %1128 = vmatprep.subr.mxu0 %v1127
        %v1129 = vand.u32 %v416, 4294901760
        %v1130 = vsub.f32 %v416, %v1129
        %1131 = vmatpush1.msra.mxu0 %v1130
        %v1132 = vand.u32 %v419, 4294901760
        %v1133 = vsub.f32 %v419, %v1132
        %1134 = vmatprep.subr.mxu0 %v1133
        %v1135 = vand.u32 %v418, 4294901760
        %v1136 = vsub.f32 %v418, %v1135
        %1137 = vmatpush1.msra.mxu0 %v1136
        %v1138 = vand.u32 %v421, 4294901760
        %v1139 = vsub.f32 %v421, %v1138
        %1140 = vmatprep.subr.mxu0 %v1139
        %v1141 = vand.u32 %v420, 4294901760
        %v1142 = vsub.f32 %v420, %v1141
        %1143 = vmatpush1.msra.mxu0 %v1142
        %v1144 = vand.u32 %v423, 4294901760
        %v1145 = vsub.f32 %v423, %v1144
        %1146 = vmatprep.subr.mxu0 %v1145
        %v1147 = vand.u32 %v422, 4294901760
        %v1148 = vsub.f32 %v422, %v1147
        %1149 = vmatpush1.msra.mxu0 %v1148
        %v1150 = vand.u32 %v425, 4294901760
        %v1151 = vsub.f32 %v425, %v1150
        %1152 = vmatprep.subr.mxu0 %v1151
        %v1153 = vand.u32 %v424, 4294901760
        %v1154 = vsub.f32 %v424, %v1153
        %1155 = vmatpush1.msra.mxu0 %v1154
        %v1156 = vand.u32 %v427, 4294901760
        %v1157 = vsub.f32 %v427, %v1156
        %1158 = vmatprep.subr.mxu0 %v1157
        %v1159 = vand.u32 %v426, 4294901760
        %v1160 = vsub.f32 %v426, %v1159
        %1161 = vmatpush1.msra.mxu0 %v1160
        %v1162 = vand.u32 %v429, 4294901760
        %v1163 = vsub.f32 %v429, %v1162
        %1164 = vmatprep.subr.mxu0 %v1163
        %v1165 = vand.u32 %v428, 4294901760
        %v1166 = vsub.f32 %v428, %v1165
        %1167 = vmatpush1.msra.mxu0 %v1166
        %v1168 = vand.u32 %v431, 4294901760
        %v1169 = vsub.f32 %v431, %v1168
        %1170 = vmatprep.subr.mxu0 %v1169
        %v1171 = vand.u32 %v430, 4294901760
        %v1172 = vsub.f32 %v430, %v1171
        %1173 = vmatpush1.msra.mxu0 %v1172
        %v1174 = vand.u32 %v433, 4294901760
        %v1175 = vsub.f32 %v433, %v1174
        %1176 = vmatprep.subr.mxu0 %v1175
        %v1177 = vand.u32 %v432, 4294901760
        %v1178 = vsub.f32 %v432, %v1177
        %1179 = vmatpush1.msra.mxu0 %v1178
        %v1180 = vand.u32 %v435, 4294901760
        %v1181 = vsub.f32 %v435, %v1180
        %1182 = vmatprep.subr.mxu0 %v1181
        %v1183 = vand.u32 %v434, 4294901760
        %v1184 = vsub.f32 %v434, %v1183
        %1185 = vmatpush1.msra.mxu0 %v1184
        %v1186 = vand.u32 %v437, 4294901760
        %v1187 = vsub.f32 %v437, %v1186
        %1188 = vmatprep.subr.mxu0 %v1187
        %v1189 = vand.u32 %v436, 4294901760
        %v1190 = vsub.f32 %v436, %v1189
        %1191 = vmatpush1.msra.mxu0 %v1190
        %v1192 = vand.u32 %v371, 4294901760
        %v1193 = vsub.f32 %v371, %v1192
        %1194 = vmatprep.mubr.f32.mxu0 %v1193
        %v1195 = vand.u32 %v370, 4294901760
        %v1196 = vsub.f32 %v370, %v1195
        %1197 = vmatmul.mubr.f32.gmra.mrb[0].mxu0 %v1196
        %v1198 = vpop.f32.mrb[0].mxu0
        %v1199 = vadd.f32 %v988, %v1198
        %v1200 = vpop.f32.mrb[0].mxu0
        %v1201 = vadd.f32 %v990, %v1200
        %v1202 = vand.u32 %v373, 4294901760
        %v1203 = vsub.f32 %v373, %v1202
        %1204 = vmatprep.mubr.f32.mxu0 %v1203
        %v1205 = vand.u32 %v372, 4294901760
        %v1206 = vsub.f32 %v372, %v1205
        %1207 = vmatmul.mubr.f32.gmra.mrb[0].mxu0 %v1206
        %v1208 = vpop.f32.mrb[0].mxu0
        %v1209 = vadd.f32 %v996, %v1208
        %v1210 = vpop.f32.mrb[0].mxu0
        %v1211 = vadd.f32 %v998, %v1210
        %1212 = vdwg.mxu0
        %v1213 = vand.u32 %v375, 4294901760
        %1214 = vmatprep.subr.mxu0 %v1213
        %v1215 = vand.u32 %v374, 4294901760
        %1216 = vmatpush1.msra.mxu0 %v1215
        %v1217 = vand.u32 %v377, 4294901760
        %1218 = vmatprep.subr.mxu0 %v1217
        %v1219 = vand.u32 %v376, 4294901760
        %1220 = vmatpush1.msra.mxu0 %v1219
        %v1221 = vand.u32 %v379, 4294901760
        %1222 = vmatprep.subr.mxu0 %v1221
        %v1223 = vand.u32 %v378, 4294901760
        %1224 = vmatpush1.msra.mxu0 %v1223
        %v1225 = vand.u32 %v381, 4294901760
        %1226 = vmatprep.subr.mxu0 %v1225
        %v1227 = vand.u32 %v380, 4294901760
        %1228 = vmatpush1.msra.mxu0 %v1227
        %v1229 = vand.u32 %v383, 4294901760
        %1230 = vmatprep.subr.mxu0 %v1229
        %v1231 = vand.u32 %v382, 4294901760
        %1232 = vmatpush1.msra.mxu0 %v1231
        %v1233 = vand.u32 %v385, 4294901760
        %1234 = vmatprep.subr.mxu0 %v1233
        %v1235 = vand.u32 %v384, 4294901760
        %1236 = vmatpush1.msra.mxu0 %v1235
        %v1237 = vand.u32 %v387, 4294901760
        %1238 = vmatprep.subr.mxu0 %v1237
        %v1239 = vand.u32 %v386, 4294901760
        %1240 = vmatpush1.msra.mxu0 %v1239
        %v1241 = vand.u32 %v389, 4294901760
        %1242 = vmatprep.subr.mxu0 %v1241
        %v1243 = vand.u32 %v388, 4294901760
        %1244 = vmatpush1.msra.mxu0 %v1243
        %v1245 = vand.u32 %v391, 4294901760
        %1246 = vmatprep.subr.mxu0 %v1245
        %v1247 = vand.u32 %v390, 4294901760
        %1248 = vmatpush1.msra.mxu0 %v1247
        %v1249 = vand.u32 %v393, 4294901760
        %1250 = vmatprep.subr.mxu0 %v1249
        %v1251 = vand.u32 %v392, 4294901760
        %1252 = vmatpush1.msra.mxu0 %v1251
        %v1253 = vand.u32 %v395, 4294901760
        %1254 = vmatprep.subr.mxu0 %v1253
        %v1255 = vand.u32 %v394, 4294901760
        %1256 = vmatpush1.msra.mxu0 %v1255
        %v1257 = vand.u32 %v397, 4294901760
        %1258 = vmatprep.subr.mxu0 %v1257
        %v1259 = vand.u32 %v396, 4294901760
        %1260 = vmatpush1.msra.mxu0 %v1259
        %v1261 = vand.u32 %v399, 4294901760
        %1262 = vmatprep.subr.mxu0 %v1261
        %v1263 = vand.u32 %v398, 4294901760
        %1264 = vmatpush1.msra.mxu0 %v1263
        %v1265 = vand.u32 %v401, 4294901760
        %1266 = vmatprep.subr.mxu0 %v1265
        %v1267 = vand.u32 %v400, 4294901760
        %1268 = vmatpush1.msra.mxu0 %v1267
        %v1269 = vand.u32 %v403, 4294901760
        %1270 = vmatprep.subr.mxu0 %v1269
        %v1271 = vand.u32 %v402, 4294901760
        %1272 = vmatpush1.msra.mxu0 %v1271
        %v1273 = vand.u32 %v405, 4294901760
        %1274 = vmatprep.subr.mxu0 %v1273
        %v1275 = vand.u32 %v404, 4294901760
        %1276 = vmatpush1.msra.mxu0 %v1275
        %v1277 = vand.u32 %v407, 4294901760
        %1278 = vmatprep.subr.mxu0 %v1277
        %v1279 = vand.u32 %v406, 4294901760
        %1280 = vmatpush1.msra.mxu0 %v1279
        %v1281 = vand.u32 %v409, 4294901760
        %1282 = vmatprep.subr.mxu0 %v1281
        %v1283 = vand.u32 %v408, 4294901760
        %1284 = vmatpush1.msra.mxu0 %v1283
        %v1285 = vand.u32 %v411, 4294901760
        %1286 = vmatprep.subr.mxu0 %v1285
        %v1287 = vand.u32 %v410, 4294901760
        %1288 = vmatpush1.msra.mxu0 %v1287
        %v1289 = vand.u32 %v413, 4294901760
        %1290 = vmatprep.subr.mxu0 %v1289
        %v1291 = vand.u32 %v412, 4294901760
        %1292 = vmatpush1.msra.mxu0 %v1291
        %v1293 = vand.u32 %v415, 4294901760
        %1294 = vmatprep.subr.mxu0 %v1293
        %v1295 = vand.u32 %v414, 4294901760
        %1296 = vmatpush1.msra.mxu0 %v1295
        %v1297 = vand.u32 %v417, 4294901760
        %1298 = vmatprep.subr.mxu0 %v1297
        %v1299 = vand.u32 %v416, 4294901760
        %1300 = vmatpush1.msra.mxu0 %v1299
        %v1301 = vand.u32 %v419, 4294901760
        %1302 = vmatprep.subr.mxu0 %v1301
        %v1303 = vand.u32 %v418, 4294901760
        %1304 = vmatpush1.msra.mxu0 %v1303
        %v1305 = vand.u32 %v421, 4294901760
        %1306 = vmatprep.subr.mxu0 %v1305
        %v1307 = vand.u32 %v420, 4294901760
        %1308 = vmatpush1.msra.mxu0 %v1307
        %v1309 = vand.u32 %v423, 4294901760
        %1310 = vmatprep.subr.mxu0 %v1309
        %v1311 = vand.u32 %v422, 4294901760
        %1312 = vmatpush1.msra.mxu0 %v1311
        %v1313 = vand.u32 %v425, 4294901760
        %1314 = vmatprep.subr.mxu0 %v1313
        %v1315 = vand.u32 %v424, 4294901760
        %1316 = vmatpush1.msra.mxu0 %v1315
        %v1317 = vand.u32 %v427, 4294901760
        %1318 = vmatprep.subr.mxu0 %v1317
        %v1319 = vand.u32 %v426, 4294901760
        %1320 = vmatpush1.msra.mxu0 %v1319
        %v1321 = vand.u32 %v429, 4294901760
        %1322 = vmatprep.subr.mxu0 %v1321
        %v1323 = vand.u32 %v428, 4294901760
        %1324 = vmatpush1.msra.mxu0 %v1323
        %v1325 = vand.u32 %v431, 4294901760
        %1326 = vmatprep.subr.mxu0 %v1325
        %v1327 = vand.u32 %v430, 4294901760
        %1328 = vmatpush1.msra.mxu0 %v1327
        %v1329 = vand.u32 %v433, 4294901760
        %1330 = vmatprep.subr.mxu0 %v1329
        %v1331 = vand.u32 %v432, 4294901760
        %1332 = vmatpush1.msra.mxu0 %v1331
        %v1333 = vand.u32 %v435, 4294901760
        %1334 = vmatprep.subr.mxu0 %v1333
        %v1335 = vand.u32 %v434, 4294901760
        %1336 = vmatpush1.msra.mxu0 %v1335
        %v1337 = vand.u32 %v437, 4294901760
        %1338 = vmatprep.subr.mxu0 %v1337
        %v1339 = vand.u32 %v436, 4294901760
        %1340 = vmatpush1.msra.mxu0 %v1339
        %v1341 = vand.u32 %v371, 4294901760
        %v1342 = vsub.f32 %v371, %v1341
        %v1343 = vand.u32 %v1342, 4294901760
        %1344 = vmatprep.mubr.f32.mxu0 %v1343
        %v1345 = vand.u32 %v370, 4294901760
        %v1346 = vsub.f32 %v370, %v1345
        %v1347 = vand.u32 %v1346, 4294901760
        %1348 = vmatmul.mubr.f32.gmra.mrb[0].mxu0 %v1347
        %v1349 = vpop.f32.mrb[0].mxu0
        %v1350 = vadd.f32 %v1199, %v1349
        %v1351 = vpop.f32.mrb[0].mxu0
        %v1352 = vadd.f32 %v1201, %v1351
        %v1353 = vand.u32 %v373, 4294901760
        %v1354 = vsub.f32 %v373, %v1353
        %v1355 = vand.u32 %v1354, 4294901760
        %1356 = vmatprep.mubr.f32.mxu0 %v1355
        %v1357 = vand.u32 %v372, 4294901760
        %v1358 = vsub.f32 %v372, %v1357
        %v1359 = vand.u32 %v1358, 4294901760
        %1360 = vmatmul.mubr.f32.gmra.mrb[0].mxu0 %v1359
        %v1361 = vpop.f32.mrb[0].mxu0
        %v1362 = vadd.f32 %v1209, %v1361
        %v1363 = vpop.f32.mrb[0].mxu0
        %v1364 = vadd.f32 %v1211, %v1363
        %1365 = vdwg.mxu0
        %v1366 = vand.u32 %v375, 4294901760
        %v1367 = vsub.f32 %v375, %v1366
        %v1368 = vand.u32 %v1367, 4294901760
        %1369 = vmatprep.subr.mxu0 %v1368
        %v1370 = vand.u32 %v374, 4294901760
        %v1371 = vsub.f32 %v374, %v1370
        %v1372 = vand.u32 %v1371, 4294901760
        %1373 = vmatpush1.msra.mxu0 %v1372
        %v1374 = vand.u32 %v377, 4294901760
        %v1375 = vsub.f32 %v377, %v1374
        %v1376 = vand.u32 %v1375, 4294901760
        %1377 = vmatprep.subr.mxu0 %v1376
        %v1378 = vand.u32 %v376, 4294901760
        %v1379 = vsub.f32 %v376, %v1378
        %v1380 = vand.u32 %v1379, 4294901760
        %1381 = vmatpush1.msra.mxu0 %v1380
        %v1382 = vand.u32 %v379, 4294901760
        %v1383 = vsub.f32 %v379, %v1382
        %v1384 = vand.u32 %v1383, 4294901760
        %1385 = vmatprep.subr.mxu0 %v1384
        %v1386 = vand.u32 %v378, 4294901760
        %v1387 = vsub.f32 %v378, %v1386
        %v1388 = vand.u32 %v1387, 4294901760
        %1389 = vmatpush1.msra.mxu0 %v1388
        %v1390 = vand.u32 %v381, 4294901760
        %v1391 = vsub.f32 %v381, %v1390
        %v1392 = vand.u32 %v1391, 4294901760
        %1393 = vmatprep.subr.mxu0 %v1392
        %v1394 = vand.u32 %v380, 4294901760
        %v1395 = vsub.f32 %v380, %v1394
        %v1396 = vand.u32 %v1395, 4294901760
        %1397 = vmatpush1.msra.mxu0 %v1396
        %v1398 = vand.u32 %v383, 4294901760
        %v1399 = vsub.f32 %v383, %v1398
        %v1400 = vand.u32 %v1399, 4294901760
        %1401 = vmatprep.subr.mxu0 %v1400
        %v1402 = vand.u32 %v382, 4294901760
        %v1403 = vsub.f32 %v382, %v1402
        %v1404 = vand.u32 %v1403, 4294901760
        %1405 = vmatpush1.msra.mxu0 %v1404
        %v1406 = vand.u32 %v385, 4294901760
        %v1407 = vsub.f32 %v385, %v1406
        %v1408 = vand.u32 %v1407, 4294901760
        %1409 = vmatprep.subr.mxu0 %v1408
        %v1410 = vand.u32 %v384, 4294901760
        %v1411 = vsub.f32 %v384, %v1410
        %v1412 = vand.u32 %v1411, 4294901760
        %1413 = vmatpush1.msra.mxu0 %v1412
        %v1414 = vand.u32 %v387, 4294901760
        %v1415 = vsub.f32 %v387, %v1414
        %v1416 = vand.u32 %v1415, 4294901760
        %1417 = vmatprep.subr.mxu0 %v1416
        %v1418 = vand.u32 %v386, 4294901760
        %v1419 = vsub.f32 %v386, %v1418
        %v1420 = vand.u32 %v1419, 4294901760
        %1421 = vmatpush1.msra.mxu0 %v1420
        %v1422 = vand.u32 %v389, 4294901760
        %v1423 = vsub.f32 %v389, %v1422
        %v1424 = vand.u32 %v1423, 4294901760
        %1425 = vmatprep.subr.mxu0 %v1424
        %v1426 = vand.u32 %v388, 4294901760
        %v1427 = vsub.f32 %v388, %v1426
        %v1428 = vand.u32 %v1427, 4294901760
        %1429 = vmatpush1.msra.mxu0 %v1428
        %v1430 = vand.u32 %v391, 4294901760
        %v1431 = vsub.f32 %v391, %v1430
        %v1432 = vand.u32 %v1431, 4294901760
        %1433 = vmatprep.subr.mxu0 %v1432
        %v1434 = vand.u32 %v390, 4294901760
        %v1435 = vsub.f32 %v390, %v1434
        %v1436 = vand.u32 %v1435, 4294901760
        %1437 = vmatpush1.msra.mxu0 %v1436
        %v1438 = vand.u32 %v393, 4294901760
        %v1439 = vsub.f32 %v393, %v1438
        %v1440 = vand.u32 %v1439, 4294901760
        %1441 = vmatprep.subr.mxu0 %v1440
        %v1442 = vand.u32 %v392, 4294901760
        %v1443 = vsub.f32 %v392, %v1442
        %v1444 = vand.u32 %v1443, 4294901760
        %1445 = vmatpush1.msra.mxu0 %v1444
        %v1446 = vand.u32 %v395, 4294901760
        %v1447 = vsub.f32 %v395, %v1446
        %v1448 = vand.u32 %v1447, 4294901760
        %1449 = vmatprep.subr.mxu0 %v1448
        %v1450 = vand.u32 %v394, 4294901760
        %v1451 = vsub.f32 %v394, %v1450
        %v1452 = vand.u32 %v1451, 4294901760
        %1453 = vmatpush1.msra.mxu0 %v1452
        %v1454 = vand.u32 %v397, 4294901760
        %v1455 = vsub.f32 %v397, %v1454
        %v1456 = vand.u32 %v1455, 4294901760
        %1457 = vmatprep.subr.mxu0 %v1456
        %v1458 = vand.u32 %v396, 4294901760
        %v1459 = vsub.f32 %v396, %v1458
        %v1460 = vand.u32 %v1459, 4294901760
        %1461 = vmatpush1.msra.mxu0 %v1460
        %v1462 = vand.u32 %v399, 4294901760
        %v1463 = vsub.f32 %v399, %v1462
        %v1464 = vand.u32 %v1463, 4294901760
        %1465 = vmatprep.subr.mxu0 %v1464
        %v1466 = vand.u32 %v398, 4294901760
        %v1467 = vsub.f32 %v398, %v1466
        %v1468 = vand.u32 %v1467, 4294901760
        %1469 = vmatpush1.msra.mxu0 %v1468
        %v1470 = vand.u32 %v401, 4294901760
        %v1471 = vsub.f32 %v401, %v1470
        %v1472 = vand.u32 %v1471, 4294901760
        %1473 = vmatprep.subr.mxu0 %v1472
        %v1474 = vand.u32 %v400, 4294901760
        %v1475 = vsub.f32 %v400, %v1474
        %v1476 = vand.u32 %v1475, 4294901760
        %1477 = vmatpush1.msra.mxu0 %v1476
        %v1478 = vand.u32 %v403, 4294901760
        %v1479 = vsub.f32 %v403, %v1478
        %v1480 = vand.u32 %v1479, 4294901760
        %1481 = vmatprep.subr.mxu0 %v1480
        %v1482 = vand.u32 %v402, 4294901760
        %v1483 = vsub.f32 %v402, %v1482
        %v1484 = vand.u32 %v1483, 4294901760
        %1485 = vmatpush1.msra.mxu0 %v1484
        %v1486 = vand.u32 %v405, 4294901760
        %v1487 = vsub.f32 %v405, %v1486
        %v1488 = vand.u32 %v1487, 4294901760
        %1489 = vmatprep.subr.mxu0 %v1488
        %v1490 = vand.u32 %v404, 4294901760
        %v1491 = vsub.f32 %v404, %v1490
        %v1492 = vand.u32 %v1491, 4294901760
        %1493 = vmatpush1.msra.mxu0 %v1492
        %v1494 = vand.u32 %v407, 4294901760
        %v1495 = vsub.f32 %v407, %v1494
        %v1496 = vand.u32 %v1495, 4294901760
        %1497 = vmatprep.subr.mxu0 %v1496
        %v1498 = vand.u32 %v406, 4294901760
        %v1499 = vsub.f32 %v406, %v1498
        %v1500 = vand.u32 %v1499, 4294901760
        %1501 = vmatpush1.msra.mxu0 %v1500
        %v1502 = vand.u32 %v409, 4294901760
        %v1503 = vsub.f32 %v409, %v1502
        %v1504 = vand.u32 %v1503, 4294901760
        %1505 = vmatprep.subr.mxu0 %v1504
        %v1506 = vand.u32 %v408, 4294901760
        %v1507 = vsub.f32 %v408, %v1506
        %v1508 = vand.u32 %v1507, 4294901760
        %1509 = vmatpush1.msra.mxu0 %v1508
        %v1510 = vand.u32 %v411, 4294901760
        %v1511 = vsub.f32 %v411, %v1510
        %v1512 = vand.u32 %v1511, 4294901760
        %1513 = vmatprep.subr.mxu0 %v1512
        %v1514 = vand.u32 %v410, 4294901760
        %v1515 = vsub.f32 %v410, %v1514
        %v1516 = vand.u32 %v1515, 4294901760
        %1517 = vmatpush1.msra.mxu0 %v1516
        %v1518 = vand.u32 %v413, 4294901760
        %v1519 = vsub.f32 %v413, %v1518
        %v1520 = vand.u32 %v1519, 4294901760
        %1521 = vmatprep.subr.mxu0 %v1520
        %v1522 = vand.u32 %v412, 4294901760
        %v1523 = vsub.f32 %v412, %v1522
        %v1524 = vand.u32 %v1523, 4294901760
        %1525 = vmatpush1.msra.mxu0 %v1524
        %v1526 = vand.u32 %v415, 4294901760
        %v1527 = vsub.f32 %v415, %v1526
        %v1528 = vand.u32 %v1527, 4294901760
        %1529 = vmatprep.subr.mxu0 %v1528
        %v1530 = vand.u32 %v414, 4294901760
        %v1531 = vsub.f32 %v414, %v1530
        %v1532 = vand.u32 %v1531, 4294901760
        %1533 = vmatpush1.msra.mxu0 %v1532
        %v1534 = vand.u32 %v417, 4294901760
        %v1535 = vsub.f32 %v417, %v1534
        %v1536 = vand.u32 %v1535, 4294901760
        %1537 = vmatprep.subr.mxu0 %v1536
        %v1538 = vand.u32 %v416, 4294901760
        %v1539 = vsub.f32 %v416, %v1538
        %v1540 = vand.u32 %v1539, 4294901760
        %1541 = vmatpush1.msra.mxu0 %v1540
        %v1542 = vand.u32 %v419, 4294901760
        %v1543 = vsub.f32 %v419, %v1542
        %v1544 = vand.u32 %v1543, 4294901760
        %1545 = vmatprep.subr.mxu0 %v1544
        %v1546 = vand.u32 %v418, 4294901760
        %v1547 = vsub.f32 %v418, %v1546
        %v1548 = vand.u32 %v1547, 4294901760
        %1549 = vmatpush1.msra.mxu0 %v1548
        %v1550 = vand.u32 %v421, 4294901760
        %v1551 = vsub.f32 %v421, %v1550
        %v1552 = vand.u32 %v1551, 4294901760
        %1553 = vmatprep.subr.mxu0 %v1552
        %v1554 = vand.u32 %v420, 4294901760
        %v1555 = vsub.f32 %v420, %v1554
        %v1556 = vand.u32 %v1555, 4294901760
        %1557 = vmatpush1.msra.mxu0 %v1556
        %v1558 = vand.u32 %v423, 4294901760
        %v1559 = vsub.f32 %v423, %v1558
        %v1560 = vand.u32 %v1559, 4294901760
        %1561 = vmatprep.subr.mxu0 %v1560
        %v1562 = vand.u32 %v422, 4294901760
        %v1563 = vsub.f32 %v422, %v1562
        %v1564 = vand.u32 %v1563, 4294901760
        %1565 = vmatpush1.msra.mxu0 %v1564
        %v1566 = vand.u32 %v425, 4294901760
        %v1567 = vsub.f32 %v425, %v1566
        %v1568 = vand.u32 %v1567, 4294901760
        %1569 = vmatprep.subr.mxu0 %v1568
        %v1570 = vand.u32 %v424, 4294901760
        %v1571 = vsub.f32 %v424, %v1570
        %v1572 = vand.u32 %v1571, 4294901760
        %1573 = vmatpush1.msra.mxu0 %v1572
        %v1574 = vand.u32 %v427, 4294901760
        %v1575 = vsub.f32 %v427, %v1574
        %v1576 = vand.u32 %v1575, 4294901760
        %1577 = vmatprep.subr.mxu0 %v1576
        %v1578 = vand.u32 %v426, 4294901760
        %v1579 = vsub.f32 %v426, %v1578
        %v1580 = vand.u32 %v1579, 4294901760
        %1581 = vmatpush1.msra.mxu0 %v1580
        %v1582 = vand.u32 %v429, 4294901760
        %v1583 = vsub.f32 %v429, %v1582
        %v1584 = vand.u32 %v1583, 4294901760
        %1585 = vmatprep.subr.mxu0 %v1584
        %v1586 = vand.u32 %v428, 4294901760
        %v1587 = vsub.f32 %v428, %v1586
        %v1588 = vand.u32 %v1587, 4294901760
        %1589 = vmatpush1.msra.mxu0 %v1588
        %v1590 = vand.u32 %v431, 4294901760
        %v1591 = vsub.f32 %v431, %v1590
        %v1592 = vand.u32 %v1591, 4294901760
        %1593 = vmatprep.subr.mxu0 %v1592
        %v1594 = vand.u32 %v430, 4294901760
        %v1595 = vsub.f32 %v430, %v1594
        %v1596 = vand.u32 %v1595, 4294901760
        %1597 = vmatpush1.msra.mxu0 %v1596
        %v1598 = vand.u32 %v433, 4294901760
        %v1599 = vsub.f32 %v433, %v1598
        %v1600 = vand.u32 %v1599, 4294901760
        %1601 = vmatprep.subr.mxu0 %v1600
        %v1602 = vand.u32 %v432, 4294901760
        %v1603 = vsub.f32 %v432, %v1602
        %v1604 = vand.u32 %v1603, 4294901760
        %1605 = vmatpush1.msra.mxu0 %v1604
        %v1606 = vand.u32 %v435, 4294901760
        %v1607 = vsub.f32 %v435, %v1606
        %v1608 = vand.u32 %v1607, 4294901760
        %1609 = vmatprep.subr.mxu0 %v1608
        %v1610 = vand.u32 %v434, 4294901760
        %v1611 = vsub.f32 %v434, %v1610
        %v1612 = vand.u32 %v1611, 4294901760
        %1613 = vmatpush1.msra.mxu0 %v1612
        %v1614 = vand.u32 %v437, 4294901760
        %v1615 = vsub.f32 %v437, %v1614
        %v1616 = vand.u32 %v1615, 4294901760
        %1617 = vmatprep.subr.mxu0 %v1616
        %v1618 = vand.u32 %v436, 4294901760
        %v1619 = vsub.f32 %v436, %v1618
        %v1620 = vand.u32 %v1619, 4294901760
        %1621 = vmatpush1.msra.mxu0 %v1620
        %v1622 = vand.u32 %v371, 4294901760
        %1623 = vmatprep.mubr.f32.mxu0 %v1622
        %v1624 = vand.u32 %v370, 4294901760
        %1625 = vmatmul.mubr.f32.gmra.mrb[0].mxu0 %v1624
        %v1626 = vpop.f32.mrb[0].mxu0
        %v1627 = vadd.f32 %v1350, %v1626
        %v1628 = vpop.f32.mrb[0].mxu0
        %v1629 = vadd.f32 %v1352, %v1628
        %v1630 = vand.u32 %v373, 4294901760
        %1631 = vmatprep.mubr.f32.mxu0 %v1630
        %v1632 = vand.u32 %v372, 4294901760
        %1633 = vmatmul.mubr.f32.gmra.mrb[0].mxu0 %v1632
        %v1634 = vpop.f32.mrb[0].mxu0
        %v1635 = vadd.f32 %v1362, %v1634
        %v1636 = vpop.f32.mrb[0].mxu0
        %v1637 = vadd.f32 %v1364, %v1636
        %1638 = vdwg.mxu0
        %v1639 = vand.u32 %v375, 4294901760
        %1640 = vmatprep.subr.mxu0 %v1639
        %v1641 = vand.u32 %v374, 4294901760
        %1642 = vmatpush1.msra.mxu0 %v1641
        %v1643 = vand.u32 %v377, 4294901760
        %1644 = vmatprep.subr.mxu0 %v1643
        %v1645 = vand.u32 %v376, 4294901760
        %1646 = vmatpush1.msra.mxu0 %v1645
        %v1647 = vand.u32 %v379, 4294901760
        %1648 = vmatprep.subr.mxu0 %v1647
        %v1649 = vand.u32 %v378, 4294901760
        %1650 = vmatpush1.msra.mxu0 %v1649
        %v1651 = vand.u32 %v381, 4294901760
        %1652 = vmatprep.subr.mxu0 %v1651
        %v1653 = vand.u32 %v380, 4294901760
        %1654 = vmatpush1.msra.mxu0 %v1653
        %v1655 = vand.u32 %v383, 4294901760
        %1656 = vmatprep.subr.mxu0 %v1655
        %v1657 = vand.u32 %v382, 4294901760
        %1658 = vmatpush1.msra.mxu0 %v1657
        %v1659 = vand.u32 %v385, 4294901760
        %1660 = vmatprep.subr.mxu0 %v1659
        %v1661 = vand.u32 %v384, 4294901760
        %1662 = vmatpush1.msra.mxu0 %v1661
        %v1663 = vand.u32 %v387, 4294901760
        %1664 = vmatprep.subr.mxu0 %v1663
        %v1665 = vand.u32 %v386, 4294901760
        %1666 = vmatpush1.msra.mxu0 %v1665
        %v1667 = vand.u32 %v389, 4294901760
        %1668 = vmatprep.subr.mxu0 %v1667
        %v1669 = vand.u32 %v388, 4294901760
        %1670 = vmatpush1.msra.mxu0 %v1669
        %v1671 = vand.u32 %v391, 4294901760
        %1672 = vmatprep.subr.mxu0 %v1671
        %v1673 = vand.u32 %v390, 4294901760
        %1674 = vmatpush1.msra.mxu0 %v1673
        %v1675 = vand.u32 %v393, 4294901760
        %1676 = vmatprep.subr.mxu0 %v1675
        %v1677 = vand.u32 %v392, 4294901760
        %1678 = vmatpush1.msra.mxu0 %v1677
        %v1679 = vand.u32 %v395, 4294901760
        %1680 = vmatprep.subr.mxu0 %v1679
        %v1681 = vand.u32 %v394, 4294901760
        %1682 = vmatpush1.msra.mxu0 %v1681
        %v1683 = vand.u32 %v397, 4294901760
        %1684 = vmatprep.subr.mxu0 %v1683
        %v1685 = vand.u32 %v396, 4294901760
        %1686 = vmatpush1.msra.mxu0 %v1685
        %v1687 = vand.u32 %v399, 4294901760
        %1688 = vmatprep.subr.mxu0 %v1687
        %v1689 = vand.u32 %v398, 4294901760
        %1690 = vmatpush1.msra.mxu0 %v1689
        %v1691 = vand.u32 %v401, 4294901760
        %1692 = vmatprep.subr.mxu0 %v1691
        %v1693 = vand.u32 %v400, 4294901760
        %1694 = vmatpush1.msra.mxu0 %v1693
        %v1695 = vand.u32 %v403, 4294901760
        %1696 = vmatprep.subr.mxu0 %v1695
        %v1697 = vand.u32 %v402, 4294901760
        %1698 = vmatpush1.msra.mxu0 %v1697
        %v1699 = vand.u32 %v405, 4294901760
        %1700 = vmatprep.subr.mxu0 %v1699
        %v1701 = vand.u32 %v404, 4294901760
        %1702 = vmatpush1.msra.mxu0 %v1701
        %v1703 = vand.u32 %v407, 4294901760
        %1704 = vmatprep.subr.mxu0 %v1703
        %v1705 = vand.u32 %v406, 4294901760
        %1706 = vmatpush1.msra.mxu0 %v1705
        %v1707 = vand.u32 %v409, 4294901760
        %1708 = vmatprep.subr.mxu0 %v1707
        %v1709 = vand.u32 %v408, 4294901760
        %1710 = vmatpush1.msra.mxu0 %v1709
        %v1711 = vand.u32 %v411, 4294901760
        %1712 = vmatprep.subr.mxu0 %v1711
        %v1713 = vand.u32 %v410, 4294901760
        %1714 = vmatpush1.msra.mxu0 %v1713
        %v1715 = vand.u32 %v413, 4294901760
        %1716 = vmatprep.subr.mxu0 %v1715
        %v1717 = vand.u32 %v412, 4294901760
        %1718 = vmatpush1.msra.mxu0 %v1717
        %v1719 = vand.u32 %v415, 4294901760
        %1720 = vmatprep.subr.mxu0 %v1719
        %v1721 = vand.u32 %v414, 4294901760
        %1722 = vmatpush1.msra.mxu0 %v1721
        %v1723 = vand.u32 %v417, 4294901760
        %1724 = vmatprep.subr.mxu0 %v1723
        %v1725 = vand.u32 %v416, 4294901760
        %1726 = vmatpush1.msra.mxu0 %v1725
        %v1727 = vand.u32 %v419, 4294901760
        %1728 = vmatprep.subr.mxu0 %v1727
        %v1729 = vand.u32 %v418, 4294901760
        %1730 = vmatpush1.msra.mxu0 %v1729
        %v1731 = vand.u32 %v421, 4294901760
        %1732 = vmatprep.subr.mxu0 %v1731
        %v1733 = vand.u32 %v420, 4294901760
        %1734 = vmatpush1.msra.mxu0 %v1733
        %v1735 = vand.u32 %v423, 4294901760
        %1736 = vmatprep.subr.mxu0 %v1735
        %v1737 = vand.u32 %v422, 4294901760
        %1738 = vmatpush1.msra.mxu0 %v1737
        %v1739 = vand.u32 %v425, 4294901760
        %1740 = vmatprep.subr.mxu0 %v1739
        %v1741 = vand.u32 %v424, 4294901760
        %1742 = vmatpush1.msra.mxu0 %v1741
        %v1743 = vand.u32 %v427, 4294901760
        %1744 = vmatprep.subr.mxu0 %v1743
        %v1745 = vand.u32 %v426, 4294901760
        %1746 = vmatpush1.msra.mxu0 %v1745
        %v1747 = vand.u32 %v429, 4294901760
        %1748 = vmatprep.subr.mxu0 %v1747
        %v1749 = vand.u32 %v428, 4294901760
        %1750 = vmatpush1.msra.mxu0 %v1749
        %v1751 = vand.u32 %v431, 4294901760
        %1752 = vmatprep.subr.mxu0 %v1751
        %v1753 = vand.u32 %v430, 4294901760
        %1754 = vmatpush1.msra.mxu0 %v1753
        %v1755 = vand.u32 %v433, 4294901760
        %1756 = vmatprep.subr.mxu0 %v1755
        %v1757 = vand.u32 %v432, 4294901760
        %1758 = vmatpush1.msra.mxu0 %v1757
        %v1759 = vand.u32 %v435, 4294901760
        %1760 = vmatprep.subr.mxu0 %v1759
        %v1761 = vand.u32 %v434, 4294901760
        %1762 = vmatpush1.msra.mxu0 %v1761
        %v1763 = vand.u32 %v437, 4294901760
        %1764 = vmatprep.subr.mxu0 %v1763
        %v1765 = vand.u32 %v436, 4294901760
        %1766 = vmatpush1.msra.mxu0 %v1765
        %v1767 = vand.u32 %v371, 4294901760
        %1768 = vmatprep.mubr.f32.mxu0 %v1767
        %v1769 = vand.u32 %v370, 4294901760
        %1770 = vmatmul.mubr.f32.gmra.mrb[0].mxu0 %v1769
        %v1771 = vpop.f32.mrb[0].mxu0
        %v1772 = vadd.f32 %v1627, %v1771
        %v1773 = vpop.f32.mrb[0].mxu0
        %v1774 = vadd.f32 %v1629, %v1773
        %v1775 = vand.u32 %v373, 4294901760
        %1776 = vmatprep.mubr.f32.mxu0 %v1775
        %v1777 = vand.u32 %v372, 4294901760
        %1778 = vmatmul.mubr.f32.gmra.mrb[0].mxu0 %v1777
        %v1779 = vpop.f32.mrb[0].mxu0
        %v1780 = vadd.f32 %v1635, %v1779
        %v1781 = vpop.f32.mrb[0].mxu0
        %v1782 = vadd.f32 %v1637, %v1781
        %1783 = vdwg.mxu0
        %v1784 = vmax.f32 %v370, %v1772
        %v1785 = vmax.f32 %v371, %v1774
        %v1786 = vmax.f32 %v372, %v1780
        %v1787 = vmax.f32 %v373, %v1782
        %v1788 = vld [vmem:[#allocation7] sm:$0xff]
        %v1789 = vld [vmem:[#allocation7 + $0x8] sm:$0xff]
        %v1790 = vld [vmem:[#allocation7 + $0x10] sm:$0xff]
        %v1791 = vld [vmem:[#allocation7 + $0x18] sm:$0xff]
        %v1792 = vld [vmem:[#allocation7 + $0x20] sm:$0xff]
        %v1793 = vld [vmem:[#allocation7 + $0x28] sm:$0xff]
        %v1794 = vld [vmem:[#allocation7 + $0x30] sm:$0xff]
        %v1795 = vld [vmem:[#allocation7 + $0x38] sm:$0xff]
        %v1796 = vld [vmem:[#allocation7 + $0x40] sm:$0xff]
        %v1797 = vld [vmem:[#allocation7 + $0x48] sm:$0xff]
        %v1798 = vld [vmem:[#allocation7 + $0x50] sm:$0xff]
        %v1799 = vld [vmem:[#allocation7 + $0x58] sm:$0xff]
        %v1800 = vld [vmem:[#allocation7 + $0x60] sm:$0xff]
        %v1801 = vld [vmem:[#allocation7 + $0x68] sm:$0xff]
        %v1802 = vld [vmem:[#allocation7 + $0x70] sm:$0xff]
        %v1803 = vld [vmem:[#allocation7 + $0x78] sm:$0xff]
        %v1804 = vld [vmem:[#allocation7 + $0x80] sm:$0xff]
        %v1805 = vld [vmem:[#allocation7 + $0x88] sm:$0xff]
        %v1806 = vld [vmem:[#allocation7 + $0x90] sm:$0xff]
        %v1807 = vld [vmem:[#allocation7 + $0x98] sm:$0xff]
        %v1808 = vld [vmem:[#allocation7 + $0xa0] sm:$0xff]
        %v1809 = vld [vmem:[#allocation7 + $0xa8] sm:$0xff]
        %v1810 = vld [vmem:[#allocation7 + $0xb0] sm:$0xff]
        %v1811 = vld [vmem:[#allocation7 + $0xb8] sm:$0xff]
        %v1812 = vld [vmem:[#allocation7 + $0xc0] sm:$0xff]
        %v1813 = vld [vmem:[#allocation7 + $0xc8] sm:$0xff]
        %v1814 = vld [vmem:[#allocation7 + $0xd0] sm:$0xff]
        %v1815 = vld [vmem:[#allocation7 + $0xd8] sm:$0xff]
        %v1816 = vld [vmem:[#allocation7 + $0xe0] sm:$0xff]
        %v1817 = vld [vmem:[#allocation7 + $0xe8] sm:$0xff]
        %v1818 = vld [vmem:[#allocation7 + $0xf0] sm:$0xff]
        %v1819 = vld [vmem:[#allocation7 + $0xf8] sm:$0xff]
        %v1820 = vld [vmem:[#allocation7 + $0x100] sm:$0xff]
        %v1821 = vld [vmem:[#allocation7 + $0x108] sm:$0xff]
        %v1822 = vld [vmem:[#allocation7 + $0x110] sm:$0xff]
        %v1823 = vld [vmem:[#allocation7 + $0x118] sm:$0xff]
        %v1824 = vld [vmem:[#allocation7 + $0x120] sm:$0xff]
        %v1825 = vld [vmem:[#allocation7 + $0x128] sm:$0xff]
        %v1826 = vld [vmem:[#allocation7 + $0x130] sm:$0xff]
        %v1827 = vld [vmem:[#allocation7 + $0x138] sm:$0xff]
        %v1828 = vld [vmem:[#allocation7 + $0x140] sm:$0xff]
        %v1829 = vld [vmem:[#allocation7 + $0x148] sm:$0xff]
        %v1830 = vld [vmem:[#allocation7 + $0x150] sm:$0xff]
        %v1831 = vld [vmem:[#allocation7 + $0x158] sm:$0xff]
        %v1832 = vld [vmem:[#allocation7 + $0x160] sm:$0xff]
        %v1833 = vld [vmem:[#allocation7 + $0x168] sm:$0xff]
        %v1834 = vld [vmem:[#allocation7 + $0x170] sm:$0xff]
        %v1835 = vld [vmem:[#allocation7 + $0x178] sm:$0xff]
        %v1836 = vld [vmem:[#allocation7 + $0x180] sm:$0xff]
        %v1837 = vld [vmem:[#allocation7 + $0x188] sm:$0xff]
        %v1838 = vld [vmem:[#allocation7 + $0x190] sm:$0xff]
        %v1839 = vld [vmem:[#allocation7 + $0x198] sm:$0xff]
        %v1840 = vld [vmem:[#allocation7 + $0x1a0] sm:$0xff]
        %v1841 = vld [vmem:[#allocation7 + $0x1a8] sm:$0xff]
        %v1842 = vld [vmem:[#allocation7 + $0x1b0] sm:$0xff]
        %v1843 = vld [vmem:[#allocation7 + $0x1b8] sm:$0xff]
        %v1844 = vld [vmem:[#allocation7 + $0x1c0] sm:$0xff]
        %v1845 = vld [vmem:[#allocation7 + $0x1c8] sm:$0xff]
        %v1846 = vld [vmem:[#allocation7 + $0x1d0] sm:$0xff]
        %v1847 = vld [vmem:[#allocation7 + $0x1d8] sm:$0xff]
        %v1848 = vld [vmem:[#allocation7 + $0x1e0] sm:$0xff]
        %v1849 = vld [vmem:[#allocation7 + $0x1e8] sm:$0xff]
        %v1850 = vld [vmem:[#allocation7 + $0x1f0] sm:$0xff]
        %v1851 = vld [vmem:[#allocation7 + $0x1f8] sm:$0xff]
        %v1852 = vand.u32 %v1789, 4294901760
        %1853 = vmatprep.subr.mxu0 %v1852
        %v1854 = vand.u32 %v1788, 4294901760
        %1855 = vmatpush1.msra.mxu0 %v1854
        %v1856 = vand.u32 %v1791, 4294901760
        %1857 = vmatprep.subr.mxu0 %v1856
        %v1858 = vand.u32 %v1790, 4294901760
        %1859 = vmatpush1.msra.mxu0 %v1858
        %v1860 = vand.u32 %v1793, 4294901760
        %1861 = vmatprep.subr.mxu0 %v1860
        %v1862 = vand.u32 %v1792, 4294901760
        %1863 = vmatpush1.msra.mxu0 %v1862
        %v1864 = vand.u32 %v1795, 4294901760
        %1865 = vmatprep.subr.mxu0 %v1864
        %v1866 = vand.u32 %v1794, 4294901760
        %1867 = vmatpush1.msra.mxu0 %v1866
        %v1868 = vand.u32 %v1797, 4294901760
        %1869 = vmatprep.subr.mxu0 %v1868
        %v1870 = vand.u32 %v1796, 4294901760
        %1871 = vmatpush1.msra.mxu0 %v1870
        %v1872 = vand.u32 %v1799, 4294901760
        %1873 = vmatprep.subr.mxu0 %v1872
        %v1874 = vand.u32 %v1798, 4294901760
        %1875 = vmatpush1.msra.mxu0 %v1874
        %v1876 = vand.u32 %v1801, 4294901760
        %1877 = vmatprep.subr.mxu0 %v1876
        %v1878 = vand.u32 %v1800, 4294901760
        %1879 = vmatpush1.msra.mxu0 %v1878
        %v1880 = vand.u32 %v1803, 4294901760
        %1881 = vmatprep.subr.mxu0 %v1880
        %v1882 = vand.u32 %v1802, 4294901760
        %1883 = vmatpush1.msra.mxu0 %v1882
        %v1884 = vand.u32 %v1805, 4294901760
        %1885 = vmatprep.subr.mxu0 %v1884
        %v1886 = vand.u32 %v1804, 4294901760
        %1887 = vmatpush1.msra.mxu0 %v1886
        %v1888 = vand.u32 %v1807, 4294901760
        %1889 = vmatprep.subr.mxu0 %v1888
        %v1890 = vand.u32 %v1806, 4294901760
        %1891 = vmatpush1.msra.mxu0 %v1890
        %v1892 = vand.u32 %v1809, 4294901760
        %1893 = vmatprep.subr.mxu0 %v1892
        %v1894 = vand.u32 %v1808, 4294901760
        %1895 = vmatpush1.msra.mxu0 %v1894
        %v1896 = vand.u32 %v1811, 4294901760
        %1897 = vmatprep.subr.mxu0 %v1896
        %v1898 = vand.u32 %v1810, 4294901760
        %1899 = vmatpush1.msra.mxu0 %v1898
        %v1900 = vand.u32 %v1813, 4294901760
        %1901 = vmatprep.subr.mxu0 %v1900
        %v1902 = vand.u32 %v1812, 4294901760
        %1903 = vmatpush1.msra.mxu0 %v1902
        %v1904 = vand.u32 %v1815, 4294901760
        %1905 = vmatprep.subr.mxu0 %v1904
        %v1906 = vand.u32 %v1814, 4294901760
        %1907 = vmatpush1.msra.mxu0 %v1906
        %v1908 = vand.u32 %v1817, 4294901760
        %1909 = vmatprep.subr.mxu0 %v1908
        %v1910 = vand.u32 %v1816, 4294901760
        %1911 = vmatpush1.msra.mxu0 %v1910
        %v1912 = vand.u32 %v1819, 4294901760
        %1913 = vmatprep.subr.mxu0 %v1912
        %v1914 = vand.u32 %v1818, 4294901760
        %1915 = vmatpush1.msra.mxu0 %v1914
        %v1916 = vand.u32 %v1821, 4294901760
        %1917 = vmatprep.subr.mxu0 %v1916
        %v1918 = vand.u32 %v1820, 4294901760
        %1919 = vmatpush1.msra.mxu0 %v1918
        %v1920 = vand.u32 %v1823, 4294901760
        %1921 = vmatprep.subr.mxu0 %v1920
        %v1922 = vand.u32 %v1822, 4294901760
        %1923 = vmatpush1.msra.mxu0 %v1922
        %v1924 = vand.u32 %v1825, 4294901760
        %1925 = vmatprep.subr.mxu0 %v1924
        %v1926 = vand.u32 %v1824, 4294901760
        %1927 = vmatpush1.msra.mxu0 %v1926
        %v1928 = vand.u32 %v1827, 4294901760
        %1929 = vmatprep.subr.mxu0 %v1928
        %v1930 = vand.u32 %v1826, 4294901760
        %1931 = vmatpush1.msra.mxu0 %v1930
        %v1932 = vand.u32 %v1829, 4294901760
        %1933 = vmatprep.subr.mxu0 %v1932
        %v1934 = vand.u32 %v1828, 4294901760
        %1935 = vmatpush1.msra.mxu0 %v1934
        %v1936 = vand.u32 %v1831, 4294901760
        %1937 = vmatprep.subr.mxu0 %v1936
        %v1938 = vand.u32 %v1830, 4294901760
        %1939 = vmatpush1.msra.mxu0 %v1938
        %v1940 = vand.u32 %v1833, 4294901760
        %1941 = vmatprep.subr.mxu0 %v1940
        %v1942 = vand.u32 %v1832, 4294901760
        %1943 = vmatpush1.msra.mxu0 %v1942
        %v1944 = vand.u32 %v1835, 4294901760
        %1945 = vmatprep.subr.mxu0 %v1944
        %v1946 = vand.u32 %v1834, 4294901760
        %1947 = vmatpush1.msra.mxu0 %v1946
        %v1948 = vand.u32 %v1837, 4294901760
        %1949 = vmatprep.subr.mxu0 %v1948
        %v1950 = vand.u32 %v1836, 4294901760
        %1951 = vmatpush1.msra.mxu0 %v1950
        %v1952 = vand.u32 %v1839, 4294901760
        %1953 = vmatprep.subr.mxu0 %v1952
        %v1954 = vand.u32 %v1838, 4294901760
        %1955 = vmatpush1.msra.mxu0 %v1954
        %v1956 = vand.u32 %v1841, 4294901760
        %1957 = vmatprep.subr.mxu0 %v1956
        %v1958 = vand.u32 %v1840, 4294901760
        %1959 = vmatpush1.msra.mxu0 %v1958
        %v1960 = vand.u32 %v1843, 4294901760
        %1961 = vmatprep.subr.mxu0 %v1960
        %v1962 = vand.u32 %v1842, 4294901760
        %1963 = vmatpush1.msra.mxu0 %v1962
        %v1964 = vand.u32 %v1845, 4294901760
        %1965 = vmatprep.subr.mxu0 %v1964
        %v1966 = vand.u32 %v1844, 4294901760
        %1967 = vmatpush1.msra.mxu0 %v1966
        %v1968 = vand.u32 %v1847, 4294901760
        %1969 = vmatprep.subr.mxu0 %v1968
        %v1970 = vand.u32 %v1846, 4294901760
        %1971 = vmatpush1.msra.mxu0 %v1970
        %v1972 = vand.u32 %v1849, 4294901760
        %1973 = vmatprep.subr.mxu0 %v1972
        %v1974 = vand.u32 %v1848, 4294901760
        %1975 = vmatpush1.msra.mxu0 %v1974
        %v1976 = vand.u32 %v1851, 4294901760
        %1977 = vmatprep.subr.mxu0 %v1976
        %v1978 = vand.u32 %v1850, 4294901760
        %1979 = vmatpush1.msra.mxu0 %v1978
        %v1980 = vand.u32 %v1785, 4294901760
        %v1981 = vsub.f32 %v1785, %v1980
        %v1982 = vand.u32 %v1981, 4294901760
        %v1983 = vsub.f32 %v1981, %v1982
        %v1984 = vand.u32 %v1983, 4294901760
        %1985 = vmatprep.mubr.f32.mxu0 %v1984
        %v1986 = vand.u32 %v1784, 4294901760
        %v1987 = vsub.f32 %v1784, %v1986
        %v1988 = vand.u32 %v1987, 4294901760
        %v1989 = vsub.f32 %v1987, %v1988
        %v1990 = vand.u32 %v1989, 4294901760
        %1991 = vmatmul.mubr.f32.gmra.mrb[0].mxu0 %v1990
        %v1992 = vpop.f32.mrb[0].mxu0
        %v1993 = vadd.f32 0.0, %v1992
        %v1994 = vpop.f32.mrb[0].mxu0
        %v1995 = vadd.f32 0.0, %v1994
        %v1996 = vand.u32 %v1787, 4294901760
        %v1997 = vsub.f32 %v1787, %v1996
        %v1998 = vand.u32 %v1997, 4294901760
        %v1999 = vsub.f32 %v1997, %v1998
        %v2000 = vand.u32 %v1999, 4294901760
        %2001 = vmatprep.mubr.f32.mxu0 %v2000
        %v2002 = vand.u32 %v1786, 4294901760
        %v2003 = vsub.f32 %v1786, %v2002
        %v2004 = vand.u32 %v2003, 4294901760
        %v2005 = vsub.f32 %v2003, %v2004
        %v2006 = vand.u32 %v2005, 4294901760
        %2007 = vmatmul.mubr.f32.gmra.mrb[0].mxu0 %v2006
        %v2008 = vpop.f32.mrb[0].mxu0
        %v2009 = vadd.f32 0.0, %v2008
        %v2010 = vpop.f32.mrb[0].mxu0
        %v2011 = vadd.f32 0.0, %v2010
        %2012 = vdwg.mxu0
        %v2013 = vand.u32 %v1789, 4294901760
        %v2014 = vsub.f32 %v1789, %v2013
        %v2015 = vand.u32 %v2014, 4294901760
        %v2016 = vsub.f32 %v2014, %v2015
        %v2017 = vand.u32 %v2016, 4294901760
        %2018 = vmatprep.subr.mxu0 %v2017
        %v2019 = vand.u32 %v1788, 4294901760
        %v2020 = vsub.f32 %v1788, %v2019
        %v2021 = vand.u32 %v2020, 4294901760
        %v2022 = vsub.f32 %v2020, %v2021
        %v2023 = vand.u32 %v2022, 4294901760
        %2024 = vmatpush1.msra.mxu0 %v2023
        %v2025 = vand.u32 %v1791, 4294901760
        %v2026 = vsub.f32 %v1791, %v2025
        %v2027 = vand.u32 %v2026, 4294901760
        %v2028 = vsub.f32 %v2026, %v2027
        %v2029 = vand.u32 %v2028, 4294901760
        %2030 = vmatprep.subr.mxu0 %v2029
        %v2031 = vand.u32 %v1790, 4294901760
        %v2032 = vsub.f32 %v1790, %v2031
        %v2033 = vand.u32 %v2032, 4294901760
        %v2034 = vsub.f32 %v2032, %v2033
        %v2035 = vand.u32 %v2034, 4294901760
        %2036 = vmatpush1.msra.mxu0 %v2035
        %v2037 = vand.u32 %v1793, 4294901760
        %v2038 = vsub.f32 %v1793, %v2037
        %v2039 = vand.u32 %v2038, 4294901760
        %v2040 = vsub.f32 %v2038, %v2039
        %v2041 = vand.u32 %v2040, 4294901760
        %2042 = vmatprep.subr.mxu0 %v2041
        %v2043 = vand.u32 %v1792, 4294901760
        %v2044 = vsub.f32 %v1792, %v2043
        %v2045 = vand.u32 %v2044, 4294901760
        %v2046 = vsub.f32 %v2044, %v2045
        %v2047 = vand.u32 %v2046, 4294901760
        %2048 = vmatpush1.msra.mxu0 %v2047
        %v2049 = vand.u32 %v1795, 4294901760
        %v2050 = vsub.f32 %v1795, %v2049
        %v2051 = vand.u32 %v2050, 4294901760
        %v2052 = vsub.f32 %v2050, %v2051
        %v2053 = vand.u32 %v2052, 4294901760
        %2054 = vmatprep.subr.mxu0 %v2053
        %v2055 = vand.u32 %v1794, 4294901760
        %v2056 = vsub.f32 %v1794, %v2055
        %v2057 = vand.u32 %v2056, 4294901760
        %v2058 = vsub.f32 %v2056, %v2057
        %v2059 = vand.u32 %v2058, 4294901760
        %2060 = vmatpush1.msra.mxu0 %v2059
        %v2061 = vand.u32 %v1797, 4294901760
        %v2062 = vsub.f32 %v1797, %v2061
        %v2063 = vand.u32 %v2062, 4294901760
        %v2064 = vsub.f32 %v2062, %v2063
        %v2065 = vand.u32 %v2064, 4294901760
        %2066 = vmatprep.subr.mxu0 %v2065
        %v2067 = vand.u32 %v1796, 4294901760
        %v2068 = vsub.f32 %v1796, %v2067
        %v2069 = vand.u32 %v2068, 4294901760
        %v2070 = vsub.f32 %v2068, %v2069
        %v2071 = vand.u32 %v2070, 4294901760
        %2072 = vmatpush1.msra.mxu0 %v2071
        %v2073 = vand.u32 %v1799, 4294901760
        %v2074 = vsub.f32 %v1799, %v2073
        %v2075 = vand.u32 %v2074, 4294901760
        %v2076 = vsub.f32 %v2074, %v2075
        %v2077 = vand.u32 %v2076, 4294901760
        %2078 = vmatprep.subr.mxu0 %v2077
        %v2079 = vand.u32 %v1798, 4294901760
        %v2080 = vsub.f32 %v1798, %v2079
        %v2081 = vand.u32 %v2080, 4294901760
        %v2082 = vsub.f32 %v2080, %v2081
        %v2083 = vand.u32 %v2082, 4294901760
        %2084 = vmatpush1.msra.mxu0 %v2083
        %v2085 = vand.u32 %v1801, 4294901760
        %v2086 = vsub.f32 %v1801, %v2085
        %v2087 = vand.u32 %v2086, 4294901760
        %v2088 = vsub.f32 %v2086, %v2087
        %v2089 = vand.u32 %v2088, 4294901760
        %2090 = vmatprep.subr.mxu0 %v2089
        %v2091 = vand.u32 %v1800, 4294901760
        %v2092 = vsub.f32 %v1800, %v2091
        %v2093 = vand.u32 %v2092, 4294901760
        %v2094 = vsub.f32 %v2092, %v2093
        %v2095 = vand.u32 %v2094, 4294901760
        %2096 = vmatpush1.msra.mxu0 %v2095
        %v2097 = vand.u32 %v1803, 4294901760
        %v2098 = vsub.f32 %v1803, %v2097
        %v2099 = vand.u32 %v2098, 4294901760
        %v2100 = vsub.f32 %v2098, %v2099
        %v2101 = vand.u32 %v2100, 4294901760
        %2102 = vmatprep.subr.mxu0 %v2101
        %v2103 = vand.u32 %v1802, 4294901760
        %v2104 = vsub.f32 %v1802, %v2103
        %v2105 = vand.u32 %v2104, 4294901760
        %v2106 = vsub.f32 %v2104, %v2105
        %v2107 = vand.u32 %v2106, 4294901760
        %2108 = vmatpush1.msra.mxu0 %v2107
        %v2109 = vand.u32 %v1805, 4294901760
        %v2110 = vsub.f32 %v1805, %v2109
        %v2111 = vand.u32 %v2110, 4294901760
        %v2112 = vsub.f32 %v2110, %v2111
        %v2113 = vand.u32 %v2112, 4294901760
        %2114 = vmatprep.subr.mxu0 %v2113
        %v2115 = vand.u32 %v1804, 4294901760
        %v2116 = vsub.f32 %v1804, %v2115
        %v2117 = vand.u32 %v2116, 4294901760
        %v2118 = vsub.f32 %v2116, %v2117
        %v2119 = vand.u32 %v2118, 4294901760
        %2120 = vmatpush1.msra.mxu0 %v2119
        %v2121 = vand.u32 %v1807, 4294901760
        %v2122 = vsub.f32 %v1807, %v2121
        %v2123 = vand.u32 %v2122, 4294901760
        %v2124 = vsub.f32 %v2122, %v2123
        %v2125 = vand.u32 %v2124, 4294901760
        %2126 = vmatprep.subr.mxu0 %v2125
        %v2127 = vand.u32 %v1806, 4294901760
        %v2128 = vsub.f32 %v1806, %v2127
        %v2129 = vand.u32 %v2128, 4294901760
        %v2130 = vsub.f32 %v2128, %v2129
        %v2131 = vand.u32 %v2130, 4294901760
        %2132 = vmatpush1.msra.mxu0 %v2131
        %v2133 = vand.u32 %v1809, 4294901760
        %v2134 = vsub.f32 %v1809, %v2133
        %v2135 = vand.u32 %v2134, 4294901760
        %v2136 = vsub.f32 %v2134, %v2135
        %v2137 = vand.u32 %v2136, 4294901760
        %2138 = vmatprep.subr.mxu0 %v2137
        %v2139 = vand.u32 %v1808, 4294901760
        %v2140 = vsub.f32 %v1808, %v2139
        %v2141 = vand.u32 %v2140, 4294901760
        %v2142 = vsub.f32 %v2140, %v2141
        %v2143 = vand.u32 %v2142, 4294901760
        %2144 = vmatpush1.msra.mxu0 %v2143
        %v2145 = vand.u32 %v1811, 4294901760
        %v2146 = vsub.f32 %v1811, %v2145
        %v2147 = vand.u32 %v2146, 4294901760
        %v2148 = vsub.f32 %v2146, %v2147
        %v2149 = vand.u32 %v2148, 4294901760
        %2150 = vmatprep.subr.mxu0 %v2149
        %v2151 = vand.u32 %v1810, 4294901760
        %v2152 = vsub.f32 %v1810, %v2151
        %v2153 = vand.u32 %v2152, 4294901760
        %v2154 = vsub.f32 %v2152, %v2153
        %v2155 = vand.u32 %v2154, 4294901760
        %2156 = vmatpush1.msra.mxu0 %v2155
        %v2157 = vand.u32 %v1813, 4294901760
        %v2158 = vsub.f32 %v1813, %v2157
        %v2159 = vand.u32 %v2158, 4294901760
        %v2160 = vsub.f32 %v2158, %v2159
        %v2161 = vand.u32 %v2160, 4294901760
        %2162 = vmatprep.subr.mxu0 %v2161
        %v2163 = vand.u32 %v1812, 4294901760
        %v2164 = vsub.f32 %v1812, %v2163
        %v2165 = vand.u32 %v2164, 4294901760
        %v2166 = vsub.f32 %v2164, %v2165
        %v2167 = vand.u32 %v2166, 4294901760
        %2168 = vmatpush1.msra.mxu0 %v2167
        %v2169 = vand.u32 %v1815, 4294901760
        %v2170 = vsub.f32 %v1815, %v2169
        %v2171 = vand.u32 %v2170, 4294901760
        %v2172 = vsub.f32 %v2170, %v2171
        %v2173 = vand.u32 %v2172, 4294901760
        %2174 = vmatprep.subr.mxu0 %v2173
        %v2175 = vand.u32 %v1814, 4294901760
        %v2176 = vsub.f32 %v1814, %v2175
        %v2177 = vand.u32 %v2176, 4294901760
        %v2178 = vsub.f32 %v2176, %v2177
        %v2179 = vand.u32 %v2178, 4294901760
        %2180 = vmatpush1.msra.mxu0 %v2179
        %v2181 = vand.u32 %v1817, 4294901760
        %v2182 = vsub.f32 %v1817, %v2181
        %v2183 = vand.u32 %v2182, 4294901760
        %v2184 = vsub.f32 %v2182, %v2183
        %v2185 = vand.u32 %v2184, 4294901760
        %2186 = vmatprep.subr.mxu0 %v2185
        %v2187 = vand.u32 %v1816, 4294901760
        %v2188 = vsub.f32 %v1816, %v2187
        %v2189 = vand.u32 %v2188, 4294901760
        %v2190 = vsub.f32 %v2188, %v2189
        %v2191 = vand.u32 %v2190, 4294901760
        %2192 = vmatpush1.msra.mxu0 %v2191
        %v2193 = vand.u32 %v1819, 4294901760
        %v2194 = vsub.f32 %v1819, %v2193
        %v2195 = vand.u32 %v2194, 4294901760
        %v2196 = vsub.f32 %v2194, %v2195
        %v2197 = vand.u32 %v2196, 4294901760
        %2198 = vmatprep.subr.mxu0 %v2197
        %v2199 = vand.u32 %v1818, 4294901760
        %v2200 = vsub.f32 %v1818, %v2199
        %v2201 = vand.u32 %v2200, 4294901760
        %v2202 = vsub.f32 %v2200, %v2201
        %v2203 = vand.u32 %v2202, 4294901760
        %2204 = vmatpush1.msra.mxu0 %v2203
        %v2205 = vand.u32 %v1821, 4294901760
        %v2206 = vsub.f32 %v1821, %v2205
        %v2207 = vand.u32 %v2206, 4294901760
        %v2208 = vsub.f32 %v2206, %v2207
        %v2209 = vand.u32 %v2208, 4294901760
        %2210 = vmatprep.subr.mxu0 %v2209
        %v2211 = vand.u32 %v1820, 4294901760
        %v2212 = vsub.f32 %v1820, %v2211
        %v2213 = vand.u32 %v2212, 4294901760
        %v2214 = vsub.f32 %v2212, %v2213
        %v2215 = vand.u32 %v2214, 4294901760
        %2216 = vmatpush1.msra.mxu0 %v2215
        %v2217 = vand.u32 %v1823, 4294901760
        %v2218 = vsub.f32 %v1823, %v2217
        %v2219 = vand.u32 %v2218, 4294901760
        %v2220 = vsub.f32 %v2218, %v2219
        %v2221 = vand.u32 %v2220, 4294901760
        %2222 = vmatprep.subr.mxu0 %v2221
        %v2223 = vand.u32 %v1822, 4294901760
        %v2224 = vsub.f32 %v1822, %v2223
        %v2225 = vand.u32 %v2224, 4294901760
        %v2226 = vsub.f32 %v2224, %v2225
        %v2227 = vand.u32 %v2226, 4294901760
        %2228 = vmatpush1.msra.mxu0 %v2227
        %v2229 = vand.u32 %v1825, 4294901760
        %v2230 = vsub.f32 %v1825, %v2229
        %v2231 = vand.u32 %v2230, 4294901760
        %v2232 = vsub.f32 %v2230, %v2231
        %v2233 = vand.u32 %v2232, 4294901760
        %2234 = vmatprep.subr.mxu0 %v2233
        %v2235 = vand.u32 %v1824, 4294901760
        %v2236 = vsub.f32 %v1824, %v2235
        %v2237 = vand.u32 %v2236, 4294901760
        %v2238 = vsub.f32 %v2236, %v2237
        %v2239 = vand.u32 %v2238, 4294901760
        %2240 = vmatpush1.msra.mxu0 %v2239
        %v2241 = vand.u32 %v1827, 4294901760
        %v2242 = vsub.f32 %v1827, %v2241
        %v2243 = vand.u32 %v2242, 4294901760
        %v2244 = vsub.f32 %v2242, %v2243
        %v2245 = vand.u32 %v2244, 4294901760
        %2246 = vmatprep.subr.mxu0 %v2245
        %v2247 = vand.u32 %v1826, 4294901760
        %v2248 = vsub.f32 %v1826, %v2247
        %v2249 = vand.u32 %v2248, 4294901760
        %v2250 = vsub.f32 %v2248, %v2249
        %v2251 = vand.u32 %v2250, 4294901760
        %2252 = vmatpush1.msra.mxu0 %v2251
        %v2253 = vand.u32 %v1829, 4294901760
        %v2254 = vsub.f32 %v1829, %v2253
        %v2255 = vand.u32 %v2254, 4294901760
        %v2256 = vsub.f32 %v2254, %v2255
        %v2257 = vand.u32 %v2256, 4294901760
        %2258 = vmatprep.subr.mxu0 %v2257
        %v2259 = vand.u32 %v1828, 4294901760
        %v2260 = vsub.f32 %v1828, %v2259
        %v2261 = vand.u32 %v2260, 4294901760
        %v2262 = vsub.f32 %v2260, %v2261
        %v2263 = vand.u32 %v2262, 4294901760
        %2264 = vmatpush1.msra.mxu0 %v2263
        %v2265 = vand.u32 %v1831, 4294901760
        %v2266 = vsub.f32 %v1831, %v2265
        %v2267 = vand.u32 %v2266, 4294901760
        %v2268 = vsub.f32 %v2266, %v2267
        %v2269 = vand.u32 %v2268, 4294901760
        %2270 = vmatprep.subr.mxu0 %v2269
        %v2271 = vand.u32 %v1830, 4294901760
        %v2272 = vsub.f32 %v1830, %v2271
        %v2273 = vand.u32 %v2272, 4294901760
        %v2274 = vsub.f32 %v2272, %v2273
        %v2275 = vand.u32 %v2274, 4294901760
        %2276 = vmatpush1.msra.mxu0 %v2275
        %v2277 = vand.u32 %v1833, 4294901760
        %v2278 = vsub.f32 %v1833, %v2277
        %v2279 = vand.u32 %v2278, 4294901760
        %v2280 = vsub.f32 %v2278, %v2279
        %v2281 = vand.u32 %v2280, 4294901760
        %2282 = vmatprep.subr.mxu0 %v2281
        %v2283 = vand.u32 %v1832, 4294901760
        %v2284 = vsub.f32 %v1832, %v2283
        %v2285 = vand.u32 %v2284, 4294901760
        %v2286 = vsub.f32 %v2284, %v2285
        %v2287 = vand.u32 %v2286, 4294901760
        %2288 = vmatpush1.msra.mxu0 %v2287
        %v2289 = vand.u32 %v1835, 4294901760
        %v2290 = vsub.f32 %v1835, %v2289
        %v2291 = vand.u32 %v2290, 4294901760
        %v2292 = vsub.f32 %v2290, %v2291
        %v2293 = vand.u32 %v2292, 4294901760
        %2294 = vmatprep.subr.mxu0 %v2293
        %v2295 = vand.u32 %v1834, 4294901760
        %v2296 = vsub.f32 %v1834, %v2295
        %v2297 = vand.u32 %v2296, 4294901760
        %v2298 = vsub.f32 %v2296, %v2297
        %v2299 = vand.u32 %v2298, 4294901760
        %2300 = vmatpush1.msra.mxu0 %v2299
        %v2301 = vand.u32 %v1837, 4294901760
        %v2302 = vsub.f32 %v1837, %v2301
        %v2303 = vand.u32 %v2302, 4294901760
        %v2304 = vsub.f32 %v2302, %v2303
        %v2305 = vand.u32 %v2304, 4294901760
        %2306 = vmatprep.subr.mxu0 %v2305
        %v2307 = vand.u32 %v1836, 4294901760
        %v2308 = vsub.f32 %v1836, %v2307
        %v2309 = vand.u32 %v2308, 4294901760
        %v2310 = vsub.f32 %v2308, %v2309
        %v2311 = vand.u32 %v2310, 4294901760
        %2312 = vmatpush1.msra.mxu0 %v2311
        %v2313 = vand.u32 %v1839, 4294901760
        %v2314 = vsub.f32 %v1839, %v2313
        %v2315 = vand.u32 %v2314, 4294901760
        %v2316 = vsub.f32 %v2314, %v2315
        %v2317 = vand.u32 %v2316, 4294901760
        %2318 = vmatprep.subr.mxu0 %v2317
        %v2319 = vand.u32 %v1838, 4294901760
        %v2320 = vsub.f32 %v1838, %v2319
        %v2321 = vand.u32 %v2320, 4294901760
        %v2322 = vsub.f32 %v2320, %v2321
        %v2323 = vand.u32 %v2322, 4294901760
        %2324 = vmatpush1.msra.mxu0 %v2323
        %v2325 = vand.u32 %v1841, 4294901760
        %v2326 = vsub.f32 %v1841, %v2325
        %v2327 = vand.u32 %v2326, 4294901760
        %v2328 = vsub.f32 %v2326, %v2327
        %v2329 = vand.u32 %v2328, 4294901760
        %2330 = vmatprep.subr.mxu0 %v2329
        %v2331 = vand.u32 %v1840, 4294901760
        %v2332 = vsub.f32 %v1840, %v2331
        %v2333 = vand.u32 %v2332, 4294901760
        %v2334 = vsub.f32 %v2332, %v2333
        %v2335 = vand.u32 %v2334, 4294901760
        %2336 = vmatpush1.msra.mxu0 %v2335
        %v2337 = vand.u32 %v1843, 4294901760
        %v2338 = vsub.f32 %v1843, %v2337
        %v2339 = vand.u32 %v2338, 4294901760
        %v2340 = vsub.f32 %v2338, %v2339
        %v2341 = vand.u32 %v2340, 4294901760
        %2342 = vmatprep.subr.mxu0 %v2341
        %v2343 = vand.u32 %v1842, 4294901760
        %v2344 = vsub.f32 %v1842, %v2343
        %v2345 = vand.u32 %v2344, 4294901760
        %v2346 = vsub.f32 %v2344, %v2345
        %v2347 = vand.u32 %v2346, 4294901760
        %2348 = vmatpush1.msra.mxu0 %v2347
        %v2349 = vand.u32 %v1845, 4294901760
        %v2350 = vsub.f32 %v1845, %v2349
        %v2351 = vand.u32 %v2350, 4294901760
        %v2352 = vsub.f32 %v2350, %v2351
        %v2353 = vand.u32 %v2352, 4294901760
        %2354 = vmatprep.subr.mxu0 %v2353
        %v2355 = vand.u32 %v1844, 4294901760
        %v2356 = vsub.f32 %v1844, %v2355
        %v2357 = vand.u32 %v2356, 4294901760
        %v2358 = vsub.f32 %v2356, %v2357
        %v2359 = vand.u32 %v2358, 4294901760
        %2360 = vmatpush1.msra.mxu0 %v2359
        %v2361 = vand.u32 %v1847, 4294901760
        %v2362 = vsub.f32 %v1847, %v2361
        %v2363 = vand.u32 %v2362, 4294901760
        %v2364 = vsub.f32 %v2362, %v2363
        %v2365 = vand.u32 %v2364, 4294901760
        %2366 = vmatprep.subr.mxu0 %v2365
        %v2367 = vand.u32 %v1846, 4294901760
        %v2368 = vsub.f32 %v1846, %v2367
        %v2369 = vand.u32 %v2368, 4294901760
        %v2370 = vsub.f32 %v2368, %v2369
        %v2371 = vand.u32 %v2370, 4294901760
        %2372 = vmatpush1.msra.mxu0 %v2371
        %v2373 = vand.u32 %v1849, 4294901760
        %v2374 = vsub.f32 %v1849, %v2373
        %v2375 = vand.u32 %v2374, 4294901760
        %v2376 = vsub.f32 %v2374, %v2375
        %v2377 = vand.u32 %v2376, 4294901760
        %2378 = vmatprep.subr.mxu0 %v2377
        %v2379 = vand.u32 %v1848, 4294901760
        %v2380 = vsub.f32 %v1848, %v2379
        %v2381 = vand.u32 %v2380, 4294901760
        %v2382 = vsub.f32 %v2380, %v2381
        %v2383 = vand.u32 %v2382, 4294901760
        %2384 = vmatpush1.msra.mxu0 %v2383
        %v2385 = vand.u32 %v1851, 4294901760
        %v2386 = vsub.f32 %v1851, %v2385
        %v2387 = vand.u32 %v2386, 4294901760
        %v2388 = vsub.f32 %v2386, %v2387
        %v2389 = vand.u32 %v2388, 4294901760
        %2390 = vmatprep.subr.mxu0 %v2389
        %v2391 = vand.u32 %v1850, 4294901760
        %v2392 = vsub.f32 %v1850, %v2391
        %v2393 = vand.u32 %v2392, 4294901760
        %v2394 = vsub.f32 %v2392, %v2393
        %v2395 = vand.u32 %v2394, 4294901760
        %2396 = vmatpush1.msra.mxu0 %v2395
        %v2397 = vand.u32 %v1785, 4294901760
        %2398 = vmatprep.mubr.f32.mxu0 %v2397
        %v2399 = vand.u32 %v1784, 4294901760
        %2400 = vmatmul.mubr.f32.gmra.mrb[0].mxu0 %v2399
        %v2401 = vpop.f32.mrb[0].mxu0
        %v2402 = vadd.f32 %v1993, %v2401
        %v2403 = vpop.f32.mrb[0].mxu0
        %v2404 = vadd.f32 %v1995, %v2403
        %v2405 = vand.u32 %v1787, 4294901760
        %2406 = vmatprep.mubr.f32.mxu0 %v2405
        %v2407 = vand.u32 %v1786, 4294901760
        %2408 = vmatmul.mubr.f32.gmra.mrb[0].mxu0 %v2407
        %v2409 = vpop.f32.mrb[0].mxu0
        %v2410 = vadd.f32 %v2009, %v2409
        %v2411 = vpop.f32.mrb[0].mxu0
        %v2412 = vadd.f32 %v2011, %v2411
        %2413 = vdwg.mxu0
        %v2414 = vand.u32 %v1789, 4294901760
        %v2415 = vsub.f32 %v1789, %v2414
        %2416 = vmatprep.subr.mxu0 %v2415
        %v2417 = vand.u32 %v1788, 4294901760
        %v2418 = vsub.f32 %v1788, %v2417
        %2419 = vmatpush1.msra.mxu0 %v2418
        %v2420 = vand.u32 %v1791, 4294901760
        %v2421 = vsub.f32 %v1791, %v2420
        %2422 = vmatprep.subr.mxu0 %v2421
        %v2423 = vand.u32 %v1790, 4294901760
        %v2424 = vsub.f32 %v1790, %v2423
        %2425 = vmatpush1.msra.mxu0 %v2424
        %v2426 = vand.u32 %v1793, 4294901760
        %v2427 = vsub.f32 %v1793, %v2426
        %2428 = vmatprep.subr.mxu0 %v2427
        %v2429 = vand.u32 %v1792, 4294901760
        %v2430 = vsub.f32 %v1792, %v2429
        %2431 = vmatpush1.msra.mxu0 %v2430
        %v2432 = vand.u32 %v1795, 4294901760
        %v2433 = vsub.f32 %v1795, %v2432
        %2434 = vmatprep.subr.mxu0 %v2433
        %v2435 = vand.u32 %v1794, 4294901760
        %v2436 = vsub.f32 %v1794, %v2435
        %2437 = vmatpush1.msra.mxu0 %v2436
        %v2438 = vand.u32 %v1797, 4294901760
        %v2439 = vsub.f32 %v1797, %v2438
        %2440 = vmatprep.subr.mxu0 %v2439
        %v2441 = vand.u32 %v1796, 4294901760
        %v2442 = vsub.f32 %v1796, %v2441
        %2443 = vmatpush1.msra.mxu0 %v2442
        %v2444 = vand.u32 %v1799, 4294901760
        %v2445 = vsub.f32 %v1799, %v2444
        %2446 = vmatprep.subr.mxu0 %v2445
        %v2447 = vand.u32 %v1798, 4294901760
        %v2448 = vsub.f32 %v1798, %v2447
        %2449 = vmatpush1.msra.mxu0 %v2448
        %v2450 = vand.u32 %v1801, 4294901760
        %v2451 = vsub.f32 %v1801, %v2450
        %2452 = vmatprep.subr.mxu0 %v2451
        %v2453 = vand.u32 %v1800, 4294901760
        %v2454 = vsub.f32 %v1800, %v2453
        %2455 = vmatpush1.msra.mxu0 %v2454
        %v2456 = vand.u32 %v1803, 4294901760
        %v2457 = vsub.f32 %v1803, %v2456
        %2458 = vmatprep.subr.mxu0 %v2457
        %v2459 = vand.u32 %v1802, 4294901760
        %v2460 = vsub.f32 %v1802, %v2459
        %2461 = vmatpush1.msra.mxu0 %v2460
        %v2462 = vand.u32 %v1805, 4294901760
        %v2463 = vsub.f32 %v1805, %v2462
        %2464 = vmatprep.subr.mxu0 %v2463
        %v2465 = vand.u32 %v1804, 4294901760
        %v2466 = vsub.f32 %v1804, %v2465
        %2467 = vmatpush1.msra.mxu0 %v2466
        %v2468 = vand.u32 %v1807, 4294901760
        %v2469 = vsub.f32 %v1807, %v2468
        %2470 = vmatprep.subr.mxu0 %v2469
        %v2471 = vand.u32 %v1806, 4294901760
        %v2472 = vsub.f32 %v1806, %v2471
        %2473 = vmatpush1.msra.mxu0 %v2472
        %v2474 = vand.u32 %v1809, 4294901760
        %v2475 = vsub.f32 %v1809, %v2474
        %2476 = vmatprep.subr.mxu0 %v2475
        %v2477 = vand.u32 %v1808, 4294901760
        %v2478 = vsub.f32 %v1808, %v2477
        %2479 = vmatpush1.msra.mxu0 %v2478
        %v2480 = vand.u32 %v1811, 4294901760
        %v2481 = vsub.f32 %v1811, %v2480
        %2482 = vmatprep.subr.mxu0 %v2481
        %v2483 = vand.u32 %v1810, 4294901760
        %v2484 = vsub.f32 %v1810, %v2483
        %2485 = vmatpush1.msra.mxu0 %v2484
        %v2486 = vand.u32 %v1813, 4294901760
        %v2487 = vsub.f32 %v1813, %v2486
        %2488 = vmatprep.subr.mxu0 %v2487
        %v2489 = vand.u32 %v1812, 4294901760
        %v2490 = vsub.f32 %v1812, %v2489
        %2491 = vmatpush1.msra.mxu0 %v2490
        %v2492 = vand.u32 %v1815, 4294901760
        %v2493 = vsub.f32 %v1815, %v2492
        %2494 = vmatprep.subr.mxu0 %v2493
        %v2495 = vand.u32 %v1814, 4294901760
        %v2496 = vsub.f32 %v1814, %v2495
        %2497 = vmatpush1.msra.mxu0 %v2496
        %v2498 = vand.u32 %v1817, 4294901760
        %v2499 = vsub.f32 %v1817, %v2498
        %2500 = vmatprep.subr.mxu0 %v2499
        %v2501 = vand.u32 %v1816, 4294901760
        %v2502 = vsub.f32 %v1816, %v2501
        %2503 = vmatpush1.msra.mxu0 %v2502
        %v2504 = vand.u32 %v1819, 4294901760
        %v2505 = vsub.f32 %v1819, %v2504
        %2506 = vmatprep.subr.mxu0 %v2505
        %v2507 = vand.u32 %v1818, 4294901760
        %v2508 = vsub.f32 %v1818, %v2507
        %2509 = vmatpush1.msra.mxu0 %v2508
        %v2510 = vand.u32 %v1821, 4294901760
        %v2511 = vsub.f32 %v1821, %v2510
        %2512 = vmatprep.subr.mxu0 %v2511
        %v2513 = vand.u32 %v1820, 4294901760
        %v2514 = vsub.f32 %v1820, %v2513
        %2515 = vmatpush1.msra.mxu0 %v2514
        %v2516 = vand.u32 %v1823, 4294901760
        %v2517 = vsub.f32 %v1823, %v2516
        %2518 = vmatprep.subr.mxu0 %v2517
        %v2519 = vand.u32 %v1822, 4294901760
        %v2520 = vsub.f32 %v1822, %v2519
        %2521 = vmatpush1.msra.mxu0 %v2520
        %v2522 = vand.u32 %v1825, 4294901760
        %v2523 = vsub.f32 %v1825, %v2522
        %2524 = vmatprep.subr.mxu0 %v2523
        %v2525 = vand.u32 %v1824, 4294901760
        %v2526 = vsub.f32 %v1824, %v2525
        %2527 = vmatpush1.msra.mxu0 %v2526
        %v2528 = vand.u32 %v1827, 4294901760
        %v2529 = vsub.f32 %v1827, %v2528
        %2530 = vmatprep.subr.mxu0 %v2529
        %v2531 = vand.u32 %v1826, 4294901760
        %v2532 = vsub.f32 %v1826, %v2531
        %2533 = vmatpush1.msra.mxu0 %v2532
        %v2534 = vand.u32 %v1829, 4294901760
        %v2535 = vsub.f32 %v1829, %v2534
        %2536 = vmatprep.subr.mxu0 %v2535
        %v2537 = vand.u32 %v1828, 4294901760
        %v2538 = vsub.f32 %v1828, %v2537
        %2539 = vmatpush1.msra.mxu0 %v2538
        %v2540 = vand.u32 %v1831, 4294901760
        %v2541 = vsub.f32 %v1831, %v2540
        %2542 = vmatprep.subr.mxu0 %v2541
        %v2543 = vand.u32 %v1830, 4294901760
        %v2544 = vsub.f32 %v1830, %v2543
        %2545 = vmatpush1.msra.mxu0 %v2544
        %v2546 = vand.u32 %v1833, 4294901760
        %v2547 = vsub.f32 %v1833, %v2546
        %2548 = vmatprep.subr.mxu0 %v2547
        %v2549 = vand.u32 %v1832, 4294901760
        %v2550 = vsub.f32 %v1832, %v2549
        %2551 = vmatpush1.msra.mxu0 %v2550
        %v2552 = vand.u32 %v1835, 4294901760
        %v2553 = vsub.f32 %v1835, %v2552
        %2554 = vmatprep.subr.mxu0 %v2553
        %v2555 = vand.u32 %v1834, 4294901760
        %v2556 = vsub.f32 %v1834, %v2555
        %2557 = vmatpush1.msra.mxu0 %v2556
        %v2558 = vand.u32 %v1837, 4294901760
        %v2559 = vsub.f32 %v1837, %v2558
        %2560 = vmatprep.subr.mxu0 %v2559
        %v2561 = vand.u32 %v1836, 4294901760
        %v2562 = vsub.f32 %v1836, %v2561
        %2563 = vmatpush1.msra.mxu0 %v2562
        %v2564 = vand.u32 %v1839, 4294901760
        %v2565 = vsub.f32 %v1839, %v2564
        %2566 = vmatprep.subr.mxu0 %v2565
        %v2567 = vand.u32 %v1838, 4294901760
        %v2568 = vsub.f32 %v1838, %v2567
        %2569 = vmatpush1.msra.mxu0 %v2568
        %v2570 = vand.u32 %v1841, 4294901760
        %v2571 = vsub.f32 %v1841, %v2570
        %2572 = vmatprep.subr.mxu0 %v2571
        %v2573 = vand.u32 %v1840, 4294901760
        %v2574 = vsub.f32 %v1840, %v2573
        %2575 = vmatpush1.msra.mxu0 %v2574
        %v2576 = vand.u32 %v1843, 4294901760
        %v2577 = vsub.f32 %v1843, %v2576
        %2578 = vmatprep.subr.mxu0 %v2577
        %v2579 = vand.u32 %v1842, 4294901760
        %v2580 = vsub.f32 %v1842, %v2579
        %2581 = vmatpush1.msra.mxu0 %v2580
        %v2582 = vand.u32 %v1845, 4294901760
        %v2583 = vsub.f32 %v1845, %v2582
        %2584 = vmatprep.subr.mxu0 %v2583
        %v2585 = vand.u32 %v1844, 4294901760
        %v2586 = vsub.f32 %v1844, %v2585
        %2587 = vmatpush1.msra.mxu0 %v2586
        %v2588 = vand.u32 %v1847, 4294901760
        %v2589 = vsub.f32 %v1847, %v2588
        %2590 = vmatprep.subr.mxu0 %v2589
        %v2591 = vand.u32 %v1846, 4294901760
        %v2592 = vsub.f32 %v1846, %v2591
        %2593 = vmatpush1.msra.mxu0 %v2592
        %v2594 = vand.u32 %v1849, 4294901760
        %v2595 = vsub.f32 %v1849, %v2594
        %2596 = vmatprep.subr.mxu0 %v2595
        %v2597 = vand.u32 %v1848, 4294901760
        %v2598 = vsub.f32 %v1848, %v2597
        %2599 = vmatpush1.msra.mxu0 %v2598
        %v2600 = vand.u32 %v1851, 4294901760
        %v2601 = vsub.f32 %v1851, %v2600
        %2602 = vmatprep.subr.mxu0 %v2601
        %v2603 = vand.u32 %v1850, 4294901760
        %v2604 = vsub.f32 %v1850, %v2603
        %2605 = vmatpush1.msra.mxu0 %v2604
        %v2606 = vand.u32 %v1785, 4294901760
        %v2607 = vsub.f32 %v1785, %v2606
        %2608 = vmatprep.mubr.f32.mxu0 %v2607
        %v2609 = vand.u32 %v1784, 4294901760
        %v2610 = vsub.f32 %v1784, %v2609
        %2611 = vmatmul.mubr.f32.gmra.mrb[0].mxu0 %v2610
        %v2612 = vpop.f32.mrb[0].mxu0
        %v2613 = vadd.f32 %v2402, %v2612
        %v2614 = vpop.f32.mrb[0].mxu0
        %v2615 = vadd.f32 %v2404, %v2614
        %v2616 = vand.u32 %v1787, 4294901760
        %v2617 = vsub.f32 %v1787, %v2616
        %2618 = vmatprep.mubr.f32.mxu0 %v2617
        %v2619 = vand.u32 %v1786, 4294901760
        %v2620 = vsub.f32 %v1786, %v2619
        %2621 = vmatmul.mubr.f32.gmra.mrb[0].mxu0 %v2620
        %v2622 = vpop.f32.mrb[0].mxu0
        %v2623 = vadd.f32 %v2410, %v2622
        %v2624 = vpop.f32.mrb[0].mxu0
        %v2625 = vadd.f32 %v2412, %v2624
        %2626 = vdwg.mxu0
        %v2627 = vand.u32 %v1789, 4294901760
        %2628 = vmatprep.subr.mxu0 %v2627
        %v2629 = vand.u32 %v1788, 4294901760
        %2630 = vmatpush1.msra.mxu0 %v2629
        %v2631 = vand.u32 %v1791, 4294901760
        %2632 = vmatprep.subr.mxu0 %v2631
        %v2633 = vand.u32 %v1790, 4294901760
        %2634 = vmatpush1.msra.mxu0 %v2633
        %v2635 = vand.u32 %v1793, 4294901760
        %2636 = vmatprep.subr.mxu0 %v2635
        %v2637 = vand.u32 %v1792, 4294901760
        %2638 = vmatpush1.msra.mxu0 %v2637
        %v2639 = vand.u32 %v1795, 4294901760
        %2640 = vmatprep.subr.mxu0 %v2639
        %v2641 = vand.u32 %v1794, 4294901760
        %2642 = vmatpush1.msra.mxu0 %v2641
        %v2643 = vand.u32 %v1797, 4294901760
        %2644 = vmatprep.subr.mxu0 %v2643
        %v2645 = vand.u32 %v1796, 4294901760
        %2646 = vmatpush1.msra.mxu0 %v2645
        %v2647 = vand.u32 %v1799, 4294901760
        %2648 = vmatprep.subr.mxu0 %v2647
        %v2649 = vand.u32 %v1798, 4294901760
        %2650 = vmatpush1.msra.mxu0 %v2649
        %v2651 = vand.u32 %v1801, 4294901760
        %2652 = vmatprep.subr.mxu0 %v2651
        %v2653 = vand.u32 %v1800, 4294901760
        %2654 = vmatpush1.msra.mxu0 %v2653
        %v2655 = vand.u32 %v1803, 4294901760
        %2656 = vmatprep.subr.mxu0 %v2655
        %v2657 = vand.u32 %v1802, 4294901760
        %2658 = vmatpush1.msra.mxu0 %v2657
        %v2659 = vand.u32 %v1805, 4294901760
        %2660 = vmatprep.subr.mxu0 %v2659
        %v2661 = vand.u32 %v1804, 4294901760
        %2662 = vmatpush1.msra.mxu0 %v2661
        %v2663 = vand.u32 %v1807, 4294901760
        %2664 = vmatprep.subr.mxu0 %v2663
        %v2665 = vand.u32 %v1806, 4294901760
        %2666 = vmatpush1.msra.mxu0 %v2665
        %v2667 = vand.u32 %v1809, 4294901760
        %2668 = vmatprep.subr.mxu0 %v2667
        %v2669 = vand.u32 %v1808, 4294901760
        %2670 = vmatpush1.msra.mxu0 %v2669
        %v2671 = vand.u32 %v1811, 4294901760
        %2672 = vmatprep.subr.mxu0 %v2671
        %v2673 = vand.u32 %v1810, 4294901760
        %2674 = vmatpush1.msra.mxu0 %v2673
        %v2675 = vand.u32 %v1813, 4294901760
        %2676 = vmatprep.subr.mxu0 %v2675
        %v2677 = vand.u32 %v1812, 4294901760
        %2678 = vmatpush1.msra.mxu0 %v2677
        %v2679 = vand.u32 %v1815, 4294901760
        %2680 = vmatprep.subr.mxu0 %v2679
        %v2681 = vand.u32 %v1814, 4294901760
        %2682 = vmatpush1.msra.mxu0 %v2681
        %v2683 = vand.u32 %v1817, 4294901760
        %2684 = vmatprep.subr.mxu0 %v2683
        %v2685 = vand.u32 %v1816, 4294901760
        %2686 = vmatpush1.msra.mxu0 %v2685
        %v2687 = vand.u32 %v1819, 4294901760
        %2688 = vmatprep.subr.mxu0 %v2687
        %v2689 = vand.u32 %v1818, 4294901760
        %2690 = vmatpush1.msra.mxu0 %v2689
        %v2691 = vand.u32 %v1821, 4294901760
        %2692 = vmatprep.subr.mxu0 %v2691
        %v2693 = vand.u32 %v1820, 4294901760
        %2694 = vmatpush1.msra.mxu0 %v2693
        %v2695 = vand.u32 %v1823, 4294901760
        %2696 = vmatprep.subr.mxu0 %v2695
        %v2697 = vand.u32 %v1822, 4294901760
        %2698 = vmatpush1.msra.mxu0 %v2697
        %v2699 = vand.u32 %v1825, 4294901760
        %2700 = vmatprep.subr.mxu0 %v2699
        %v2701 = vand.u32 %v1824, 4294901760
        %2702 = vmatpush1.msra.mxu0 %v2701
        %v2703 = vand.u32 %v1827, 4294901760
        %2704 = vmatprep.subr.mxu0 %v2703
        %v2705 = vand.u32 %v1826, 4294901760
        %2706 = vmatpush1.msra.mxu0 %v2705
        %v2707 = vand.u32 %v1829, 4294901760
        %2708 = vmatprep.subr.mxu0 %v2707
        %v2709 = vand.u32 %v1828, 4294901760
        %2710 = vmatpush1.msra.mxu0 %v2709
        %v2711 = vand.u32 %v1831, 4294901760
        %2712 = vmatprep.subr.mxu0 %v2711
        %v2713 = vand.u32 %v1830, 4294901760
        %2714 = vmatpush1.msra.mxu0 %v2713
        %v2715 = vand.u32 %v1833, 4294901760
        %2716 = vmatprep.subr.mxu0 %v2715
        %v2717 = vand.u32 %v1832, 4294901760
        %2718 = vmatpush1.msra.mxu0 %v2717
        %v2719 = vand.u32 %v1835, 4294901760
        %2720 = vmatprep.subr.mxu0 %v2719
        %v2721 = vand.u32 %v1834, 4294901760
        %2722 = vmatpush1.msra.mxu0 %v2721
        %v2723 = vand.u32 %v1837, 4294901760
        %2724 = vmatprep.subr.mxu0 %v2723
        %v2725 = vand.u32 %v1836, 4294901760
        %2726 = vmatpush1.msra.mxu0 %v2725
        %v2727 = vand.u32 %v1839, 4294901760
        %2728 = vmatprep.subr.mxu0 %v2727
        %v2729 = vand.u32 %v1838, 4294901760
        %2730 = vmatpush1.msra.mxu0 %v2729
        %v2731 = vand.u32 %v1841, 4294901760
        %2732 = vmatprep.subr.mxu0 %v2731
        %v2733 = vand.u32 %v1840, 4294901760
        %2734 = vmatpush1.msra.mxu0 %v2733
        %v2735 = vand.u32 %v1843, 4294901760
        %2736 = vmatprep.subr.mxu0 %v2735
        %v2737 = vand.u32 %v1842, 4294901760
        %2738 = vmatpush1.msra.mxu0 %v2737
        %v2739 = vand.u32 %v1845, 4294901760
        %2740 = vmatprep.subr.mxu0 %v2739
        %v2741 = vand.u32 %v1844, 4294901760
        %2742 = vmatpush1.msra.mxu0 %v2741
        %v2743 = vand.u32 %v1847, 4294901760
        %2744 = vmatprep.subr.mxu0 %v2743
        %v2745 = vand.u32 %v1846, 4294901760
        %2746 = vmatpush1.msra.mxu0 %v2745
        %v2747 = vand.u32 %v1849, 4294901760
        %2748 = vmatprep.subr.mxu0 %v2747
        %v2749 = vand.u32 %v1848, 4294901760
        %2750 = vmatpush1.msra.mxu0 %v2749
        %v2751 = vand.u32 %v1851, 4294901760
        %2752 = vmatprep.subr.mxu0 %v2751
        %v2753 = vand.u32 %v1850, 4294901760
        %2754 = vmatpush1.msra.mxu0 %v2753
        %v2755 = vand.u32 %v1785, 4294901760
        %v2756 = vsub.f32 %v1785, %v2755
        %v2757 = vand.u32 %v2756, 4294901760
        %2758 = vmatprep.mubr.f32.mxu0 %v2757
        %v2759 = vand.u32 %v1784, 4294901760
        %v2760 = vsub.f32 %v1784, %v2759
        %v2761 = vand.u32 %v2760, 4294901760
        %2762 = vmatmul.mubr.f32.gmra.mrb[0].mxu0 %v2761
        %v2763 = vpop.f32.mrb[0].mxu0
        %v2764 = vadd.f32 %v2613, %v2763
        %v2765 = vpop.f32.mrb[0].mxu0
        %v2766 = vadd.f32 %v2615, %v2765
        %v2767 = vand.u32 %v1787, 4294901760
        %v2768 = vsub.f32 %v1787, %v2767
        %v2769 = vand.u32 %v2768, 4294901760
        %2770 = vmatprep.mubr.f32.mxu0 %v2769
        %v2771 = vand.u32 %v1786, 4294901760
        %v2772 = vsub.f32 %v1786, %v2771
        %v2773 = vand.u32 %v2772, 4294901760
        %2774 = vmatmul.mubr.f32.gmra.mrb[0].mxu0 %v2773
        %v2775 = vpop.f32.mrb[0].mxu0
        %v2776 = vadd.f32 %v2623, %v2775
        %v2777 = vpop.f32.mrb[0].mxu0
        %v2778 = vadd.f32 %v2625, %v2777
        %2779 = vdwg.mxu0
        %v2780 = vand.u32 %v1789, 4294901760
        %v2781 = vsub.f32 %v1789, %v2780
        %v2782 = vand.u32 %v2781, 4294901760
        %2783 = vmatprep.subr.mxu0 %v2782
        %v2784 = vand.u32 %v1788, 4294901760
        %v2785 = vsub.f32 %v1788, %v2784
        %v2786 = vand.u32 %v2785, 4294901760
        %2787 = vmatpush1.msra.mxu0 %v2786
        %v2788 = vand.u32 %v1791, 4294901760
        %v2789 = vsub.f32 %v1791, %v2788
        %v2790 = vand.u32 %v2789, 4294901760
        %2791 = vmatprep.subr.mxu0 %v2790
        %v2792 = vand.u32 %v1790, 4294901760
        %v2793 = vsub.f32 %v1790, %v2792
        %v2794 = vand.u32 %v2793, 4294901760
        %2795 = vmatpush1.msra.mxu0 %v2794
        %v2796 = vand.u32 %v1793, 4294901760
        %v2797 = vsub.f32 %v1793, %v2796
        %v2798 = vand.u32 %v2797, 4294901760
        %2799 = vmatprep.subr.mxu0 %v2798
        %v2800 = vand.u32 %v1792, 4294901760
        %v2801 = vsub.f32 %v1792, %v2800
        %v2802 = vand.u32 %v2801, 4294901760
        %2803 = vmatpush1.msra.mxu0 %v2802
        %v2804 = vand.u32 %v1795, 4294901760
        %v2805 = vsub.f32 %v1795, %v2804
        %v2806 = vand.u32 %v2805, 4294901760
        %2807 = vmatprep.subr.mxu0 %v2806
        %v2808 = vand.u32 %v1794, 4294901760
        %v2809 = vsub.f32 %v1794, %v2808
        %v2810 = vand.u32 %v2809, 4294901760
        %2811 = vmatpush1.msra.mxu0 %v2810
        %v2812 = vand.u32 %v1797, 4294901760
        %v2813 = vsub.f32 %v1797, %v2812
        %v2814 = vand.u32 %v2813, 4294901760
        %2815 = vmatprep.subr.mxu0 %v2814
        %v2816 = vand.u32 %v1796, 4294901760
        %v2817 = vsub.f32 %v1796, %v2816
        %v2818 = vand.u32 %v2817, 4294901760
        %2819 = vmatpush1.msra.mxu0 %v2818
        %v2820 = vand.u32 %v1799, 4294901760
        %v2821 = vsub.f32 %v1799, %v2820
        %v2822 = vand.u32 %v2821, 4294901760
        %2823 = vmatprep.subr.mxu0 %v2822
        %v2824 = vand.u32 %v1798, 4294901760
        %v2825 = vsub.f32 %v1798, %v2824
        %v2826 = vand.u32 %v2825, 4294901760
        %2827 = vmatpush1.msra.mxu0 %v2826
        %v2828 = vand.u32 %v1801, 4294901760
        %v2829 = vsub.f32 %v1801, %v2828
        %v2830 = vand.u32 %v2829, 4294901760
        %2831 = vmatprep.subr.mxu0 %v2830
        %v2832 = vand.u32 %v1800, 4294901760
        %v2833 = vsub.f32 %v1800, %v2832
        %v2834 = vand.u32 %v2833, 4294901760
        %2835 = vmatpush1.msra.mxu0 %v2834
        %v2836 = vand.u32 %v1803, 4294901760
        %v2837 = vsub.f32 %v1803, %v2836
        %v2838 = vand.u32 %v2837, 4294901760
        %2839 = vmatprep.subr.mxu0 %v2838
        %v2840 = vand.u32 %v1802, 4294901760
        %v2841 = vsub.f32 %v1802, %v2840
        %v2842 = vand.u32 %v2841, 4294901760
        %2843 = vmatpush1.msra.mxu0 %v2842
        %v2844 = vand.u32 %v1805, 4294901760
        %v2845 = vsub.f32 %v1805, %v2844
        %v2846 = vand.u32 %v2845, 4294901760
        %2847 = vmatprep.subr.mxu0 %v2846
        %v2848 = vand.u32 %v1804, 4294901760
        %v2849 = vsub.f32 %v1804, %v2848
        %v2850 = vand.u32 %v2849, 4294901760
        %2851 = vmatpush1.msra.mxu0 %v2850
        %v2852 = vand.u32 %v1807, 4294901760
        %v2853 = vsub.f32 %v1807, %v2852
        %v2854 = vand.u32 %v2853, 4294901760
        %2855 = vmatprep.subr.mxu0 %v2854
        %v2856 = vand.u32 %v1806, 4294901760
        %v2857 = vsub.f32 %v1806, %v2856
        %v2858 = vand.u32 %v2857, 4294901760
        %2859 = vmatpush1.msra.mxu0 %v2858
        %v2860 = vand.u32 %v1809, 4294901760
        %v2861 = vsub.f32 %v1809, %v2860
        %v2862 = vand.u32 %v2861, 4294901760
        %2863 = vmatprep.subr.mxu0 %v2862
        %v2864 = vand.u32 %v1808, 4294901760
        %v2865 = vsub.f32 %v1808, %v2864
        %v2866 = vand.u32 %v2865, 4294901760
        %2867 = vmatpush1.msra.mxu0 %v2866
        %v2868 = vand.u32 %v1811, 4294901760
        %v2869 = vsub.f32 %v1811, %v2868
        %v2870 = vand.u32 %v2869, 4294901760
        %2871 = vmatprep.subr.mxu0 %v2870
        %v2872 = vand.u32 %v1810, 4294901760
        %v2873 = vsub.f32 %v1810, %v2872
        %v2874 = vand.u32 %v2873, 4294901760
        %2875 = vmatpush1.msra.mxu0 %v2874
        %v2876 = vand.u32 %v1813, 4294901760
        %v2877 = vsub.f32 %v1813, %v2876
        %v2878 = vand.u32 %v2877, 4294901760
        %2879 = vmatprep.subr.mxu0 %v2878
        %v2880 = vand.u32 %v1812, 4294901760
        %v2881 = vsub.f32 %v1812, %v2880
        %v2882 = vand.u32 %v2881, 4294901760
        %2883 = vmatpush1.msra.mxu0 %v2882
        %v2884 = vand.u32 %v1815, 4294901760
        %v2885 = vsub.f32 %v1815, %v2884
        %v2886 = vand.u32 %v2885, 4294901760
        %2887 = vmatprep.subr.mxu0 %v2886
        %v2888 = vand.u32 %v1814, 4294901760
        %v2889 = vsub.f32 %v1814, %v2888
        %v2890 = vand.u32 %v2889, 4294901760
        %2891 = vmatpush1.msra.mxu0 %v2890
        %v2892 = vand.u32 %v1817, 4294901760
        %v2893 = vsub.f32 %v1817, %v2892
        %v2894 = vand.u32 %v2893, 4294901760
        %2895 = vmatprep.subr.mxu0 %v2894
        %v2896 = vand.u32 %v1816, 4294901760
        %v2897 = vsub.f32 %v1816, %v2896
        %v2898 = vand.u32 %v2897, 4294901760
        %2899 = vmatpush1.msra.mxu0 %v2898
        %v2900 = vand.u32 %v1819, 4294901760
        %v2901 = vsub.f32 %v1819, %v2900
        %v2902 = vand.u32 %v2901, 4294901760
        %2903 = vmatprep.subr.mxu0 %v2902
        %v2904 = vand.u32 %v1818, 4294901760
        %v2905 = vsub.f32 %v1818, %v2904
        %v2906 = vand.u32 %v2905, 4294901760
        %2907 = vmatpush1.msra.mxu0 %v2906
        %v2908 = vand.u32 %v1821, 4294901760
        %v2909 = vsub.f32 %v1821, %v2908
        %v2910 = vand.u32 %v2909, 4294901760
        %2911 = vmatprep.subr.mxu0 %v2910
        %v2912 = vand.u32 %v1820, 4294901760
        %v2913 = vsub.f32 %v1820, %v2912
        %v2914 = vand.u32 %v2913, 4294901760
        %2915 = vmatpush1.msra.mxu0 %v2914
        %v2916 = vand.u32 %v1823, 4294901760
        %v2917 = vsub.f32 %v1823, %v2916
        %v2918 = vand.u32 %v2917, 4294901760
        %2919 = vmatprep.subr.mxu0 %v2918
        %v2920 = vand.u32 %v1822, 4294901760
        %v2921 = vsub.f32 %v1822, %v2920
        %v2922 = vand.u32 %v2921, 4294901760
        %2923 = vmatpush1.msra.mxu0 %v2922
        %v2924 = vand.u32 %v1825, 4294901760
        %v2925 = vsub.f32 %v1825, %v2924
        %v2926 = vand.u32 %v2925, 4294901760
        %2927 = vmatprep.subr.mxu0 %v2926
        %v2928 = vand.u32 %v1824, 4294901760
        %v2929 = vsub.f32 %v1824, %v2928
        %v2930 = vand.u32 %v2929, 4294901760
        %2931 = vmatpush1.msra.mxu0 %v2930
        %v2932 = vand.u32 %v1827, 4294901760
        %v2933 = vsub.f32 %v1827, %v2932
        %v2934 = vand.u32 %v2933, 4294901760
        %2935 = vmatprep.subr.mxu0 %v2934
        %v2936 = vand.u32 %v1826, 4294901760
        %v2937 = vsub.f32 %v1826, %v2936
        %v2938 = vand.u32 %v2937, 4294901760
        %2939 = vmatpush1.msra.mxu0 %v2938
        %v2940 = vand.u32 %v1829, 4294901760
        %v2941 = vsub.f32 %v1829, %v2940
        %v2942 = vand.u32 %v2941, 4294901760
        %2943 = vmatprep.subr.mxu0 %v2942
        %v2944 = vand.u32 %v1828, 4294901760
        %v2945 = vsub.f32 %v1828, %v2944
        %v2946 = vand.u32 %v2945, 4294901760
        %2947 = vmatpush1.msra.mxu0 %v2946
        %v2948 = vand.u32 %v1831, 4294901760
        %v2949 = vsub.f32 %v1831, %v2948
        %v2950 = vand.u32 %v2949, 4294901760
        %2951 = vmatprep.subr.mxu0 %v2950
        %v2952 = vand.u32 %v1830, 4294901760
        %v2953 = vsub.f32 %v1830, %v2952
        %v2954 = vand.u32 %v2953, 4294901760
        %2955 = vmatpush1.msra.mxu0 %v2954
        %v2956 = vand.u32 %v1833, 4294901760
        %v2957 = vsub.f32 %v1833, %v2956
        %v2958 = vand.u32 %v2957, 4294901760
        %2959 = vmatprep.subr.mxu0 %v2958
        %v2960 = vand.u32 %v1832, 4294901760
        %v2961 = vsub.f32 %v1832, %v2960
        %v2962 = vand.u32 %v2961, 4294901760
        %2963 = vmatpush1.msra.mxu0 %v2962
        %v2964 = vand.u32 %v1835, 4294901760
        %v2965 = vsub.f32 %v1835, %v2964
        %v2966 = vand.u32 %v2965, 4294901760
        %2967 = vmatprep.subr.mxu0 %v2966
        %v2968 = vand.u32 %v1834, 4294901760
        %v2969 = vsub.f32 %v1834, %v2968
        %v2970 = vand.u32 %v2969, 4294901760
        %2971 = vmatpush1.msra.mxu0 %v2970
        %v2972 = vand.u32 %v1837, 4294901760
        %v2973 = vsub.f32 %v1837, %v2972
        %v2974 = vand.u32 %v2973, 4294901760
        %2975 = vmatprep.subr.mxu0 %v2974
        %v2976 = vand.u32 %v1836, 4294901760
        %v2977 = vsub.f32 %v1836, %v2976
        %v2978 = vand.u32 %v2977, 4294901760
        %2979 = vmatpush1.msra.mxu0 %v2978
        %v2980 = vand.u32 %v1839, 4294901760
        %v2981 = vsub.f32 %v1839, %v2980
        %v2982 = vand.u32 %v2981, 4294901760
        %2983 = vmatprep.subr.mxu0 %v2982
        %v2984 = vand.u32 %v1838, 4294901760
        %v2985 = vsub.f32 %v1838, %v2984
        %v2986 = vand.u32 %v2985, 4294901760
        %2987 = vmatpush1.msra.mxu0 %v2986
        %v2988 = vand.u32 %v1841, 4294901760
        %v2989 = vsub.f32 %v1841, %v2988
        %v2990 = vand.u32 %v2989, 4294901760
        %2991 = vmatprep.subr.mxu0 %v2990
        %v2992 = vand.u32 %v1840, 4294901760
        %v2993 = vsub.f32 %v1840, %v2992
        %v2994 = vand.u32 %v2993, 4294901760
        %2995 = vmatpush1.msra.mxu0 %v2994
        %v2996 = vand.u32 %v1843, 4294901760
        %v2997 = vsub.f32 %v1843, %v2996
        %v2998 = vand.u32 %v2997, 4294901760
        %2999 = vmatprep.subr.mxu0 %v2998
        %v3000 = vand.u32 %v1842, 4294901760
        %v3001 = vsub.f32 %v1842, %v3000
        %v3002 = vand.u32 %v3001, 4294901760
        %3003 = vmatpush1.msra.mxu0 %v3002
        %v3004 = vand.u32 %v1845, 4294901760
        %v3005 = vsub.f32 %v1845, %v3004
        %v3006 = vand.u32 %v3005, 4294901760
        %3007 = vmatprep.subr.mxu0 %v3006
        %v3008 = vand.u32 %v1844, 4294901760
        %v3009 = vsub.f32 %v1844, %v3008
        %v3010 = vand.u32 %v3009, 4294901760
        %3011 = vmatpush1.msra.mxu0 %v3010
        %v3012 = vand.u32 %v1847, 4294901760
        %v3013 = vsub.f32 %v1847, %v3012
        %v3014 = vand.u32 %v3013, 4294901760
        %3015 = vmatprep.subr.mxu0 %v3014
        %v3016 = vand.u32 %v1846, 4294901760
        %v3017 = vsub.f32 %v1846, %v3016
        %v3018 = vand.u32 %v3017, 4294901760
        %3019 = vmatpush1.msra.mxu0 %v3018
        %v3020 = vand.u32 %v1849, 4294901760
        %v3021 = vsub.f32 %v1849, %v3020
        %v3022 = vand.u32 %v3021, 4294901760
        %3023 = vmatprep.subr.mxu0 %v3022
        %v3024 = vand.u32 %v1848, 4294901760
        %v3025 = vsub.f32 %v1848, %v3024
        %v3026 = vand.u32 %v3025, 4294901760
        %3027 = vmatpush1.msra.mxu0 %v3026
        %v3028 = vand.u32 %v1851, 4294901760
        %v3029 = vsub.f32 %v1851, %v3028
        %v3030 = vand.u32 %v3029, 4294901760
        %3031 = vmatprep.subr.mxu0 %v3030
        %v3032 = vand.u32 %v1850, 4294901760
        %v3033 = vsub.f32 %v1850, %v3032
        %v3034 = vand.u32 %v3033, 4294901760
        %3035 = vmatpush1.msra.mxu0 %v3034
        %v3036 = vand.u32 %v1785, 4294901760
        %3037 = vmatprep.mubr.f32.mxu0 %v3036
        %v3038 = vand.u32 %v1784, 4294901760
        %3039 = vmatmul.mubr.f32.gmra.mrb[0].mxu0 %v3038
        %v3040 = vpop.f32.mrb[0].mxu0
        %v3041 = vadd.f32 %v2764, %v3040
        %v3042 = vpop.f32.mrb[0].mxu0
        %v3043 = vadd.f32 %v2766, %v3042
        %v3044 = vand.u32 %v1787, 4294901760
        %3045 = vmatprep.mubr.f32.mxu0 %v3044
        %v3046 = vand.u32 %v1786, 4294901760
        %3047 = vmatmul.mubr.f32.gmra.mrb[0].mxu0 %v3046
        %v3048 = vpop.f32.mrb[0].mxu0
        %v3049 = vadd.f32 %v2776, %v3048
        %v3050 = vpop.f32.mrb[0].mxu0
        %v3051 = vadd.f32 %v2778, %v3050
        %3052 = vdwg.mxu0
        %v3053 = vand.u32 %v1789, 4294901760
        %3054 = vmatprep.subr.mxu0 %v3053
        %v3055 = vand.u32 %v1788, 4294901760
        %3056 = vmatpush1.msra.mxu0 %v3055
        %v3057 = vand.u32 %v1791, 4294901760
        %3058 = vmatprep.subr.mxu0 %v3057
        %v3059 = vand.u32 %v1790, 4294901760
        %3060 = vmatpush1.msra.mxu0 %v3059
        %v3061 = vand.u32 %v1793, 4294901760
        %3062 = vmatprep.subr.mxu0 %v3061
        %v3063 = vand.u32 %v1792, 4294901760
        %3064 = vmatpush1.msra.mxu0 %v3063
        %v3065 = vand.u32 %v1795, 4294901760
        %3066 = vmatprep.subr.mxu0 %v3065
        %v3067 = vand.u32 %v1794, 4294901760
        %3068 = vmatpush1.msra.mxu0 %v3067
        %v3069 = vand.u32 %v1797, 4294901760
        %3070 = vmatprep.subr.mxu0 %v3069
        %v3071 = vand.u32 %v1796, 4294901760
        %3072 = vmatpush1.msra.mxu0 %v3071
        %v3073 = vand.u32 %v1799, 4294901760
        %3074 = vmatprep.subr.mxu0 %v3073
        %v3075 = vand.u32 %v1798, 4294901760
        %3076 = vmatpush1.msra.mxu0 %v3075
        %v3077 = vand.u32 %v1801, 4294901760
        %3078 = vmatprep.subr.mxu0 %v3077
        %v3079 = vand.u32 %v1800, 4294901760
        %3080 = vmatpush1.msra.mxu0 %v3079
        %v3081 = vand.u32 %v1803, 4294901760
        %3082 = vmatprep.subr.mxu0 %v3081
        %v3083 = vand.u32 %v1802, 4294901760
        %3084 = vmatpush1.msra.mxu0 %v3083
        %v3085 = vand.u32 %v1805, 4294901760
        %3086 = vmatprep.subr.mxu0 %v3085
        %v3087 = vand.u32 %v1804, 4294901760
        %3088 = vmatpush1.msra.mxu0 %v3087
        %v3089 = vand.u32 %v1807, 4294901760
        %3090 = vmatprep.subr.mxu0 %v3089
        %v3091 = vand.u32 %v1806, 4294901760
        %3092 = vmatpush1.msra.mxu0 %v3091
        %v3093 = vand.u32 %v1809, 4294901760
        %3094 = vmatprep.subr.mxu0 %v3093
        %v3095 = vand.u32 %v1808, 4294901760
        %3096 = vmatpush1.msra.mxu0 %v3095
        %v3097 = vand.u32 %v1811, 4294901760
        %3098 = vmatprep.subr.mxu0 %v3097
        %v3099 = vand.u32 %v1810, 4294901760
        %3100 = vmatpush1.msra.mxu0 %v3099
        %v3101 = vand.u32 %v1813, 4294901760
        %3102 = vmatprep.subr.mxu0 %v3101
        %v3103 = vand.u32 %v1812, 4294901760
        %3104 = vmatpush1.msra.mxu0 %v3103
        %v3105 = vand.u32 %v1815, 4294901760
        %3106 = vmatprep.subr.mxu0 %v3105
        %v3107 = vand.u32 %v1814, 4294901760
        %3108 = vmatpush1.msra.mxu0 %v3107
        %v3109 = vand.u32 %v1817, 4294901760
        %3110 = vmatprep.subr.mxu0 %v3109
        %v3111 = vand.u32 %v1816, 4294901760
        %3112 = vmatpush1.msra.mxu0 %v3111
        %v3113 = vand.u32 %v1819, 4294901760
        %3114 = vmatprep.subr.mxu0 %v3113
        %v3115 = vand.u32 %v1818, 4294901760
        %3116 = vmatpush1.msra.mxu0 %v3115
        %v3117 = vand.u32 %v1821, 4294901760
        %3118 = vmatprep.subr.mxu0 %v3117
        %v3119 = vand.u32 %v1820, 4294901760
        %3120 = vmatpush1.msra.mxu0 %v3119
        %v3121 = vand.u32 %v1823, 4294901760
        %3122 = vmatprep.subr.mxu0 %v3121
        %v3123 = vand.u32 %v1822, 4294901760
        %3124 = vmatpush1.msra.mxu0 %v3123
        %v3125 = vand.u32 %v1825, 4294901760
        %3126 = vmatprep.subr.mxu0 %v3125
        %v3127 = vand.u32 %v1824, 4294901760
        %3128 = vmatpush1.msra.mxu0 %v3127
        %v3129 = vand.u32 %v1827, 4294901760
        %3130 = vmatprep.subr.mxu0 %v3129
        %v3131 = vand.u32 %v1826, 4294901760
        %3132 = vmatpush1.msra.mxu0 %v3131
        %v3133 = vand.u32 %v1829, 4294901760
        %3134 = vmatprep.subr.mxu0 %v3133
        %v3135 = vand.u32 %v1828, 4294901760
        %3136 = vmatpush1.msra.mxu0 %v3135
        %v3137 = vand.u32 %v1831, 4294901760
        %3138 = vmatprep.subr.mxu0 %v3137
        %v3139 = vand.u32 %v1830, 4294901760
        %3140 = vmatpush1.msra.mxu0 %v3139
        %v3141 = vand.u32 %v1833, 4294901760
        %3142 = vmatprep.subr.mxu0 %v3141
        %v3143 = vand.u32 %v1832, 4294901760
        %3144 = vmatpush1.msra.mxu0 %v3143
        %v3145 = vand.u32 %v1835, 4294901760
        %3146 = vmatprep.subr.mxu0 %v3145
        %v3147 = vand.u32 %v1834, 4294901760
        %3148 = vmatpush1.msra.mxu0 %v3147
        %v3149 = vand.u32 %v1837, 4294901760
        %3150 = vmatprep.subr.mxu0 %v3149
        %v3151 = vand.u32 %v1836, 4294901760
        %3152 = vmatpush1.msra.mxu0 %v3151
        %v3153 = vand.u32 %v1839, 4294901760
        %3154 = vmatprep.subr.mxu0 %v3153
        %v3155 = vand.u32 %v1838, 4294901760
        %3156 = vmatpush1.msra.mxu0 %v3155
        %v3157 = vand.u32 %v1841, 4294901760
        %3158 = vmatprep.subr.mxu0 %v3157
        %v3159 = vand.u32 %v1840, 4294901760
        %3160 = vmatpush1.msra.mxu0 %v3159
        %v3161 = vand.u32 %v1843, 4294901760
        %3162 = vmatprep.subr.mxu0 %v3161
        %v3163 = vand.u32 %v1842, 4294901760
        %3164 = vmatpush1.msra.mxu0 %v3163
        %v3165 = vand.u32 %v1845, 4294901760
        %3166 = vmatprep.subr.mxu0 %v3165
        %v3167 = vand.u32 %v1844, 4294901760
        %3168 = vmatpush1.msra.mxu0 %v3167
        %v3169 = vand.u32 %v1847, 4294901760
        %3170 = vmatprep.subr.mxu0 %v3169
        %v3171 = vand.u32 %v1846, 4294901760
        %3172 = vmatpush1.msra.mxu0 %v3171
        %v3173 = vand.u32 %v1849, 4294901760
        %3174 = vmatprep.subr.mxu0 %v3173
        %v3175 = vand.u32 %v1848, 4294901760
        %3176 = vmatpush1.msra.mxu0 %v3175
        %v3177 = vand.u32 %v1851, 4294901760
        %3178 = vmatprep.subr.mxu0 %v3177
        %v3179 = vand.u32 %v1850, 4294901760
        %3180 = vmatpush1.msra.mxu0 %v3179
        %v3181 = vand.u32 %v1785, 4294901760
        %3182 = vmatprep.mubr.f32.mxu0 %v3181
        %v3183 = vand.u32 %v1784, 4294901760
        %3184 = vmatmul.mubr.f32.gmra.mrb[0].mxu0 %v3183
        %v3185 = vpop.f32.mrb[0].mxu0
        %v3186 = vadd.f32 %v3041, %v3185
        %v3187 = vpop.f32.mrb[0].mxu0
        %v3188 = vadd.f32 %v3043, %v3187
        %v3189 = vand.u32 %v1787, 4294901760
        %3190 = vmatprep.mubr.f32.mxu0 %v3189
        %v3191 = vand.u32 %v1786, 4294901760
        %3192 = vmatmul.mubr.f32.gmra.mrb[0].mxu0 %v3191
        %v3193 = vpop.f32.mrb[0].mxu0
        %v3194 = vadd.f32 %v3049, %v3193
        %v3195 = vpop.f32.mrb[0].mxu0
        %v3196 = vadd.f32 %v3051, %v3195
        %3197 = vdwg.mxu0
        %v3198 = vmax.f32 %v1784, %v3186
        %v3199 = vmax.f32 %v1785, %v3188
        %v3200 = vmax.f32 %v1786, %v3194
        %v3201 = vmax.f32 %v1787, %v3196
        %v3202 = vld [vmem:[%s1] sm:$0x7]
        %vm3203 = vcmask 130048
        %v3205 = vsel %vm3203, %v3202, 0
        %v3207 = vand.u32 %v3199, 4294901760
        %3208 = vmatprep.subr.mxu0 %v3207
        %v3209 = vand.u32 %v3198, 4294901760
        %3210 = vmatpush1.msra.mxu0 %v3209
        %v3211 = vand.u32 %v3201, 4294901760
        %3212 = vmatprep.subr.mxu0 %v3211
        %v3213 = vand.u32 %v3200, 4294901760
        %3214 = vmatpush1.msra.mxu0 %v3213
        %3215 = vmatprep.subr.mxu0 0.0
        %3216 = vmatpush1.msra.mxu0 0.0
        %3217 = vmatprep.subr.mxu0 0.0
        %3218 = vmatpush1.msra.mxu0 0.0
        %3219 = vmatprep.subr.mxu0 0.0
        %3220 = vmatpush1.msra.mxu0 0.0
        %3221 = vmatprep.subr.mxu0 0.0
        %3222 = vmatpush1.msra.mxu0 0.0
        %3223 = vmatprep.subr.mxu0 0.0
        %3224 = vmatpush1.msra.mxu0 0.0
        %3225 = vmatprep.subr.mxu0 0.0
        %3226 = vmatpush1.msra.mxu0 0.0
        %3227 = vmatprep.subr.mxu0 0.0
        %3228 = vmatpush1.msra.mxu0 0.0
        %3229 = vmatprep.subr.mxu0 0.0
        %3230 = vmatpush1.msra.mxu0 0.0
        %3231 = vmatprep.subr.mxu0 0.0
        %3232 = vmatpush1.msra.mxu0 0.0
        %3233 = vmatprep.subr.mxu0 0.0
        %3234 = vmatpush1.msra.mxu0 0.0
        %3235 = vmatprep.subr.mxu0 0.0
        %3236 = vmatpush1.msra.mxu0 0.0
        %3237 = vmatprep.subr.mxu0 0.0
        %3238 = vmatpush1.msra.mxu0 0.0
        %3239 = vmatprep.subr.mxu0 0.0
        %3240 = vmatpush1.msra.mxu0 0.0
        %3241 = vmatprep.subr.mxu0 0.0
        %3242 = vmatpush1.msra.mxu0 0.0
        %3243 = vmatprep.subr.mxu0 0.0
        %3244 = vmatpush1.msra.mxu0 0.0
        %3245 = vmatprep.subr.mxu0 0.0
        %3246 = vmatpush1.msra.mxu0 0.0
        %3247 = vmatprep.subr.mxu0 0.0
        %3248 = vmatpush1.msra.mxu0 0.0
        %3249 = vmatprep.subr.mxu0 0.0
        %3250 = vmatpush1.msra.mxu0 0.0
        %3251 = vmatprep.subr.mxu0 0.0
        %3252 = vmatpush1.msra.mxu0 0.0
        %3253 = vmatprep.subr.mxu0 0.0
        %3254 = vmatpush1.msra.mxu0 0.0
        %3255 = vmatprep.subr.mxu0 0.0
        %3256 = vmatpush1.msra.mxu0 0.0
        %3257 = vmatprep.subr.mxu0 0.0
        %3258 = vmatpush1.msra.mxu0 0.0
        %3259 = vmatprep.subr.mxu0 0.0
        %3260 = vmatpush1.msra.mxu0 0.0
        %3261 = vmatprep.subr.mxu0 0.0
        %3262 = vmatpush1.msra.mxu0 0.0
        %3263 = vmatprep.subr.mxu0 0.0
        %3264 = vmatpush1.msra.mxu0 0.0
        %3265 = vmatprep.subr.mxu0 0.0
        %3266 = vmatpush1.msra.mxu0 0.0
        %3267 = vmatprep.subr.mxu0 0.0
        %3268 = vmatpush1.msra.mxu0 0.0
        %3269 = vmatprep.subr.mxu0 0.0
        %3270 = vmatpush1.msra.mxu0 0.0
        %3271 = vmatprep.subr.mxu0 0.0
        %3272 = vmatpush1.msra.mxu0 0.0
        %3273 = vmatprep.subr.mxu0 0.0
        %3274 = vmatpush1.msra.mxu0 0.0
        %3275 = vmatprep.mubr.f32.mxu0 0.0
        %v3276 = vand.u32 %v3205, 4294901760
        %v3277 = vsub.f32 %v3205, %v3276
        %v3278 = vand.u32 %v3277, 4294901760
        %v3279 = vsub.f32 %v3277, %v3278
        %v3280 = vand.u32 %v3279, 4294901760
        %3281 = vmatmul.mubr.f32.gmra.mrb[0].mxu0 %v3280
        %v3282 = vpop.f32.mrb[0].mxu0
        %v3283 = vadd.f32 0.0, %v3282
        %v3284 = vpop.f32.mrb[0].mxu0
        %v3285 = vadd.f32 0.0, %v3284
        %3286 = vdwg.mxu0
        %v3287 = vand.u32 %v3199, 4294901760
        %v3288 = vsub.f32 %v3199, %v3287
        %v3289 = vand.u32 %v3288, 4294901760
        %v3290 = vsub.f32 %v3288, %v3289
        %v3291 = vand.u32 %v3290, 4294901760
        %3292 = vmatprep.subr.mxu0 %v3291
        %v3293 = vand.u32 %v3198, 4294901760
        %v3294 = vsub.f32 %v3198, %v3293
        %v3295 = vand.u32 %v3294, 4294901760
        %v3296 = vsub.f32 %v3294, %v3295
        %v3297 = vand.u32 %v3296, 4294901760
        %3298 = vmatpush1.msra.mxu0 %v3297
        %v3299 = vand.u32 %v3201, 4294901760
        %v3300 = vsub.f32 %v3201, %v3299
        %v3301 = vand.u32 %v3300, 4294901760
        %v3302 = vsub.f32 %v3300, %v3301
        %v3303 = vand.u32 %v3302, 4294901760
        %3304 = vmatprep.subr.mxu0 %v3303
        %v3305 = vand.u32 %v3200, 4294901760
        %v3306 = vsub.f32 %v3200, %v3305
        %v3307 = vand.u32 %v3306, 4294901760
        %v3308 = vsub.f32 %v3306, %v3307
        %v3309 = vand.u32 %v3308, 4294901760
        %3310 = vmatpush1.msra.mxu0 %v3309
        %3311 = vmatprep.subr.mxu0 0.0
        %3312 = vmatpush1.msra.mxu0 0.0
        %3313 = vmatprep.subr.mxu0 0.0
        %3314 = vmatpush1.msra.mxu0 0.0
        %3315 = vmatprep.subr.mxu0 0.0
        %3316 = vmatpush1.msra.mxu0 0.0
        %3317 = vmatprep.subr.mxu0 0.0
        %3318 = vmatpush1.msra.mxu0 0.0
        %3319 = vmatprep.subr.mxu0 0.0
        %3320 = vmatpush1.msra.mxu0 0.0
        %3321 = vmatprep.subr.mxu0 0.0
        %3322 = vmatpush1.msra.mxu0 0.0
        %3323 = vmatprep.subr.mxu0 0.0
        %3324 = vmatpush1.msra.mxu0 0.0
        %3325 = vmatprep.subr.mxu0 0.0
        %3326 = vmatpush1.msra.mxu0 0.0
        %3327 = vmatprep.subr.mxu0 0.0
        %3328 = vmatpush1.msra.mxu0 0.0
        %3329 = vmatprep.subr.mxu0 0.0
        %3330 = vmatpush1.msra.mxu0 0.0
        %3331 = vmatprep.subr.mxu0 0.0
        %3332 = vmatpush1.msra.mxu0 0.0
        %3333 = vmatprep.subr.mxu0 0.0
        %3334 = vmatpush1.msra.mxu0 0.0
        %3335 = vmatprep.subr.mxu0 0.0
        %3336 = vmatpush1.msra.mxu0 0.0
        %3337 = vmatprep.subr.mxu0 0.0
        %3338 = vmatpush1.msra.mxu0 0.0
        %3339 = vmatprep.subr.mxu0 0.0
        %3340 = vmatpush1.msra.mxu0 0.0
        %3341 = vmatprep.subr.mxu0 0.0
        %3342 = vmatpush1.msra.mxu0 0.0
        %3343 = vmatprep.subr.mxu0 0.0
        %3344 = vmatpush1.msra.mxu0 0.0
        %3345 = vmatprep.subr.mxu0 0.0
        %3346 = vmatpush1.msra.mxu0 0.0
        %3347 = vmatprep.subr.mxu0 0.0
        %3348 = vmatpush1.msra.mxu0 0.0
        %3349 = vmatprep.subr.mxu0 0.0
        %3350 = vmatpush1.msra.mxu0 0.0
        %3351 = vmatprep.subr.mxu0 0.0
        %3352 = vmatpush1.msra.mxu0 0.0
        %3353 = vmatprep.subr.mxu0 0.0
        %3354 = vmatpush1.msra.mxu0 0.0
        %3355 = vmatprep.subr.mxu0 0.0
        %3356 = vmatpush1.msra.mxu0 0.0
        %3357 = vmatprep.subr.mxu0 0.0
        %3358 = vmatpush1.msra.mxu0 0.0
        %3359 = vmatprep.subr.mxu0 0.0
        %3360 = vmatpush1.msra.mxu0 0.0
        %3361 = vmatprep.subr.mxu0 0.0
        %3362 = vmatpush1.msra.mxu0 0.0
        %3363 = vmatprep.subr.mxu0 0.0
        %3364 = vmatpush1.msra.mxu0 0.0
        %3365 = vmatprep.subr.mxu0 0.0
        %3366 = vmatpush1.msra.mxu0 0.0
        %3367 = vmatprep.subr.mxu0 0.0
        %3368 = vmatpush1.msra.mxu0 0.0
        %3369 = vmatprep.subr.mxu0 0.0
        %3370 = vmatpush1.msra.mxu0 0.0
        %3371 = vmatprep.mubr.f32.mxu0 0.0
        %v3372 = vand.u32 %v3205, 4294901760
        %3373 = vmatmul.mubr.f32.gmra.mrb[0].mxu0 %v3372
        %v3374 = vpop.f32.mrb[0].mxu0
        %v3375 = vadd.f32 %v3283, %v3374
        %v3376 = vpop.f32.mrb[0].mxu0
        %v3377 = vadd.f32 %v3285, %v3376
        %3378 = vdwg.mxu0
        %v3379 = vand.u32 %v3199, 4294901760
        %v3380 = vsub.f32 %v3199, %v3379
        %3381 = vmatprep.subr.mxu0 %v3380
        %v3382 = vand.u32 %v3198, 4294901760
        %v3383 = vsub.f32 %v3198, %v3382
        %3384 = vmatpush1.msra.mxu0 %v3383
        %v3385 = vand.u32 %v3201, 4294901760
        %v3386 = vsub.f32 %v3201, %v3385
        %3387 = vmatprep.subr.mxu0 %v3386
        %v3388 = vand.u32 %v3200, 4294901760
        %v3389 = vsub.f32 %v3200, %v3388
        %3390 = vmatpush1.msra.mxu0 %v3389
        %3391 = vmatprep.subr.mxu0 0.0
        %3392 = vmatpush1.msra.mxu0 0.0
        %3393 = vmatprep.subr.mxu0 0.0
        %3394 = vmatpush1.msra.mxu0 0.0
        %3395 = vmatprep.subr.mxu0 0.0
        %3396 = vmatpush1.msra.mxu0 0.0
        %3397 = vmatprep.subr.mxu0 0.0
        %3398 = vmatpush1.msra.mxu0 0.0
        %3399 = vmatprep.subr.mxu0 0.0
        %3400 = vmatpush1.msra.mxu0 0.0
        %3401 = vmatprep.subr.mxu0 0.0
        %3402 = vmatpush1.msra.mxu0 0.0
        %3403 = vmatprep.subr.mxu0 0.0
        %3404 = vmatpush1.msra.mxu0 0.0
        %3405 = vmatprep.subr.mxu0 0.0
        %3406 = vmatpush1.msra.mxu0 0.0
        %3407 = vmatprep.subr.mxu0 0.0
        %3408 = vmatpush1.msra.mxu0 0.0
        %3409 = vmatprep.subr.mxu0 0.0
        %3410 = vmatpush1.msra.mxu0 0.0
        %3411 = vmatprep.subr.mxu0 0.0
        %3412 = vmatpush1.msra.mxu0 0.0
        %3413 = vmatprep.subr.mxu0 0.0
        %3414 = vmatpush1.msra.mxu0 0.0
        %3415 = vmatprep.subr.mxu0 0.0
        %3416 = vmatpush1.msra.mxu0 0.0
        %3417 = vmatprep.subr.mxu0 0.0
        %3418 = vmatpush1.msra.mxu0 0.0
        %3419 = vmatprep.subr.mxu0 0.0
        %3420 = vmatpush1.msra.mxu0 0.0
        %3421 = vmatprep.subr.mxu0 0.0
        %3422 = vmatpush1.msra.mxu0 0.0
        %3423 = vmatprep.subr.mxu0 0.0
        %3424 = vmatpush1.msra.mxu0 0.0
        %3425 = vmatprep.subr.mxu0 0.0
        %3426 = vmatpush1.msra.mxu0 0.0
        %3427 = vmatprep.subr.mxu0 0.0
        %3428 = vmatpush1.msra.mxu0 0.0
        %3429 = vmatprep.subr.mxu0 0.0
        %3430 = vmatpush1.msra.mxu0 0.0
        %3431 = vmatprep.subr.mxu0 0.0
        %3432 = vmatpush1.msra.mxu0 0.0
        %3433 = vmatprep.subr.mxu0 0.0
        %3434 = vmatpush1.msra.mxu0 0.0
        %3435 = vmatprep.subr.mxu0 0.0
        %3436 = vmatpush1.msra.mxu0 0.0
        %3437 = vmatprep.subr.mxu0 0.0
        %3438 = vmatpush1.msra.mxu0 0.0
        %3439 = vmatprep.subr.mxu0 0.0
        %3440 = vmatpush1.msra.mxu0 0.0
        %3441 = vmatprep.subr.mxu0 0.0
        %3442 = vmatpush1.msra.mxu0 0.0
        %3443 = vmatprep.subr.mxu0 0.0
        %3444 = vmatpush1.msra.mxu0 0.0
        %3445 = vmatprep.subr.mxu0 0.0
        %3446 = vmatpush1.msra.mxu0 0.0
        %3447 = vmatprep.subr.mxu0 0.0
        %3448 = vmatpush1.msra.mxu0 0.0
        %3449 = vmatprep.subr.mxu0 0.0
        %3450 = vmatpush1.msra.mxu0 0.0
        %3451 = vmatprep.mubr.f32.mxu0 0.0
        %v3452 = vand.u32 %v3205, 4294901760
        %v3453 = vsub.f32 %v3205, %v3452
        %3454 = vmatmul.mubr.f32.gmra.mrb[0].mxu0 %v3453
        %v3455 = vpop.f32.mrb[0].mxu0
        %v3456 = vadd.f32 %v3375, %v3455
        %v3457 = vpop.f32.mrb[0].mxu0
        %v3458 = vadd.f32 %v3377, %v3457
        %3459 = vdwg.mxu0
        %v3460 = vand.u32 %v3199, 4294901760
        %3461 = vmatprep.subr.mxu0 %v3460
        %v3462 = vand.u32 %v3198, 4294901760
        %3463 = vmatpush1.msra.mxu0 %v3462
        %v3464 = vand.u32 %v3201, 4294901760
        %3465 = vmatprep.subr.mxu0 %v3464
        %v3466 = vand.u32 %v3200, 4294901760
        %3467 = vmatpush1.msra.mxu0 %v3466
        %3468 = vmatprep.subr.mxu0 0.0
        %3469 = vmatpush1.msra.mxu0 0.0
        %3470 = vmatprep.subr.mxu0 0.0
        %3471 = vmatpush1.msra.mxu0 0.0
        %3472 = vmatprep.subr.mxu0 0.0
        %3473 = vmatpush1.msra.mxu0 0.0
        %3474 = vmatprep.subr.mxu0 0.0
        %3475 = vmatpush1.msra.mxu0 0.0
        %3476 = vmatprep.subr.mxu0 0.0
        %3477 = vmatpush1.msra.mxu0 0.0
        %3478 = vmatprep.subr.mxu0 0.0
        %3479 = vmatpush1.msra.mxu0 0.0
        %3480 = vmatprep.subr.mxu0 0.0
        %3481 = vmatpush1.msra.mxu0 0.0
        %3482 = vmatprep.subr.mxu0 0.0
        %3483 = vmatpush1.msra.mxu0 0.0
        %3484 = vmatprep.subr.mxu0 0.0
        %3485 = vmatpush1.msra.mxu0 0.0
        %3486 = vmatprep.subr.mxu0 0.0
        %3487 = vmatpush1.msra.mxu0 0.0
        %3488 = vmatprep.subr.mxu0 0.0
        %3489 = vmatpush1.msra.mxu0 0.0
        %3490 = vmatprep.subr.mxu0 0.0
        %3491 = vmatpush1.msra.mxu0 0.0
        %3492 = vmatprep.subr.mxu0 0.0
        %3493 = vmatpush1.msra.mxu0 0.0
        %3494 = vmatprep.subr.mxu0 0.0
        %3495 = vmatpush1.msra.mxu0 0.0
        %3496 = vmatprep.subr.mxu0 0.0
        %3497 = vmatpush1.msra.mxu0 0.0
        %3498 = vmatprep.subr.mxu0 0.0
        %3499 = vmatpush1.msra.mxu0 0.0
        %3500 = vmatprep.subr.mxu0 0.0
        %3501 = vmatpush1.msra.mxu0 0.0
        %3502 = vmatprep.subr.mxu0 0.0
        %3503 = vmatpush1.msra.mxu0 0.0
        %3504 = vmatprep.subr.mxu0 0.0
        %3505 = vmatpush1.msra.mxu0 0.0
        %3506 = vmatprep.subr.mxu0 0.0
        %3507 = vmatpush1.msra.mxu0 0.0
        %3508 = vmatprep.subr.mxu0 0.0
        %3509 = vmatpush1.msra.mxu0 0.0
        %3510 = vmatprep.subr.mxu0 0.0
        %3511 = vmatpush1.msra.mxu0 0.0
        %3512 = vmatprep.subr.mxu0 0.0
        %3513 = vmatpush1.msra.mxu0 0.0
        %3514 = vmatprep.subr.mxu0 0.0
        %3515 = vmatpush1.msra.mxu0 0.0
        %3516 = vmatprep.subr.mxu0 0.0
        %3517 = vmatpush1.msra.mxu0 0.0
        %3518 = vmatprep.subr.mxu0 0.0
        %3519 = vmatpush1.msra.mxu0 0.0
        %3520 = vmatprep.subr.mxu0 0.0
        %3521 = vmatpush1.msra.mxu0 0.0
        %3522 = vmatprep.subr.mxu0 0.0
        %3523 = vmatpush1.msra.mxu0 0.0
        %3524 = vmatprep.subr.mxu0 0.0
        %3525 = vmatpush1.msra.mxu0 0.0
        %3526 = vmatprep.subr.mxu0 0.0
        %3527 = vmatpush1.msra.mxu0 0.0
        %3528 = vmatprep.mubr.f32.mxu0 0.0
        %v3529 = vand.u32 %v3205, 4294901760
        %v3530 = vsub.f32 %v3205, %v3529
        %v3531 = vand.u32 %v3530, 4294901760
        %3532 = vmatmul.mubr.f32.gmra.mrb[0].mxu0 %v3531
        %v3533 = vpop.f32.mrb[0].mxu0
        %v3534 = vadd.f32 %v3456, %v3533
        %v3535 = vpop.f32.mrb[0].mxu0
        %v3536 = vadd.f32 %v3458, %v3535
        %3537 = vdwg.mxu0
        %v3538 = vand.u32 %v3199, 4294901760
        %v3539 = vsub.f32 %v3199, %v3538
        %v3540 = vand.u32 %v3539, 4294901760
        %3541 = vmatprep.subr.mxu0 %v3540
        %v3542 = vand.u32 %v3198, 4294901760
        %v3543 = vsub.f32 %v3198, %v3542
        %v3544 = vand.u32 %v3543, 4294901760
        %3545 = vmatpush1.msra.mxu0 %v3544
        %v3546 = vand.u32 %v3201, 4294901760
        %v3547 = vsub.f32 %v3201, %v3546
        %v3548 = vand.u32 %v3547, 4294901760
        %3549 = vmatprep.subr.mxu0 %v3548
        %v3550 = vand.u32 %v3200, 4294901760
        %v3551 = vsub.f32 %v3200, %v3550
        %v3552 = vand.u32 %v3551, 4294901760
        %3553 = vmatpush1.msra.mxu0 %v3552
        %3554 = vmatprep.subr.mxu0 0.0
        %3555 = vmatpush1.msra.mxu0 0.0
        %3556 = vmatprep.subr.mxu0 0.0
        %3557 = vmatpush1.msra.mxu0 0.0
        %3558 = vmatprep.subr.mxu0 0.0
        %3559 = vmatpush1.msra.mxu0 0.0
        %3560 = vmatprep.subr.mxu0 0.0
        %3561 = vmatpush1.msra.mxu0 0.0
        %3562 = vmatprep.subr.mxu0 0.0
        %3563 = vmatpush1.msra.mxu0 0.0
        %3564 = vmatprep.subr.mxu0 0.0
        %3565 = vmatpush1.msra.mxu0 0.0
        %3566 = vmatprep.subr.mxu0 0.0
        %3567 = vmatpush1.msra.mxu0 0.0
        %3568 = vmatprep.subr.mxu0 0.0
        %3569 = vmatpush1.msra.mxu0 0.0
        %3570 = vmatprep.subr.mxu0 0.0
        %3571 = vmatpush1.msra.mxu0 0.0
        %3572 = vmatprep.subr.mxu0 0.0
        %3573 = vmatpush1.msra.mxu0 0.0
        %3574 = vmatprep.subr.mxu0 0.0
        %3575 = vmatpush1.msra.mxu0 0.0
        %3576 = vmatprep.subr.mxu0 0.0
        %3577 = vmatpush1.msra.mxu0 0.0
        %3578 = vmatprep.subr.mxu0 0.0
        %3579 = vmatpush1.msra.mxu0 0.0
        %3580 = vmatprep.subr.mxu0 0.0
        %3581 = vmatpush1.msra.mxu0 0.0
        %3582 = vmatprep.subr.mxu0 0.0
        %3583 = vmatpush1.msra.mxu0 0.0
        %3584 = vmatprep.subr.mxu0 0.0
        %3585 = vmatpush1.msra.mxu0 0.0
        %3586 = vmatprep.subr.mxu0 0.0
        %3587 = vmatpush1.msra.mxu0 0.0
        %3588 = vmatprep.subr.mxu0 0.0
        %3589 = vmatpush1.msra.mxu0 0.0
        %3590 = vmatprep.subr.mxu0 0.0
        %3591 = vmatpush1.msra.mxu0 0.0
        %3592 = vmatprep.subr.mxu0 0.0
        %3593 = vmatpush1.msra.mxu0 0.0
        %3594 = vmatprep.subr.mxu0 0.0
        %3595 = vmatpush1.msra.mxu0 0.0
        %3596 = vmatprep.subr.mxu0 0.0
        %3597 = vmatpush1.msra.mxu0 0.0
        %3598 = vmatprep.subr.mxu0 0.0
        %3599 = vmatpush1.msra.mxu0 0.0
        %3600 = vmatprep.subr.mxu0 0.0
        %3601 = vmatpush1.msra.mxu0 0.0
        %3602 = vmatprep.subr.mxu0 0.0
        %3603 = vmatpush1.msra.mxu0 0.0
        %3604 = vmatprep.subr.mxu0 0.0
        %3605 = vmatpush1.msra.mxu0 0.0
        %3606 = vmatprep.subr.mxu0 0.0
        %3607 = vmatpush1.msra.mxu0 0.0
        %3608 = vmatprep.subr.mxu0 0.0
        %3609 = vmatpush1.msra.mxu0 0.0
        %3610 = vmatprep.subr.mxu0 0.0
        %3611 = vmatpush1.msra.mxu0 0.0
        %3612 = vmatprep.subr.mxu0 0.0
        %3613 = vmatpush1.msra.mxu0 0.0
        %3614 = vmatprep.mubr.f32.mxu0 0.0
        %v3615 = vand.u32 %v3205, 4294901760
        %3616 = vmatmul.mubr.f32.gmra.mrb[0].mxu0 %v3615
        %v3617 = vpop.f32.mrb[0].mxu0
        %v3618 = vadd.f32 %v3534, %v3617
        %v3619 = vpop.f32.mrb[0].mxu0
        %v3620 = vadd.f32 %v3536, %v3619
        %3621 = vdwg.mxu0
        %v3622 = vand.u32 %v3199, 4294901760
        %3623 = vmatprep.subr.mxu0 %v3622
        %v3624 = vand.u32 %v3198, 4294901760
        %3625 = vmatpush1.msra.mxu0 %v3624
        %v3626 = vand.u32 %v3201, 4294901760
        %3627 = vmatprep.subr.mxu0 %v3626
        %v3628 = vand.u32 %v3200, 4294901760
        %3629 = vmatpush1.msra.mxu0 %v3628
        %3630 = vmatprep.subr.mxu0 0.0
        %3631 = vmatpush1.msra.mxu0 0.0
        %3632 = vmatprep.subr.mxu0 0.0
        %3633 = vmatpush1.msra.mxu0 0.0
        %3634 = vmatprep.subr.mxu0 0.0
        %3635 = vmatpush1.msra.mxu0 0.0
        %3636 = vmatprep.subr.mxu0 0.0
        %3637 = vmatpush1.msra.mxu0 0.0
        %3638 = vmatprep.subr.mxu0 0.0
        %3639 = vmatpush1.msra.mxu0 0.0
        %3640 = vmatprep.subr.mxu0 0.0
        %3641 = vmatpush1.msra.mxu0 0.0
        %3642 = vmatprep.subr.mxu0 0.0
        %3643 = vmatpush1.msra.mxu0 0.0
        %3644 = vmatprep.subr.mxu0 0.0
        %3645 = vmatpush1.msra.mxu0 0.0
        %3646 = vmatprep.subr.mxu0 0.0
        %3647 = vmatpush1.msra.mxu0 0.0
        %3648 = vmatprep.subr.mxu0 0.0
        %3649 = vmatpush1.msra.mxu0 0.0
        %3650 = vmatprep.subr.mxu0 0.0
        %3651 = vmatpush1.msra.mxu0 0.0
        %3652 = vmatprep.subr.mxu0 0.0
        %3653 = vmatpush1.msra.mxu0 0.0
        %3654 = vmatprep.subr.mxu0 0.0
        %3655 = vmatpush1.msra.mxu0 0.0
        %3656 = vmatprep.subr.mxu0 0.0
        %3657 = vmatpush1.msra.mxu0 0.0
        %3658 = vmatprep.subr.mxu0 0.0
        %3659 = vmatpush1.msra.mxu0 0.0
        %3660 = vmatprep.subr.mxu0 0.0
        %3661 = vmatpush1.msra.mxu0 0.0
        %3662 = vmatprep.subr.mxu0 0.0
        %3663 = vmatpush1.msra.mxu0 0.0
        %3664 = vmatprep.subr.mxu0 0.0
        %3665 = vmatpush1.msra.mxu0 0.0
        %3666 = vmatprep.subr.mxu0 0.0
        %3667 = vmatpush1.msra.mxu0 0.0
        %3668 = vmatprep.subr.mxu0 0.0
        %3669 = vmatpush1.msra.mxu0 0.0
        %3670 = vmatprep.subr.mxu0 0.0
        %3671 = vmatpush1.msra.mxu0 0.0
        %3672 = vmatprep.subr.mxu0 0.0
        %3673 = vmatpush1.msra.mxu0 0.0
        %3674 = vmatprep.subr.mxu0 0.0
        %3675 = vmatpush1.msra.mxu0 0.0
        %3676 = vmatprep.subr.mxu0 0.0
        %3677 = vmatpush1.msra.mxu0 0.0
        %3678 = vmatprep.subr.mxu0 0.0
        %3679 = vmatpush1.msra.mxu0 0.0
        %3680 = vmatprep.subr.mxu0 0.0
        %3681 = vmatpush1.msra.mxu0 0.0
        %3682 = vmatprep.subr.mxu0 0.0
        %3683 = vmatpush1.msra.mxu0 0.0
        %3684 = vmatprep.subr.mxu0 0.0
        %3685 = vmatpush1.msra.mxu0 0.0
        %3686 = vmatprep.subr.mxu0 0.0
        %3687 = vmatpush1.msra.mxu0 0.0
        %3688 = vmatprep.subr.mxu0 0.0
        %3689 = vmatpush1.msra.mxu0 0.0
        %3690 = vmatprep.mubr.f32.mxu0 0.0
        %v3691 = vand.u32 %v3205, 4294901760
        %3692 = vmatmul.mubr.f32.gmra.mrb[0].mxu0 %v3691
        %v3693 = vpop.f32.mrb[0].mxu0
        %v3694 = vadd.f32 %v3618, %v3693
        %v3695 = vpop.f32.mrb[0].mxu0
        %v3696 = vadd.f32 %v3620, %v3695
        %3697 = vdwg.mxu0
        %v3698 = vstv %s368
        %v3699 = vmul.f32 %v3694, %v3698
        %v3700 = vmul.f32 %v3696, %v3698
        %v3701 = vstv %s369
        %v3702 = vadd.f32 %v3699, %v3701
        %v3703 = vadd.f32 %v3700, %v3701
        %v3704 = vxor.u32 %v3702, 2147483648
        %v3705 = vxor.u32 %v3703, 2147483648
        %v3706 = vmul.f32 %v3704, 1.442695
        %v3707 = vpow.pop %v3706
        %v3708 = vmul.f32 %v3705, 1.442695
        %v3709 = vpow.pop %v3708
        %v3710 = vadd.f32 %v3707, 1.0
        %v3711 = vadd.f32 %v3709, 1.0
        %v3712 = vrcp.pop %v3710
        %v3713 = vmul.f32 1.0, %v3712
        %v3714 = vrcp.pop %v3711
        %v3715 = vmul.f32 1.0, %v3714
        %v3716 = vld [vmem:[%s2] sm:$0xff]
        %v3717 = vld [vmem:[%s2 + $0x8] sm:$0xff]
        %vm3718 = vcmask 23552
        %v3720 = vsel %vm3718, %v3716, 0
        %v3723 = vsel %vm3718, %v3717, 0
        %vm3725 = vcmask 1042432
        %v3727 = vsel %vm3725, %v3713, 0
        %v3730 = vsel %vm3725, %v3715, 0
        %v3732 = vand.u32 %v3730, 4294901760
        %3733 = vmatprep.subr.mxu0 %v3732
        %v3734 = vand.u32 %v3727, 4294901760
        %3735 = vmatpush1.msra.mxu0 %v3734
        %3736 = vmatprep.subr.mxu0 0.0
        %3737 = vmatpush1.msra.mxu0 0.0
        %3738 = vmatprep.subr.mxu0 0.0
        %3739 = vmatpush1.msra.mxu0 0.0
        %3740 = vmatprep.subr.mxu0 0.0
        %3741 = vmatpush1.msra.mxu0 0.0
        %3742 = vmatprep.subr.mxu0 0.0
        %3743 = vmatpush1.msra.mxu0 0.0
        %3744 = vmatprep.subr.mxu0 0.0
        %3745 = vmatpush1.msra.mxu0 0.0
        %3746 = vmatprep.subr.mxu0 0.0
        %3747 = vmatpush1.msra.mxu0 0.0
        %3748 = vmatprep.subr.mxu0 0.0
        %3749 = vmatpush1.msra.mxu0 0.0
        %3750 = vmatprep.subr.mxu0 0.0
        %3751 = vmatpush1.msra.mxu0 0.0
        %3752 = vmatprep.subr.mxu0 0.0
        %3753 = vmatpush1.msra.mxu0 0.0
        %3754 = vmatprep.subr.mxu0 0.0
        %3755 = vmatpush1.msra.mxu0 0.0
        %3756 = vmatprep.subr.mxu0 0.0
        %3757 = vmatpush1.msra.mxu0 0.0
        %3758 = vmatprep.subr.mxu0 0.0
        %3759 = vmatpush1.msra.mxu0 0.0
        %3760 = vmatprep.subr.mxu0 0.0
        %3761 = vmatpush1.msra.mxu0 0.0
        %3762 = vmatprep.subr.mxu0 0.0
        %3763 = vmatpush1.msra.mxu0 0.0
        %3764 = vmatprep.subr.mxu0 0.0
        %3765 = vmatpush1.msra.mxu0 0.0
        %3766 = vmatprep.subr.mxu0 0.0
        %3767 = vmatpush1.msra.mxu0 0.0
        %3768 = vmatprep.subr.mxu0 0.0
        %3769 = vmatpush1.msra.mxu0 0.0
        %3770 = vmatprep.subr.mxu0 0.0
        %3771 = vmatpush1.msra.mxu0 0.0
        %3772 = vmatprep.subr.mxu0 0.0
        %3773 = vmatpush1.msra.mxu0 0.0
        %3774 = vmatprep.subr.mxu0 0.0
        %3775 = vmatpush1.msra.mxu0 0.0
        %3776 = vmatprep.subr.mxu0 0.0
        %3777 = vmatpush1.msra.mxu0 0.0
        %3778 = vmatprep.subr.mxu0 0.0
        %3779 = vmatpush1.msra.mxu0 0.0
        %3780 = vmatprep.subr.mxu0 0.0
        %3781 = vmatpush1.msra.mxu0 0.0
        %3782 = vmatprep.subr.mxu0 0.0
        %3783 = vmatpush1.msra.mxu0 0.0
        %3784 = vmatprep.subr.mxu0 0.0
        %3785 = vmatpush1.msra.mxu0 0.0
        %3786 = vmatprep.subr.mxu0 0.0
        %3787 = vmatpush1.msra.mxu0 0.0
        %3788 = vmatprep.subr.mxu0 0.0
        %3789 = vmatpush1.msra.mxu0 0.0
        %3790 = vmatprep.subr.mxu0 0.0
        %3791 = vmatpush1.msra.mxu0 0.0
        %3792 = vmatprep.subr.mxu0 0.0
        %3793 = vmatpush1.msra.mxu0 0.0
        %3794 = vmatprep.subr.mxu0 0.0
        %3795 = vmatpush1.msra.mxu0 0.0
        %3796 = vmatprep.subr.mxu0 0.0
        %3797 = vmatpush1.msra.mxu0 0.0
        %3798 = vmatprep.mubr.f32.mxu0 0.0
        %v3799 = vand.u32 %v3720, 4294901760
        %v3800 = vsub.f32 %v3720, %v3799
        %v3801 = vand.u32 %v3800, 4294901760
        %v3802 = vsub.f32 %v3800, %v3801
        %v3803 = vand.u32 %v3802, 4294901760
        %3804 = vmatmul.mubr.f32.gmra.mrb[0].mxu0 %v3803
        %v3805 = vpop.f32.mrb[0].mxu0
        %v3806 = vadd.f32 0.0, %v3805
        %v3807 = vpop.f32.mrb[0].mxu0
        %v3808 = vadd.f32 0.0, %v3807
        %3809 = vmatprep.mubr.f32.mxu0 0.0
        %v3810 = vand.u32 %v3723, 4294901760
        %v3811 = vsub.f32 %v3723, %v3810
        %v3812 = vand.u32 %v3811, 4294901760
        %v3813 = vsub.f32 %v3811, %v3812
        %v3814 = vand.u32 %v3813, 4294901760
        %3815 = vmatmul.mubr.f32.gmra.mrb[0].mxu0 %v3814
        %v3816 = vpop.f32.mrb[0].mxu0
        %v3817 = vadd.f32 0.0, %v3816
        %v3818 = vpop.f32.mrb[0].mxu0
        %v3819 = vadd.f32 0.0, %v3818
        %3820 = vdwg.mxu0
        %v3821 = vand.u32 %v3730, 4294901760
        %v3822 = vsub.f32 %v3730, %v3821
        %v3823 = vand.u32 %v3822, 4294901760
        %v3824 = vsub.f32 %v3822, %v3823
        %v3825 = vand.u32 %v3824, 4294901760
        %3826 = vmatprep.subr.mxu0 %v3825
        %v3827 = vand.u32 %v3727, 4294901760
        %v3828 = vsub.f32 %v3727, %v3827
        %v3829 = vand.u32 %v3828, 4294901760
        %v3830 = vsub.f32 %v3828, %v3829
        %v3831 = vand.u32 %v3830, 4294901760
        %3832 = vmatpush1.msra.mxu0 %v3831
        %3833 = vmatprep.subr.mxu0 0.0
        %3834 = vmatpush1.msra.mxu0 0.0
        %3835 = vmatprep.subr.mxu0 0.0
        %3836 = vmatpush1.msra.mxu0 0.0
        %3837 = vmatprep.subr.mxu0 0.0
        %3838 = vmatpush1.msra.mxu0 0.0
        %3839 = vmatprep.subr.mxu0 0.0
        %3840 = vmatpush1.msra.mxu0 0.0
        %3841 = vmatprep.subr.mxu0 0.0
        %3842 = vmatpush1.msra.mxu0 0.0
        %3843 = vmatprep.subr.mxu0 0.0
        %3844 = vmatpush1.msra.mxu0 0.0
        %3845 = vmatprep.subr.mxu0 0.0
        %3846 = vmatpush1.msra.mxu0 0.0
        %3847 = vmatprep.subr.mxu0 0.0
        %3848 = vmatpush1.msra.mxu0 0.0
        %3849 = vmatprep.subr.mxu0 0.0
        %3850 = vmatpush1.msra.mxu0 0.0
        %3851 = vmatprep.subr.mxu0 0.0
        %3852 = vmatpush1.msra.mxu0 0.0
        %3853 = vmatprep.subr.mxu0 0.0
        %3854 = vmatpush1.msra.mxu0 0.0
        %3855 = vmatprep.subr.mxu0 0.0
        %3856 = vmatpush1.msra.mxu0 0.0
        %3857 = vmatprep.subr.mxu0 0.0
        %3858 = vmatpush1.msra.mxu0 0.0
        %3859 = vmatprep.subr.mxu0 0.0
        %3860 = vmatpush1.msra.mxu0 0.0
        %3861 = vmatprep.subr.mxu0 0.0
        %3862 = vmatpush1.msra.mxu0 0.0
        %3863 = vmatprep.subr.mxu0 0.0
        %3864 = vmatpush1.msra.mxu0 0.0
        %3865 = vmatprep.subr.mxu0 0.0
        %3866 = vmatpush1.msra.mxu0 0.0
        %3867 = vmatprep.subr.mxu0 0.0
        %3868 = vmatpush1.msra.mxu0 0.0
        %3869 = vmatprep.subr.mxu0 0.0
        %3870 = vmatpush1.msra.mxu0 0.0
        %3871 = vmatprep.subr.mxu0 0.0
        %3872 = vmatpush1.msra.mxu0 0.0
        %3873 = vmatprep.subr.mxu0 0.0
        %3874 = vmatpush1.msra.mxu0 0.0
        %3875 = vmatprep.subr.mxu0 0.0
        %3876 = vmatpush1.msra.mxu0 0.0
        %3877 = vmatprep.subr.mxu0 0.0
        %3878 = vmatpush1.msra.mxu0 0.0
        %3879 = vmatprep.subr.mxu0 0.0
        %3880 = vmatpush1.msra.mxu0 0.0
        %3881 = vmatprep.subr.mxu0 0.0
        %3882 = vmatpush1.msra.mxu0 0.0
        %3883 = vmatprep.subr.mxu0 0.0
        %3884 = vmatpush1.msra.mxu0 0.0
        %3885 = vmatprep.subr.mxu0 0.0
        %3886 = vmatpush1.msra.mxu0 0.0
        %3887 = vmatprep.subr.mxu0 0.0
        %3888 = vmatpush1.msra.mxu0 0.0
        %3889 = vmatprep.subr.mxu0 0.0
        %3890 = vmatpush1.msra.mxu0 0.0
        %3891 = vmatprep.subr.mxu0 0.0
        %3892 = vmatpush1.msra.mxu0 0.0
        %3893 = vmatprep.subr.mxu0 0.0
        %3894 = vmatpush1.msra.mxu0 0.0
        %3895 = vmatprep.mubr.f32.mxu0 0.0
        %v3896 = vand.u32 %v3720, 4294901760
        %3897 = vmatmul.mubr.f32.gmra.mrb[0].mxu0 %v3896
        %v3898 = vpop.f32.mrb[0].mxu0
        %v3899 = vadd.f32 %v3806, %v3898
        %v3900 = vpop.f32.mrb[0].mxu0
        %v3901 = vadd.f32 %v3808, %v3900
        %3902 = vmatprep.mubr.f32.mxu0 0.0
        %v3903 = vand.u32 %v3723, 4294901760
        %3904 = vmatmul.mubr.f32.gmra.mrb[0].mxu0 %v3903
        %v3905 = vpop.f32.mrb[0].mxu0
        %v3906 = vadd.f32 %v3817, %v3905
        %v3907 = vpop.f32.mrb[0].mxu0
        %v3908 = vadd.f32 %v3819, %v3907
        %3909 = vdwg.mxu0
        %v3910 = vand.u32 %v3730, 4294901760
        %v3911 = vsub.f32 %v3730, %v3910
        %3912 = vmatprep.subr.mxu0 %v3911
        %v3913 = vand.u32 %v3727, 4294901760
        %v3914 = vsub.f32 %v3727, %v3913
        %3915 = vmatpush1.msra.mxu0 %v3914
        %3916 = vmatprep.subr.mxu0 0.0
        %3917 = vmatpush1.msra.mxu0 0.0
        %3918 = vmatprep.subr.mxu0 0.0
        %3919 = vmatpush1.msra.mxu0 0.0
        %3920 = vmatprep.subr.mxu0 0.0
        %3921 = vmatpush1.msra.mxu0 0.0
        %3922 = vmatprep.subr.mxu0 0.0
        %3923 = vmatpush1.msra.mxu0 0.0
        %3924 = vmatprep.subr.mxu0 0.0
        %3925 = vmatpush1.msra.mxu0 0.0
        %3926 = vmatprep.subr.mxu0 0.0
        %3927 = vmatpush1.msra.mxu0 0.0
        %3928 = vmatprep.subr.mxu0 0.0
        %3929 = vmatpush1.msra.mxu0 0.0
        %3930 = vmatprep.subr.mxu0 0.0
        %3931 = vmatpush1.msra.mxu0 0.0
        %3932 = vmatprep.subr.mxu0 0.0
        %3933 = vmatpush1.msra.mxu0 0.0
        %3934 = vmatprep.subr.mxu0 0.0
        %3935 = vmatpush1.msra.mxu0 0.0
        %3936 = vmatprep.subr.mxu0 0.0
        %3937 = vmatpush1.msra.mxu0 0.0
        %3938 = vmatprep.subr.mxu0 0.0
        %3939 = vmatpush1.msra.mxu0 0.0
        %3940 = vmatprep.subr.mxu0 0.0
        %3941 = vmatpush1.msra.mxu0 0.0
        %3942 = vmatprep.subr.mxu0 0.0
        %3943 = vmatpush1.msra.mxu0 0.0
        %3944 = vmatprep.subr.mxu0 0.0
        %3945 = vmatpush1.msra.mxu0 0.0
        %3946 = vmatprep.subr.mxu0 0.0
        %3947 = vmatpush1.msra.mxu0 0.0
        %3948 = vmatprep.subr.mxu0 0.0
        %3949 = vmatpush1.msra.mxu0 0.0
        %3950 = vmatprep.subr.mxu0 0.0
        %3951 = vmatpush1.msra.mxu0 0.0
        %3952 = vmatprep.subr.mxu0 0.0
        %3953 = vmatpush1.msra.mxu0 0.0
        %3954 = vmatprep.subr.mxu0 0.0
        %3955 = vmatpush1.msra.mxu0 0.0
        %3956 = vmatprep.subr.mxu0 0.0
        %3957 = vmatpush1.msra.mxu0 0.0
        %3958 = vmatprep.subr.mxu0 0.0
        %3959 = vmatpush1.msra.mxu0 0.0
        %3960 = vmatprep.subr.mxu0 0.0
        %3961 = vmatpush1.msra.mxu0 0.0
        %3962 = vmatprep.subr.mxu0 0.0
        %3963 = vmatpush1.msra.mxu0 0.0
        %3964 = vmatprep.subr.mxu0 0.0
        %3965 = vmatpush1.msra.mxu0 0.0
        %3966 = vmatprep.subr.mxu0 0.0
        %3967 = vmatpush1.msra.mxu0 0.0
        %3968 = vmatprep.subr.mxu0 0.0
        %3969 = vmatpush1.msra.mxu0 0.0
        %3970 = vmatprep.subr.mxu0 0.0
        %3971 = vmatpush1.msra.mxu0 0.0
        %3972 = vmatprep.subr.mxu0 0.0
        %3973 = vmatpush1.msra.mxu0 0.0
        %3974 = vmatprep.subr.mxu0 0.0
        %3975 = vmatpush1.msra.mxu0 0.0
        %3976 = vmatprep.subr.mxu0 0.0
        %3977 = vmatpush1.msra.mxu0 0.0
        %3978 = vmatprep.mubr.f32.mxu0 0.0
        %v3979 = vand.u32 %v3720, 4294901760
        %v3980 = vsub.f32 %v3720, %v3979
        %3981 = vmatmul.mubr.f32.gmra.mrb[0].mxu0 %v3980
        %v3982 = vpop.f32.mrb[0].mxu0
        %v3983 = vadd.f32 %v3899, %v3982
        %v3984 = vpop.f32.mrb[0].mxu0
        %v3985 = vadd.f32 %v3901, %v3984
        %3986 = vmatprep.mubr.f32.mxu0 0.0
        %v3987 = vand.u32 %v3723, 4294901760
        %v3988 = vsub.f32 %v3723, %v3987
        %3989 = vmatmul.mubr.f32.gmra.mrb[0].mxu0 %v3988
        %v3990 = vpop.f32.mrb[0].mxu0
        %v3991 = vadd.f32 %v3906, %v3990
        %v3992 = vpop.f32.mrb[0].mxu0
        %v3993 = vadd.f32 %v3908, %v3992
        %3994 = vdwg.mxu0
        %v3995 = vand.u32 %v3730, 4294901760
        %3996 = vmatprep.subr.mxu0 %v3995
        %v3997 = vand.u32 %v3727, 4294901760
        %3998 = vmatpush1.msra.mxu0 %v3997
        %3999 = vmatprep.subr.mxu0 0.0
        %4000 = vmatpush1.msra.mxu0 0.0
        %4001 = vmatprep.subr.mxu0 0.0
        %4002 = vmatpush1.msra.mxu0 0.0
        %4003 = vmatprep.subr.mxu0 0.0
        %4004 = vmatpush1.msra.mxu0 0.0
        %4005 = vmatprep.subr.mxu0 0.0
        %4006 = vmatpush1.msra.mxu0 0.0
        %4007 = vmatprep.subr.mxu0 0.0
        %4008 = vmatpush1.msra.mxu0 0.0
        %4009 = vmatprep.subr.mxu0 0.0
        %4010 = vmatpush1.msra.mxu0 0.0
        %4011 = vmatprep.subr.mxu0 0.0
        %4012 = vmatpush1.msra.mxu0 0.0
        %4013 = vmatprep.subr.mxu0 0.0
        %4014 = vmatpush1.msra.mxu0 0.0
        %4015 = vmatprep.subr.mxu0 0.0
        %4016 = vmatpush1.msra.mxu0 0.0
        %4017 = vmatprep.subr.mxu0 0.0
        %4018 = vmatpush1.msra.mxu0 0.0
        %4019 = vmatprep.subr.mxu0 0.0
        %4020 = vmatpush1.msra.mxu0 0.0
        %4021 = vmatprep.subr.mxu0 0.0
        %4022 = vmatpush1.msra.mxu0 0.0
        %4023 = vmatprep.subr.mxu0 0.0
        %4024 = vmatpush1.msra.mxu0 0.0
        %4025 = vmatprep.subr.mxu0 0.0
        %4026 = vmatpush1.msra.mxu0 0.0
        %4027 = vmatprep.subr.mxu0 0.0
        %4028 = vmatpush1.msra.mxu0 0.0
        %4029 = vmatprep.subr.mxu0 0.0
        %4030 = vmatpush1.msra.mxu0 0.0
        %4031 = vmatprep.subr.mxu0 0.0
        %4032 = vmatpush1.msra.mxu0 0.0
        %4033 = vmatprep.subr.mxu0 0.0
        %4034 = vmatpush1.msra.mxu0 0.0
        %4035 = vmatprep.subr.mxu0 0.0
        %4036 = vmatpush1.msra.mxu0 0.0
        %4037 = vmatprep.subr.mxu0 0.0
        %4038 = vmatpush1.msra.mxu0 0.0
        %4039 = vmatprep.subr.mxu0 0.0
        %4040 = vmatpush1.msra.mxu0 0.0
        %4041 = vmatprep.subr.mxu0 0.0
        %4042 = vmatpush1.msra.mxu0 0.0
        %4043 = vmatprep.subr.mxu0 0.0
        %4044 = vmatpush1.msra.mxu0 0.0
        %4045 = vmatprep.subr.mxu0 0.0
        %4046 = vmatpush1.msra.mxu0 0.0
        %4047 = vmatprep.subr.mxu0 0.0
        %4048 = vmatpush1.msra.mxu0 0.0
        %4049 = vmatprep.subr.mxu0 0.0
        %4050 = vmatpush1.msra.mxu0 0.0
        %4051 = vmatprep.subr.mxu0 0.0
        %4052 = vmatpush1.msra.mxu0 0.0
        %4053 = vmatprep.subr.mxu0 0.0
        %4054 = vmatpush1.msra.mxu0 0.0
        %4055 = vmatprep.subr.mxu0 0.0
        %4056 = vmatpush1.msra.mxu0 0.0
        %4057 = vmatprep.subr.mxu0 0.0
        %4058 = vmatpush1.msra.mxu0 0.0
        %4059 = vmatprep.subr.mxu0 0.0
        %4060 = vmatpush1.msra.mxu0 0.0
        %4061 = vmatprep.mubr.f32.mxu0 0.0
        %v4062 = vand.u32 %v3720, 4294901760
        %v4063 = vsub.f32 %v3720, %v4062
        %v4064 = vand.u32 %v4063, 4294901760
        %4065 = vmatmul.mubr.f32.gmra.mrb[0].mxu0 %v4064
        %v4066 = vpop.f32.mrb[0].mxu0
        %v4067 = vadd.f32 %v3983, %v4066
        %v4068 = vpop.f32.mrb[0].mxu0
        %v4069 = vadd.f32 %v3985, %v4068
        %4070 = vmatprep.mubr.f32.mxu0 0.0
        %v4071 = vand.u32 %v3723, 4294901760
        %v4072 = vsub.f32 %v3723, %v4071
        %v4073 = vand.u32 %v4072, 4294901760
        %4074 = vmatmul.mubr.f32.gmra.mrb[0].mxu0 %v4073
        %v4075 = vpop.f32.mrb[0].mxu0
        %v4076 = vadd.f32 %v3991, %v4075
        %v4077 = vpop.f32.mrb[0].mxu0
        %v4078 = vadd.f32 %v3993, %v4077
        %4079 = vdwg.mxu0
        %v4080 = vand.u32 %v3730, 4294901760
        %v4081 = vsub.f32 %v3730, %v4080
        %v4082 = vand.u32 %v4081, 4294901760
        %4083 = vmatprep.subr.mxu0 %v4082
        %v4084 = vand.u32 %v3727, 4294901760
        %v4085 = vsub.f32 %v3727, %v4084
        %v4086 = vand.u32 %v4085, 4294901760
        %4087 = vmatpush1.msra.mxu0 %v4086
        %4088 = vmatprep.subr.mxu0 0.0
        %4089 = vmatpush1.msra.mxu0 0.0
        %4090 = vmatprep.subr.mxu0 0.0
        %4091 = vmatpush1.msra.mxu0 0.0
        %4092 = vmatprep.subr.mxu0 0.0
        %4093 = vmatpush1.msra.mxu0 0.0
        %4094 = vmatprep.subr.mxu0 0.0
        %4095 = vmatpush1.msra.mxu0 0.0
        %4096 = vmatprep.subr.mxu0 0.0
        %4097 = vmatpush1.msra.mxu0 0.0
        %4098 = vmatprep.subr.mxu0 0.0
        %4099 = vmatpush1.msra.mxu0 0.0
        %4100 = vmatprep.subr.mxu0 0.0
        %4101 = vmatpush1.msra.mxu0 0.0
        %4102 = vmatprep.subr.mxu0 0.0
        %4103 = vmatpush1.msra.mxu0 0.0
        %4104 = vmatprep.subr.mxu0 0.0
        %4105 = vmatpush1.msra.mxu0 0.0
        %4106 = vmatprep.subr.mxu0 0.0
        %4107 = vmatpush1.msra.mxu0 0.0
        %4108 = vmatprep.subr.mxu0 0.0
        %4109 = vmatpush1.msra.mxu0 0.0
        %4110 = vmatprep.subr.mxu0 0.0
        %4111 = vmatpush1.msra.mxu0 0.0
        %4112 = vmatprep.subr.mxu0 0.0
        %4113 = vmatpush1.msra.mxu0 0.0
        %4114 = vmatprep.subr.mxu0 0.0
        %4115 = vmatpush1.msra.mxu0 0.0
        %4116 = vmatprep.subr.mxu0 0.0
        %4117 = vmatpush1.msra.mxu0 0.0
        %4118 = vmatprep.subr.mxu0 0.0
        %4119 = vmatpush1.msra.mxu0 0.0
        %4120 = vmatprep.subr.mxu0 0.0
        %4121 = vmatpush1.msra.mxu0 0.0
        %4122 = vmatprep.subr.mxu0 0.0
        %4123 = vmatpush1.msra.mxu0 0.0
        %4124 = vmatprep.subr.mxu0 0.0
        %4125 = vmatpush1.msra.mxu0 0.0
        %4126 = vmatprep.subr.mxu0 0.0
        %4127 = vmatpush1.msra.mxu0 0.0
        %4128 = vmatprep.subr.mxu0 0.0
        %4129 = vmatpush1.msra.mxu0 0.0
        %4130 = vmatprep.subr.mxu0 0.0
        %4131 = vmatpush1.msra.mxu0 0.0
        %4132 = vmatprep.subr.mxu0 0.0
        %4133 = vmatpush1.msra.mxu0 0.0
        %4134 = vmatprep.subr.mxu0 0.0
        %4135 = vmatpush1.msra.mxu0 0.0
        %4136 = vmatprep.subr.mxu0 0.0
        %4137 = vmatpush1.msra.mxu0 0.0
        %4138 = vmatprep.subr.mxu0 0.0
        %4139 = vmatpush1.msra.mxu0 0.0
        %4140 = vmatprep.subr.mxu0 0.0
        %4141 = vmatpush1.msra.mxu0 0.0
        %4142 = vmatprep.subr.mxu0 0.0
        %4143 = vmatpush1.msra.mxu0 0.0
        %4144 = vmatprep.subr.mxu0 0.0
        %4145 = vmatpush1.msra.mxu0 0.0
        %4146 = vmatprep.subr.mxu0 0.0
        %4147 = vmatpush1.msra.mxu0 0.0
        %4148 = vmatprep.subr.mxu0 0.0
        %4149 = vmatpush1.msra.mxu0 0.0
        %4150 = vmatprep.mubr.f32.mxu0 0.0
        %v4151 = vand.u32 %v3720, 4294901760
        %4152 = vmatmul.mubr.f32.gmra.mrb[0].mxu0 %v4151
        %v4153 = vpop.f32.mrb[0].mxu0
        %v4154 = vadd.f32 %v4067, %v4153
        %v4155 = vpop.f32.mrb[0].mxu0
        %v4156 = vadd.f32 %v4069, %v4155
        %4157 = vmatprep.mubr.f32.mxu0 0.0
        %v4158 = vand.u32 %v3723, 4294901760
        %4159 = vmatmul.mubr.f32.gmra.mrb[0].mxu0 %v4158
        %v4160 = vpop.f32.mrb[0].mxu0
        %v4161 = vadd.f32 %v4076, %v4160
        %v4162 = vpop.f32.mrb[0].mxu0
        %v4163 = vadd.f32 %v4078, %v4162
        %4164 = vdwg.mxu0
        %v4165 = vand.u32 %v3730, 4294901760
        %4166 = vmatprep.subr.mxu0 %v4165
        %v4167 = vand.u32 %v3727, 4294901760
        %4168 = vmatpush1.msra.mxu0 %v4167
        %4169 = vmatprep.subr.mxu0 0.0
        %4170 = vmatpush1.msra.mxu0 0.0
        %4171 = vmatprep.subr.mxu0 0.0
        %4172 = vmatpush1.msra.mxu0 0.0
        %4173 = vmatprep.subr.mxu0 0.0
        %4174 = vmatpush1.msra.mxu0 0.0
        %4175 = vmatprep.subr.mxu0 0.0
        %4176 = vmatpush1.msra.mxu0 0.0
        %4177 = vmatprep.subr.mxu0 0.0
        %4178 = vmatpush1.msra.mxu0 0.0
        %4179 = vmatprep.subr.mxu0 0.0
        %4180 = vmatpush1.msra.mxu0 0.0
        %4181 = vmatprep.subr.mxu0 0.0
        %4182 = vmatpush1.msra.mxu0 0.0
        %4183 = vmatprep.subr.mxu0 0.0
        %4184 = vmatpush1.msra.mxu0 0.0
        %4185 = vmatprep.subr.mxu0 0.0
        %4186 = vmatpush1.msra.mxu0 0.0
        %4187 = vmatprep.subr.mxu0 0.0
        %4188 = vmatpush1.msra.mxu0 0.0
        %4189 = vmatprep.subr.mxu0 0.0
        %4190 = vmatpush1.msra.mxu0 0.0
        %4191 = vmatprep.subr.mxu0 0.0
        %4192 = vmatpush1.msra.mxu0 0.0
        %4193 = vmatprep.subr.mxu0 0.0
        %4194 = vmatpush1.msra.mxu0 0.0
        %4195 = vmatprep.subr.mxu0 0.0
        %4196 = vmatpush1.msra.mxu0 0.0
        %4197 = vmatprep.subr.mxu0 0.0
        %4198 = vmatpush1.msra.mxu0 0.0
        %4199 = vmatprep.subr.mxu0 0.0
        %4200 = vmatpush1.msra.mxu0 0.0
        %4201 = vmatprep.subr.mxu0 0.0
        %4202 = vmatpush1.msra.mxu0 0.0
        %4203 = vmatprep.subr.mxu0 0.0
        %4204 = vmatpush1.msra.mxu0 0.0
        %4205 = vmatprep.subr.mxu0 0.0
        %4206 = vmatpush1.msra.mxu0 0.0
        %4207 = vmatprep.subr.mxu0 0.0
        %4208 = vmatpush1.msra.mxu0 0.0
        %4209 = vmatprep.subr.mxu0 0.0
        %4210 = vmatpush1.msra.mxu0 0.0
        %4211 = vmatprep.subr.mxu0 0.0
        %4212 = vmatpush1.msra.mxu0 0.0
        %4213 = vmatprep.subr.mxu0 0.0
        %4214 = vmatpush1.msra.mxu0 0.0
        %4215 = vmatprep.subr.mxu0 0.0
        %4216 = vmatpush1.msra.mxu0 0.0
        %4217 = vmatprep.subr.mxu0 0.0
        %4218 = vmatpush1.msra.mxu0 0.0
        %4219 = vmatprep.subr.mxu0 0.0
        %4220 = vmatpush1.msra.mxu0 0.0
        %4221 = vmatprep.subr.mxu0 0.0
        %4222 = vmatpush1.msra.mxu0 0.0
        %4223 = vmatprep.subr.mxu0 0.0
        %4224 = vmatpush1.msra.mxu0 0.0
        %4225 = vmatprep.subr.mxu0 0.0
        %4226 = vmatpush1.msra.mxu0 0.0
        %4227 = vmatprep.subr.mxu0 0.0
        %4228 = vmatpush1.msra.mxu0 0.0
        %4229 = vmatprep.subr.mxu0 0.0
        %4230 = vmatpush1.msra.mxu0 0.0
        %4231 = vmatprep.mubr.f32.mxu0 0.0
        %v4232 = vand.u32 %v3720, 4294901760
        %4233 = vmatmul.mubr.f32.gmra.mrb[0].mxu0 %v4232
        %v4234 = vpop.f32.mrb[0].mxu0
        %v4235 = vadd.f32 %v4154, %v4234
        %v4236 = vpop.f32.mrb[0].mxu0
        %v4237 = vadd.f32 %v4156, %v4236
        %4238 = vmatprep.mubr.f32.mxu0 0.0
        %v4239 = vand.u32 %v3723, 4294901760
        %4240 = vmatmul.mubr.f32.gmra.mrb[0].mxu0 %v4239
        %v4241 = vpop.f32.mrb[0].mxu0
        %v4242 = vadd.f32 %v4161, %v4241
        %v4243 = vpop.f32.mrb[0].mxu0
        %v4244 = vadd.f32 %v4163, %v4243
        %4245 = vdwg.mxu0
        %v4246 = vmul.f32 %v3198, %v4235
        %v4247 = vmul.f32 %v3199, %v4237
        %v4248 = vmul.f32 %v3200, %v4242
        %v4249 = vmul.f32 %v3201, %v4244
        %v4250 = vld [vmem:[%s3] sm:$0xff]
        %v4251 = vld [vmem:[%s3 + $0x8] sm:$0xff]
        %v4252 = vld [vmem:[%s4] sm:$0xff]
        %v4253 = vld [vmem:[%s4 + $0x8] sm:$0xff]
        %4255 = vset.pattern.permute.xlu0 0
        %4256 = vperm.xlu0 %4255, %v4252
        %v4257 = vpop.permute.xlu0 %4256
        %4260 = vset.pattern.permute.xlu0 0
        %4261 = vperm.xlu0 %4260, %v4253
        %v4262 = vpop.permute.xlu0 %4261
        %v4265 = vsel %vm3203, %v4250, 0
        %v4268 = vsel %vm3203, %v4251, 0
        %v4270 = vand.u32 %v4247, 4294901760
        %4271 = vmatprep.subr.mxu0 %v4270
        %v4272 = vand.u32 %v4246, 4294901760
        %4273 = vmatpush1.msra.mxu0 %v4272
        %v4274 = vand.u32 %v4249, 4294901760
        %4275 = vmatprep.subr.mxu0 %v4274
        %v4276 = vand.u32 %v4248, 4294901760
        %4277 = vmatpush1.msra.mxu0 %v4276
        %4278 = vmatprep.subr.mxu0 0.0
        %4279 = vmatpush1.msra.mxu0 0.0
        %4280 = vmatprep.subr.mxu0 0.0
        %4281 = vmatpush1.msra.mxu0 0.0
        %4282 = vmatprep.subr.mxu0 0.0
        %4283 = vmatpush1.msra.mxu0 0.0
        %4284 = vmatprep.subr.mxu0 0.0
        %4285 = vmatpush1.msra.mxu0 0.0
        %4286 = vmatprep.subr.mxu0 0.0
        %4287 = vmatpush1.msra.mxu0 0.0
        %4288 = vmatprep.subr.mxu0 0.0
        %4289 = vmatpush1.msra.mxu0 0.0
        %4290 = vmatprep.subr.mxu0 0.0
        %4291 = vmatpush1.msra.mxu0 0.0
        %4292 = vmatprep.subr.mxu0 0.0
        %4293 = vmatpush1.msra.mxu0 0.0
        %4294 = vmatprep.subr.mxu0 0.0
        %4295 = vmatpush1.msra.mxu0 0.0
        %4296 = vmatprep.subr.mxu0 0.0
        %4297 = vmatpush1.msra.mxu0 0.0
        %4298 = vmatprep.subr.mxu0 0.0
        %4299 = vmatpush1.msra.mxu0 0.0
        %4300 = vmatprep.subr.mxu0 0.0
        %4301 = vmatpush1.msra.mxu0 0.0
        %4302 = vmatprep.subr.mxu0 0.0
        %4303 = vmatpush1.msra.mxu0 0.0
        %4304 = vmatprep.subr.mxu0 0.0
        %4305 = vmatpush1.msra.mxu0 0.0
        %4306 = vmatprep.subr.mxu0 0.0
        %4307 = vmatpush1.msra.mxu0 0.0
        %4308 = vmatprep.subr.mxu0 0.0
        %4309 = vmatpush1.msra.mxu0 0.0
        %4310 = vmatprep.subr.mxu0 0.0
        %4311 = vmatpush1.msra.mxu0 0.0
        %4312 = vmatprep.subr.mxu0 0.0
        %4313 = vmatpush1.msra.mxu0 0.0
        %4314 = vmatprep.subr.mxu0 0.0
        %4315 = vmatpush1.msra.mxu0 0.0
        %4316 = vmatprep.subr.mxu0 0.0
        %4317 = vmatpush1.msra.mxu0 0.0
        %4318 = vmatprep.subr.mxu0 0.0
        %4319 = vmatpush1.msra.mxu0 0.0
        %4320 = vmatprep.subr.mxu0 0.0
        %4321 = vmatpush1.msra.mxu0 0.0
        %4322 = vmatprep.subr.mxu0 0.0
        %4323 = vmatpush1.msra.mxu0 0.0
        %4324 = vmatprep.subr.mxu0 0.0
        %4325 = vmatpush1.msra.mxu0 0.0
        %4326 = vmatprep.subr.mxu0 0.0
        %4327 = vmatpush1.msra.mxu0 0.0
        %4328 = vmatprep.subr.mxu0 0.0
        %4329 = vmatpush1.msra.mxu0 0.0
        %4330 = vmatprep.subr.mxu0 0.0
        %4331 = vmatpush1.msra.mxu0 0.0
        %4332 = vmatprep.subr.mxu0 0.0
        %4333 = vmatpush1.msra.mxu0 0.0
        %4334 = vmatprep.subr.mxu0 0.0
        %4335 = vmatpush1.msra.mxu0 0.0
        %4336 = vmatprep.subr.mxu0 0.0
        %4337 = vmatpush1.msra.mxu0 0.0
        %4338 = vmatprep.mubr.f32.mxu0 0.0
        %v4339 = vand.u32 %v4265, 4294901760
        %v4340 = vsub.f32 %v4265, %v4339
        %v4341 = vand.u32 %v4340, 4294901760
        %v4342 = vsub.f32 %v4340, %v4341
        %v4343 = vand.u32 %v4342, 4294901760
        %4344 = vmatmul.mubr.f32.gmra.mrb[0].mxu0 %v4343
        %v4345 = vpop.f32.mrb[0].mxu0
        %v4346 = vadd.f32 %v4257, %v4345
        %v4347 = vpop.f32.mrb[0].mxu0
        %v4348 = vadd.f32 %v4257, %v4347
        %4349 = vmatprep.mubr.f32.mxu0 0.0
        %v4350 = vand.u32 %v4268, 4294901760
        %v4351 = vsub.f32 %v4268, %v4350
        %v4352 = vand.u32 %v4351, 4294901760
        %v4353 = vsub.f32 %v4351, %v4352
        %v4354 = vand.u32 %v4353, 4294901760
        %4355 = vmatmul.mubr.f32.gmra.mrb[0].mxu0 %v4354
        %v4356 = vpop.f32.mrb[0].mxu0
        %v4357 = vadd.f32 %v4262, %v4356
        %v4358 = vpop.f32.mrb[0].mxu0
        %v4359 = vadd.f32 %v4262, %v4358
        %4360 = vdwg.mxu0
        %v4361 = vand.u32 %v4247, 4294901760
        %v4362 = vsub.f32 %v4247, %v4361
        %v4363 = vand.u32 %v4362, 4294901760
        %v4364 = vsub.f32 %v4362, %v4363
        %v4365 = vand.u32 %v4364, 4294901760
        %4366 = vmatprep.subr.mxu0 %v4365
        %v4367 = vand.u32 %v4246, 4294901760
        %v4368 = vsub.f32 %v4246, %v4367
        %v4369 = vand.u32 %v4368, 4294901760
        %v4370 = vsub.f32 %v4368, %v4369
        %v4371 = vand.u32 %v4370, 4294901760
        %4372 = vmatpush1.msra.mxu0 %v4371
        %v4373 = vand.u32 %v4249, 4294901760
        %v4374 = vsub.f32 %v4249, %v4373
        %v4375 = vand.u32 %v4374, 4294901760
        %v4376 = vsub.f32 %v4374, %v4375
        %v4377 = vand.u32 %v4376, 4294901760
        %4378 = vmatprep.subr.mxu0 %v4377
        %v4379 = vand.u32 %v4248, 4294901760
        %v4380 = vsub.f32 %v4248, %v4379
        %v4381 = vand.u32 %v4380, 4294901760
        %v4382 = vsub.f32 %v4380, %v4381
        %v4383 = vand.u32 %v4382, 4294901760
        %4384 = vmatpush1.msra.mxu0 %v4383
        %4385 = vmatprep.subr.mxu0 0.0
        %4386 = vmatpush1.msra.mxu0 0.0
        %4387 = vmatprep.subr.mxu0 0.0
        %4388 = vmatpush1.msra.mxu0 0.0
        %4389 = vmatprep.subr.mxu0 0.0
        %4390 = vmatpush1.msra.mxu0 0.0
        %4391 = vmatprep.subr.mxu0 0.0
        %4392 = vmatpush1.msra.mxu0 0.0
        %4393 = vmatprep.subr.mxu0 0.0
        %4394 = vmatpush1.msra.mxu0 0.0
        %4395 = vmatprep.subr.mxu0 0.0
        %4396 = vmatpush1.msra.mxu0 0.0
        %4397 = vmatprep.subr.mxu0 0.0
        %4398 = vmatpush1.msra.mxu0 0.0
        %4399 = vmatprep.subr.mxu0 0.0
        %4400 = vmatpush1.msra.mxu0 0.0
        %4401 = vmatprep.subr.mxu0 0.0
        %4402 = vmatpush1.msra.mxu0 0.0
        %4403 = vmatprep.subr.mxu0 0.0
        %4404 = vmatpush1.msra.mxu0 0.0
        %4405 = vmatprep.subr.mxu0 0.0
        %4406 = vmatpush1.msra.mxu0 0.0
        %4407 = vmatprep.subr.mxu0 0.0
        %4408 = vmatpush1.msra.mxu0 0.0
        %4409 = vmatprep.subr.mxu0 0.0
        %4410 = vmatpush1.msra.mxu0 0.0
        %4411 = vmatprep.subr.mxu0 0.0
        %4412 = vmatpush1.msra.mxu0 0.0
        %4413 = vmatprep.subr.mxu0 0.0
        %4414 = vmatpush1.msra.mxu0 0.0
        %4415 = vmatprep.subr.mxu0 0.0
        %4416 = vmatpush1.msra.mxu0 0.0
        %4417 = vmatprep.subr.mxu0 0.0
        %4418 = vmatpush1.msra.mxu0 0.0
        %4419 = vmatprep.subr.mxu0 0.0
        %4420 = vmatpush1.msra.mxu0 0.0
        %4421 = vmatprep.subr.mxu0 0.0
        %4422 = vmatpush1.msra.mxu0 0.0
        %4423 = vmatprep.subr.mxu0 0.0
        %4424 = vmatpush1.msra.mxu0 0.0
        %4425 = vmatprep.subr.mxu0 0.0
        %4426 = vmatpush1.msra.mxu0 0.0
        %4427 = vmatprep.subr.mxu0 0.0
        %4428 = vmatpush1.msra.mxu0 0.0
        %4429 = vmatprep.subr.mxu0 0.0
        %4430 = vmatpush1.msra.mxu0 0.0
        %4431 = vmatprep.subr.mxu0 0.0
        %4432 = vmatpush1.msra.mxu0 0.0
        %4433 = vmatprep.subr.mxu0 0.0
        %4434 = vmatpush1.msra.mxu0 0.0
        %4435 = vmatprep.subr.mxu0 0.0
        %4436 = vmatpush1.msra.mxu0 0.0
        %4437 = vmatprep.subr.mxu0 0.0
        %4438 = vmatpush1.msra.mxu0 0.0
        %4439 = vmatprep.subr.mxu0 0.0
        %4440 = vmatpush1.msra.mxu0 0.0
        %4441 = vmatprep.subr.mxu0 0.0
        %4442 = vmatpush1.msra.mxu0 0.0
        %4443 = vmatprep.subr.mxu0 0.0
        %4444 = vmatpush1.msra.mxu0 0.0
        %4445 = vmatprep.mubr.f32.mxu0 0.0
        %v4446 = vand.u32 %v4265, 4294901760
        %4447 = vmatmul.mubr.f32.gmra.mrb[0].mxu0 %v4446
        %v4448 = vpop.f32.mrb[0].mxu0
        %v4449 = vadd.f32 %v4346, %v4448
        %v4450 = vpop.f32.mrb[0].mxu0
        %v4451 = vadd.f32 %v4348, %v4450
        %4452 = vmatprep.mubr.f32.mxu0 0.0
        %v4453 = vand.u32 %v4268, 4294901760
        %4454 = vmatmul.mubr.f32.gmra.mrb[0].mxu0 %v4453
        %v4455 = vpop.f32.mrb[0].mxu0
        %v4456 = vadd.f32 %v4357, %v4455
        %v4457 = vpop.f32.mrb[0].mxu0
        %v4458 = vadd.f32 %v4359, %v4457
        %4459 = vdwg.mxu0
        %v4460 = vand.u32 %v4247, 4294901760
        %v4461 = vsub.f32 %v4247, %v4460
        %4462 = vmatprep.subr.mxu0 %v4461
        %v4463 = vand.u32 %v4246, 4294901760
        %v4464 = vsub.f32 %v4246, %v4463
        %4465 = vmatpush1.msra.mxu0 %v4464
        %v4466 = vand.u32 %v4249, 4294901760
        %v4467 = vsub.f32 %v4249, %v4466
        %4468 = vmatprep.subr.mxu0 %v4467
        %v4469 = vand.u32 %v4248, 4294901760
        %v4470 = vsub.f32 %v4248, %v4469
        %4471 = vmatpush1.msra.mxu0 %v4470
        %4472 = vmatprep.subr.mxu0 0.0
        %4473 = vmatpush1.msra.mxu0 0.0
        %4474 = vmatprep.subr.mxu0 0.0
        %4475 = vmatpush1.msra.mxu0 0.0
        %4476 = vmatprep.subr.mxu0 0.0
        %4477 = vmatpush1.msra.mxu0 0.0
        %4478 = vmatprep.subr.mxu0 0.0
        %4479 = vmatpush1.msra.mxu0 0.0
        %4480 = vmatprep.subr.mxu0 0.0
        %4481 = vmatpush1.msra.mxu0 0.0
        %4482 = vmatprep.subr.mxu0 0.0
        %4483 = vmatpush1.msra.mxu0 0.0
        %4484 = vmatprep.subr.mxu0 0.0
        %4485 = vmatpush1.msra.mxu0 0.0
        %4486 = vmatprep.subr.mxu0 0.0
        %4487 = vmatpush1.msra.mxu0 0.0
        %4488 = vmatprep.subr.mxu0 0.0
        %4489 = vmatpush1.msra.mxu0 0.0
        %4490 = vmatprep.subr.mxu0 0.0
        %4491 = vmatpush1.msra.mxu0 0.0
        %4492 = vmatprep.subr.mxu0 0.0
        %4493 = vmatpush1.msra.mxu0 0.0
        %4494 = vmatprep.subr.mxu0 0.0
        %4495 = vmatpush1.msra.mxu0 0.0
        %4496 = vmatprep.subr.mxu0 0.0
        %4497 = vmatpush1.msra.mxu0 0.0
        %4498 = vmatprep.subr.mxu0 0.0
        %4499 = vmatpush1.msra.mxu0 0.0
        %4500 = vmatprep.subr.mxu0 0.0
        %4501 = vmatpush1.msra.mxu0 0.0
        %4502 = vmatprep.subr.mxu0 0.0
        %4503 = vmatpush1.msra.mxu0 0.0
        %4504 = vmatprep.subr.mxu0 0.0
        %4505 = vmatpush1.msra.mxu0 0.0
        %4506 = vmatprep.subr.mxu0 0.0
        %4507 = vmatpush1.msra.mxu0 0.0
        %4508 = vmatprep.subr.mxu0 0.0
        %4509 = vmatpush1.msra.mxu0 0.0
        %4510 = vmatprep.subr.mxu0 0.0
        %4511 = vmatpush1.msra.mxu0 0.0
        %4512 = vmatprep.subr.mxu0 0.0
        %4513 = vmatpush1.msra.mxu0 0.0
        %4514 = vmatprep.subr.mxu0 0.0
        %4515 = vmatpush1.msra.mxu0 0.0
        %4516 = vmatprep.subr.mxu0 0.0
        %4517 = vmatpush1.msra.mxu0 0.0
        %4518 = vmatprep.subr.mxu0 0.0
        %4519 = vmatpush1.msra.mxu0 0.0
        %4520 = vmatprep.subr.mxu0 0.0
        %4521 = vmatpush1.msra.mxu0 0.0
        %4522 = vmatprep.subr.mxu0 0.0
        %4523 = vmatpush1.msra.mxu0 0.0
        %4524 = vmatprep.subr.mxu0 0.0
        %4525 = vmatpush1.msra.mxu0 0.0
        %4526 = vmatprep.subr.mxu0 0.0
        %4527 = vmatpush1.msra.mxu0 0.0
        %4528 = vmatprep.subr.mxu0 0.0
        %4529 = vmatpush1.msra.mxu0 0.0
        %4530 = vmatprep.subr.mxu0 0.0
        %4531 = vmatpush1.msra.mxu0 0.0
        %4532 = vmatprep.mubr.f32.mxu0 0.0
        %v4533 = vand.u32 %v4265, 4294901760
        %v4534 = vsub.f32 %v4265, %v4533
        %4535 = vmatmul.mubr.f32.gmra.mrb[0].mxu0 %v4534
        %v4536 = vpop.f32.mrb[0].mxu0
        %v4537 = vadd.f32 %v4449, %v4536
        %v4538 = vpop.f32.mrb[0].mxu0
        %v4539 = vadd.f32 %v4451, %v4538
        %4540 = vmatprep.mubr.f32.mxu0 0.0
        %v4541 = vand.u32 %v4268, 4294901760
        %v4542 = vsub.f32 %v4268, %v4541
        %4543 = vmatmul.mubr.f32.gmra.mrb[0].mxu0 %v4542
        %v4544 = vpop.f32.mrb[0].mxu0
        %v4545 = vadd.f32 %v4456, %v4544
        %v4546 = vpop.f32.mrb[0].mxu0
        %v4547 = vadd.f32 %v4458, %v4546
        %4548 = vdwg.mxu0
        %v4549 = vand.u32 %v4247, 4294901760
        %4550 = vmatprep.subr.mxu0 %v4549
        %v4551 = vand.u32 %v4246, 4294901760
        %4552 = vmatpush1.msra.mxu0 %v4551
        %v4553 = vand.u32 %v4249, 4294901760
        %4554 = vmatprep.subr.mxu0 %v4553
        %v4555 = vand.u32 %v4248, 4294901760
        %4556 = vmatpush1.msra.mxu0 %v4555
        %4557 = vmatprep.subr.mxu0 0.0
        %4558 = vmatpush1.msra.mxu0 0.0
        %4559 = vmatprep.subr.mxu0 0.0
        %4560 = vmatpush1.msra.mxu0 0.0
        %4561 = vmatprep.subr.mxu0 0.0
        %4562 = vmatpush1.msra.mxu0 0.0
        %4563 = vmatprep.subr.mxu0 0.0
        %4564 = vmatpush1.msra.mxu0 0.0
        %4565 = vmatprep.subr.mxu0 0.0
        %4566 = vmatpush1.msra.mxu0 0.0
        %4567 = vmatprep.subr.mxu0 0.0
        %4568 = vmatpush1.msra.mxu0 0.0
        %4569 = vmatprep.subr.mxu0 0.0
        %4570 = vmatpush1.msra.mxu0 0.0
        %4571 = vmatprep.subr.mxu0 0.0
        %4572 = vmatpush1.msra.mxu0 0.0
        %4573 = vmatprep.subr.mxu0 0.0
        %4574 = vmatpush1.msra.mxu0 0.0
        %4575 = vmatprep.subr.mxu0 0.0
        %4576 = vmatpush1.msra.mxu0 0.0
        %4577 = vmatprep.subr.mxu0 0.0
        %4578 = vmatpush1.msra.mxu0 0.0
        %4579 = vmatprep.subr.mxu0 0.0
        %4580 = vmatpush1.msra.mxu0 0.0
        %4581 = vmatprep.subr.mxu0 0.0
        %4582 = vmatpush1.msra.mxu0 0.0
        %4583 = vmatprep.subr.mxu0 0.0
        %4584 = vmatpush1.msra.mxu0 0.0
        %4585 = vmatprep.subr.mxu0 0.0
        %4586 = vmatpush1.msra.mxu0 0.0
        %4587 = vmatprep.subr.mxu0 0.0
        %4588 = vmatpush1.msra.mxu0 0.0
        %4589 = vmatprep.subr.mxu0 0.0
        %4590 = vmatpush1.msra.mxu0 0.0
        %4591 = vmatprep.subr.mxu0 0.0
        %4592 = vmatpush1.msra.mxu0 0.0
        %4593 = vmatprep.subr.mxu0 0.0
        %4594 = vmatpush1.msra.mxu0 0.0
        %4595 = vmatprep.subr.mxu0 0.0
        %4596 = vmatpush1.msra.mxu0 0.0
        %4597 = vmatprep.subr.mxu0 0.0
        %4598 = vmatpush1.msra.mxu0 0.0
        %4599 = vmatprep.subr.mxu0 0.0
        %4600 = vmatpush1.msra.mxu0 0.0
        %4601 = vmatprep.subr.mxu0 0.0
        %4602 = vmatpush1.msra.mxu0 0.0
        %4603 = vmatprep.subr.mxu0 0.0
        %4604 = vmatpush1.msra.mxu0 0.0
        %4605 = vmatprep.subr.mxu0 0.0
        %4606 = vmatpush1.msra.mxu0 0.0
        %4607 = vmatprep.subr.mxu0 0.0
        %4608 = vmatpush1.msra.mxu0 0.0
        %4609 = vmatprep.subr.mxu0 0.0
        %4610 = vmatpush1.msra.mxu0 0.0
        %4611 = vmatprep.subr.mxu0 0.0
        %4612 = vmatpush1.msra.mxu0 0.0
        %4613 = vmatprep.subr.mxu0 0.0
        %4614 = vmatpush1.msra.mxu0 0.0
        %4615 = vmatprep.subr.mxu0 0.0
        %4616 = vmatpush1.msra.mxu0 0.0
        %4617 = vmatprep.mubr.f32.mxu0 0.0
        %v4618 = vand.u32 %v4265, 4294901760
        %v4619 = vsub.f32 %v4265, %v4618
        %v4620 = vand.u32 %v4619, 4294901760
        %4621 = vmatmul.mubr.f32.gmra.mrb[0].mxu0 %v4620
        %v4622 = vpop.f32.mrb[0].mxu0
        %v4623 = vadd.f32 %v4537, %v4622
        %v4624 = vpop.f32.mrb[0].mxu0
        %v4625 = vadd.f32 %v4539, %v4624
        %4626 = vmatprep.mubr.f32.mxu0 0.0
        %v4627 = vand.u32 %v4268, 4294901760
        %v4628 = vsub.f32 %v4268, %v4627
        %v4629 = vand.u32 %v4628, 4294901760
        %4630 = vmatmul.mubr.f32.gmra.mrb[0].mxu0 %v4629
        %v4631 = vpop.f32.mrb[0].mxu0
        %v4632 = vadd.f32 %v4545, %v4631
        %v4633 = vpop.f32.mrb[0].mxu0
        %v4634 = vadd.f32 %v4547, %v4633
        %4635 = vdwg.mxu0
        %v4636 = vand.u32 %v4247, 4294901760
        %v4637 = vsub.f32 %v4247, %v4636
        %v4638 = vand.u32 %v4637, 4294901760
        %4639 = vmatprep.subr.mxu0 %v4638
        %v4640 = vand.u32 %v4246, 4294901760
        %v4641 = vsub.f32 %v4246, %v4640
        %v4642 = vand.u32 %v4641, 4294901760
        %4643 = vmatpush1.msra.mxu0 %v4642
        %v4644 = vand.u32 %v4249, 4294901760
        %v4645 = vsub.f32 %v4249, %v4644
        %v4646 = vand.u32 %v4645, 4294901760
        %4647 = vmatprep.subr.mxu0 %v4646
        %v4648 = vand.u32 %v4248, 4294901760
        %v4649 = vsub.f32 %v4248, %v4648
        %v4650 = vand.u32 %v4649, 4294901760
        %4651 = vmatpush1.msra.mxu0 %v4650
        %4652 = vmatprep.subr.mxu0 0.0
        %4653 = vmatpush1.msra.mxu0 0.0
        %4654 = vmatprep.subr.mxu0 0.0
        %4655 = vmatpush1.msra.mxu0 0.0
        %4656 = vmatprep.subr.mxu0 0.0
        %4657 = vmatpush1.msra.mxu0 0.0
        %4658 = vmatprep.subr.mxu0 0.0
        %4659 = vmatpush1.msra.mxu0 0.0
        %4660 = vmatprep.subr.mxu0 0.0
        %4661 = vmatpush1.msra.mxu0 0.0
        %4662 = vmatprep.subr.mxu0 0.0
        %4663 = vmatpush1.msra.mxu0 0.0
        %4664 = vmatprep.subr.mxu0 0.0
        %4665 = vmatpush1.msra.mxu0 0.0
        %4666 = vmatprep.subr.mxu0 0.0
        %4667 = vmatpush1.msra.mxu0 0.0
        %4668 = vmatprep.subr.mxu0 0.0
        %4669 = vmatpush1.msra.mxu0 0.0
        %4670 = vmatprep.subr.mxu0 0.0
        %4671 = vmatpush1.msra.mxu0 0.0
        %4672 = vmatprep.subr.mxu0 0.0
        %4673 = vmatpush1.msra.mxu0 0.0
        %4674 = vmatprep.subr.mxu0 0.0
        %4675 = vmatpush1.msra.mxu0 0.0
        %4676 = vmatprep.subr.mxu0 0.0
        %4677 = vmatpush1.msra.mxu0 0.0
        %4678 = vmatprep.subr.mxu0 0.0
        %4679 = vmatpush1.msra.mxu0 0.0
        %4680 = vmatprep.subr.mxu0 0.0
        %4681 = vmatpush1.msra.mxu0 0.0
        %4682 = vmatprep.subr.mxu0 0.0
        %4683 = vmatpush1.msra.mxu0 0.0
        %4684 = vmatprep.subr.mxu0 0.0
        %4685 = vmatpush1.msra.mxu0 0.0
        %4686 = vmatprep.subr.mxu0 0.0
        %4687 = vmatpush1.msra.mxu0 0.0
        %4688 = vmatprep.subr.mxu0 0.0
        %4689 = vmatpush1.msra.mxu0 0.0
        %4690 = vmatprep.subr.mxu0 0.0
        %4691 = vmatpush1.msra.mxu0 0.0
        %4692 = vmatprep.subr.mxu0 0.0
        %4693 = vmatpush1.msra.mxu0 0.0
        %4694 = vmatprep.subr.mxu0 0.0
        %4695 = vmatpush1.msra.mxu0 0.0
        %4696 = vmatprep.subr.mxu0 0.0
        %4697 = vmatpush1.msra.mxu0 0.0
        %4698 = vmatprep.subr.mxu0 0.0
        %4699 = vmatpush1.msra.mxu0 0.0
        %4700 = vmatprep.subr.mxu0 0.0
        %4701 = vmatpush1.msra.mxu0 0.0
        %4702 = vmatprep.subr.mxu0 0.0
        %4703 = vmatpush1.msra.mxu0 0.0
        %4704 = vmatprep.subr.mxu0 0.0
        %4705 = vmatpush1.msra.mxu0 0.0
        %4706 = vmatprep.subr.mxu0 0.0
        %4707 = vmatpush1.msra.mxu0 0.0
        %4708 = vmatprep.subr.mxu0 0.0
        %4709 = vmatpush1.msra.mxu0 0.0
        %4710 = vmatprep.subr.mxu0 0.0
        %4711 = vmatpush1.msra.mxu0 0.0
        %4712 = vmatprep.mubr.f32.mxu0 0.0
        %v4713 = vand.u32 %v4265, 4294901760
        %4714 = vmatmul.mubr.f32.gmra.mrb[0].mxu0 %v4713
        %v4715 = vpop.f32.mrb[0].mxu0
        %v4716 = vadd.f32 %v4623, %v4715
        %v4717 = vpop.f32.mrb[0].mxu0
        %v4718 = vadd.f32 %v4625, %v4717
        %4719 = vmatprep.mubr.f32.mxu0 0.0
        %v4720 = vand.u32 %v4268, 4294901760
        %4721 = vmatmul.mubr.f32.gmra.mrb[0].mxu0 %v4720
        %v4722 = vpop.f32.mrb[0].mxu0
        %v4723 = vadd.f32 %v4632, %v4722
        %v4724 = vpop.f32.mrb[0].mxu0
        %v4725 = vadd.f32 %v4634, %v4724
        %4726 = vdwg.mxu0
        %v4727 = vand.u32 %v4247, 4294901760
        %4728 = vmatprep.subr.mxu0 %v4727
        %v4729 = vand.u32 %v4246, 4294901760
        %4730 = vmatpush1.msra.mxu0 %v4729
        %v4731 = vand.u32 %v4249, 4294901760
        %4732 = vmatprep.subr.mxu0 %v4731
        %v4733 = vand.u32 %v4248, 4294901760
        %4734 = vmatpush1.msra.mxu0 %v4733
        %4735 = vmatprep.subr.mxu0 0.0
        %4736 = vmatpush1.msra.mxu0 0.0
        %4737 = vmatprep.subr.mxu0 0.0
        %4738 = vmatpush1.msra.mxu0 0.0
        %4739 = vmatprep.subr.mxu0 0.0
        %4740 = vmatpush1.msra.mxu0 0.0
        %4741 = vmatprep.subr.mxu0 0.0
        %4742 = vmatpush1.msra.mxu0 0.0
        %4743 = vmatprep.subr.mxu0 0.0
        %4744 = vmatpush1.msra.mxu0 0.0
        %4745 = vmatprep.subr.mxu0 0.0
        %4746 = vmatpush1.msra.mxu0 0.0
        %4747 = vmatprep.subr.mxu0 0.0
        %4748 = vmatpush1.msra.mxu0 0.0
        %4749 = vmatprep.subr.mxu0 0.0
        %4750 = vmatpush1.msra.mxu0 0.0
        %4751 = vmatprep.subr.mxu0 0.0
        %4752 = vmatpush1.msra.mxu0 0.0
        %4753 = vmatprep.subr.mxu0 0.0
        %4754 = vmatpush1.msra.mxu0 0.0
        %4755 = vmatprep.subr.mxu0 0.0
        %4756 = vmatpush1.msra.mxu0 0.0
        %4757 = vmatprep.subr.mxu0 0.0
        %4758 = vmatpush1.msra.mxu0 0.0
        %4759 = vmatprep.subr.mxu0 0.0
        %4760 = vmatpush1.msra.mxu0 0.0
        %4761 = vmatprep.subr.mxu0 0.0
        %4762 = vmatpush1.msra.mxu0 0.0
        %4763 = vmatprep.subr.mxu0 0.0
        %4764 = vmatpush1.msra.mxu0 0.0
        %4765 = vmatprep.subr.mxu0 0.0
        %4766 = vmatpush1.msra.mxu0 0.0
        %4767 = vmatprep.subr.mxu0 0.0
        %4768 = vmatpush1.msra.mxu0 0.0
        %4769 = vmatprep.subr.mxu0 0.0
        %4770 = vmatpush1.msra.mxu0 0.0
        %4771 = vmatprep.subr.mxu0 0.0
        %4772 = vmatpush1.msra.mxu0 0.0
        %4773 = vmatprep.subr.mxu0 0.0
        %4774 = vmatpush1.msra.mxu0 0.0
        %4775 = vmatprep.subr.mxu0 0.0
        %4776 = vmatpush1.msra.mxu0 0.0
        %4777 = vmatprep.subr.mxu0 0.0
        %4778 = vmatpush1.msra.mxu0 0.0
        %4779 = vmatprep.subr.mxu0 0.0
        %4780 = vmatpush1.msra.mxu0 0.0
        %4781 = vmatprep.subr.mxu0 0.0
        %4782 = vmatpush1.msra.mxu0 0.0
        %4783 = vmatprep.subr.mxu0 0.0
        %4784 = vmatpush1.msra.mxu0 0.0
        %4785 = vmatprep.subr.mxu0 0.0
        %4786 = vmatpush1.msra.mxu0 0.0
        %4787 = vmatprep.subr.mxu0 0.0
        %4788 = vmatpush1.msra.mxu0 0.0
        %4789 = vmatprep.subr.mxu0 0.0
        %4790 = vmatpush1.msra.mxu0 0.0
        %4791 = vmatprep.subr.mxu0 0.0
        %4792 = vmatpush1.msra.mxu0 0.0
        %4793 = vmatprep.subr.mxu0 0.0
        %4794 = vmatpush1.msra.mxu0 0.0
        %4795 = vmatprep.mubr.f32.mxu0 0.0
        %v4796 = vand.u32 %v4265, 4294901760
        %4797 = vmatmul.mubr.f32.gmra.mrb[0].mxu0 %v4796
        %v4798 = vpop.f32.mrb[0].mxu0
        %v4799 = vadd.f32 %v4716, %v4798
        %v4800 = vpop.f32.mrb[0].mxu0
        %v4801 = vadd.f32 %v4718, %v4800
        %4802 = vmatprep.mubr.f32.mxu0 0.0
        %v4803 = vand.u32 %v4268, 4294901760
        %4804 = vmatmul.mubr.f32.gmra.mrb[0].mxu0 %v4803
        %v4805 = vpop.f32.mrb[0].mxu0
        %v4806 = vadd.f32 %v4723, %v4805
        %v4807 = vpop.f32.mrb[0].mxu0
        %v4808 = vadd.f32 %v4725, %v4807
        %4809 = vdwg.mxu0
        %v4810 = vadd.f32 %v4799, %v370
        %v4811 = vadd.f32 %v4801, %v371
        %v4812 = vadd.f32 %v4806, %v372
        %v4813 = vadd.f32 %v4808, %v373
        %4814 = vst [vmem:[%s365] sm:$0xff] %v4810
        %4815 = vst [vmem:[%s365 + $0x8] sm:$0xff] %v4811
        %4816 = vst [vmem:[%s365 + $0x10] sm:$0xff] %v4812
        %4817 = vst [vmem:[%s365 + $0x18] sm:$0xff] %v4813
        %s4818 = sand.u32 %s206, 1
        %s4819 = scalar_lea.sflag [#allocation4], %s4818
        %s4820 = sand.u32 %s206, 1
        %s4821 = smul.addr %s4820, 32
        %s4822 = scalar_lea.vmem [#allocation10], %s4821
        // Predicated region
        $region69: #{tpu_custom_call.1} parent=51 // pred_check
          %p4823 = pneg %p216
        $region70: #{tpu_custom_call.1} parent=51 // pred_check_branch
          %4825 = sbr.rel (%p4823) target = $region72
        $region71: #{tpu_custom_call.1} parent=51 // pred_region
          %s4826 = smul.u32 2, %s25
          %s4828 = ssub.s32 512, 512
          %4829 = vsyncadd %s4819, %s4828
          %s4830 = smul.addr %s4826, 2
          %s4831 = smul.addr %s4830, 128
          %s4832 = scalar_lea.hbm %s8, %s4831
          %s4833 = sshll.u32 %s4822, 4
          %s4834 = int_to_ptr.vmem [resolvable:$true] %s4833
          %4839 = dma.vmem_to_hbm [thread:$0]  %s4834, 512, %s4832, %s4819, 256, 256, 16
        $region72: #{tpu_custom_call.1} parent=51 // pred_fallthru
          _
      $region52: #{tpu_custom_call.1} parent=5 // pred_fallthru
        _
      %p4840 = scmp.le.s32.totalorder 2, %s20
      // Predicated region
      $region73: #{tpu_custom_call.1} parent=5 // pred_check
        %p4841 = pneg %p4840
      $region74: #{tpu_custom_call.1} parent=5 // pred_check_branch
        %4843 = sbr.rel (%p4841) target = $region76
      $region75: #{tpu_custom_call.1} parent=5 // pred_region
        %s4844 = ssub.s32 %s20, 2
        // Predicated region
        $region77: #{tpu_custom_call.1} parent=75 // pred_check
          %p4845 = pneg %p222
        $region78: #{tpu_custom_call.1} parent=75 // pred_check_branch
          %4847 = sbr.rel (%p4845) target = $region80
        $region79: #{tpu_custom_call.1} parent=75 // pred_region
          %s4848 = sand.u32 %s207, 1
          %s4849 = scalar_lea.sflag [#allocation4], %s4848
          %s4850 = sand.u32 %s207, 1
          %s4851 = smul.addr %s4850, 32
          %s4852 = scalar_lea.vmem [#allocation10], %s4851
          %4853 = dma.done %s4849, 512
        $region80: #{tpu_custom_call.1} parent=75 // pred_fallthru
          _
      $region76: #{tpu_custom_call.1} parent=5 // pred_fallthru
        _
    $region6: #{tpu_custom_call.1} parent=1 // loop_footer
      %s24 = sadd.s32 1, %s20
    $region7: #{tpu_custom_call.1} parent=1 // loop_footer_branch
      %19 = sbr.rel target = $region3
    $region8: #{tpu_custom_call.1} parent=1 // loop_exit
      _
    %4854 = vsyncpa [#allocation3], 1
    %s4855 = scalar_lea.sflag [#allocation3], 1
    %4856 = vsyncpa %s4855, 1
    %4857 = vsyncpa [#allocation8], 1
    %4858 = vsyncpa [#allocation4], 1
    %s4859 = scalar_lea.sflag [#allocation4], 1
    %4860 = vsyncpa %s4859, 1
    %4861 = vsyncpa [#allocation5], 1
    %s4862 = scalar_lea.sflag [#allocation5], 1
    %4863 = vsyncpa %s4862, 1

</llo_original>
